<compile_context>
chip_gen: v7x
topology: tpu7x:2x2x1
jax: 0.10.0
libtpu: 0.0.40
codegen_flags: <defaults>
</compile_context>

<pallas_src>
from functools import partial

import numpy as np
import jax
import jax.numpy as jnp
from jax.experimental import pallas as pl
from jax.experimental.pallas import tpu as pltpu

SIGNIF_CUT = 2.0        # EdgeBuilder(signif_cut=2)
K = 4                   # EdgeBuilder(name='knn', k=4)
CHUNK = 512             # candidate sublanes processed per streaming step
PAD_COORD = 1e15        # padded-candidate coordinate sentinel (d ~ 3e30)
BIG = 1e30              # self-loop masked distance
VALID_THRESH = 1e29     # keys below this correspond to a real neighbour
CHOSEN = 3e38           # "already selected / exhausted" key sentinel


# ----------------------------------------------------------------------------
# knn_graph kernel: streamed VPU distances + packed-key read-only top-k
# ----------------------------------------------------------------------------
def knn_kernel(q_ref, cand_ref, out_ref, *, k, chunk, idx_bits, sentinel):
    """One query row-tile vs all candidates, streamed in `chunk`-sublane slices.

    q_ref   : [8, TM]    rows 0..2 = x,y,z of the TM query nodes of this tile
    cand_ref: [Npad, 8]  cols 0..2 = x,y,z of all candidates (padded rows = 1e15)
    out_ref : [8, TM]    rows 0..k-1 = neighbour indices, rows k..7 = sentinel
    """
    npad = cand_ref.shape[0]
    tm = q_ref.shape[1]
    n_chunks = npad // chunk
    idx_mask = (1 << idx_bits) - 1
    high_mask = -(1 << idx_bits)
    chosen = jnp.float32(CHOSEN)

    qx = q_ref[0:1, :]                                   # [1, TM]
    qy = q_ref[1:2, :]
    qz = q_ref[2:3, :]
    q_gidx = pl.program_id(0) * tm + jax.lax.broadcasted_iota(jnp.int32, (1, tm), 1)

    def topk_rows(keys, kk):
        # Read-only top-k along the sublane axis.  Keys are unique per column
        # (candidate index lives in the low mantissa bits), so excluding the
        # already-selected entries is a strict '> prev' compare -- the key tile
        # is never rewritten.
        rows = [jnp.min(keys, axis=0, keepdims=True)]
        for _ in range(kk - 1):
            masked = jnp.where(keys > rows[-1], keys, chosen)
            rows.append(jnp.min(masked, axis=0, keepdims=True))
        return jnp.concatenate(rows, axis=0)             # [kk, TM], ascending

    def body(c, best):
        start = pl.multiple_of(c * chunk, chunk)
        blk = cand_ref[pl.ds(start, chunk), :]           # [chunk, 8]
        dx = blk[:, 0:1] - qx                            # [chunk, TM] (lazy bcast)
        dy = blk[:, 1:2] - qy
        dz = blk[:, 2:3] - qz
        d = dx * dx + dy * dy + dz * dz                  # squared distance (VPU)
        cand_gidx = start + jax.lax.broadcasted_iota(jnp.int32, (chunk, 1), 0)
        d = jnp.where(cand_gidx == q_gidx, jnp.float32(BIG), d)   # loop=False
        # pack (distance, candidate index) into one f32 key: truncated distance in
        # the high bits, index in the low idx_bits -> one reduction per top-k step,
        # tie-break by smallest index.
        key = pltpu.bitcast(
            (pltpu.bitcast(d + 1.0, jnp.int32) & jnp.int32(high_mask)) | cand_gidx,
            jnp.float32)
        merged = jnp.concatenate([best, topk_rows(key, k)], axis=0)   # [2k, TM]
        return topk_rows(merged, k)                      # new running best [k, TM]

    best0 = jnp.full((k, tm), chosen, jnp.float32)
    best = jax.lax.fori_loop(0, n_chunks, body, best0)

    idx = pltpu.bitcast(best, jnp.int32) & idx_mask
    nbr = jnp.where(best < jnp.float32(VALID_THRESH), idx, sentinel)
    pad = jnp.full((8 - k, tm), sentinel, jnp.int32)
    out_ref[...] = jnp.concatenate([nbr, pad], axis=0)   # lane-dense store


def _tpu_vmem_capacity_bytes():
    try:
        info = pltpu.get_tpu_info()
        cap = getattr(info, "vmem_capacity_bytes", None)
        if cap:
            return int(cap)
    except Exception:
        pass
    return 64 * 1024 * 1024          # conservative (v7x-sized) fallback


def _pick_row_tile(npad, vmem_cap):
    # bigger row tiles on 128 MiB parts (v5e/v6e); cap at npad//2 so the 'parallel'
    # row axis always has >= 2 steps to feed v7x's two TensorCores.
    tm_max = 512 if vmem_cap >= (96 << 20) else 256
    tm_max = min(tm_max, max(128, npad // 2))
    for tm in (512, 256, 128):
        if tm <= tm_max and npad % tm == 0:
            return tm
    return 128


def knn_neighbours_pallas(q_ld, cand_nm, k=K):
    """q_ld: [8, Npad] lane-dense query coords; cand_nm: [Npad, 8] node-major coords.
       Returns [8, Npad] int32 (rows 0..k-1 = neighbour indices, sentinel = Npad)."""
    npad = q_ld.shape[1]
    vmem_cap = _tpu_vmem_capacity_bytes()
    tm = _pick_row_tile(npad, vmem_cap)
    chunk = min(CHUNK, npad)
    idx_bits = max(8, (npad - 1).bit_length())
    kernel = partial(knn_kernel, k=k, chunk=chunk, idx_bits=idx_bits, sentinel=npad)

    # generation-aware VMEM budget: the (lane-padded to 128) candidate block is the
    # biggest resident; per-chunk temporaries are small by construction.
    need = 2 * npad * 512 + 4 * chunk * tm * 4 + 16 * 8 * tm * 4 + (4 << 20)
    ceiling = (40 << 20) if vmem_cap < (96 << 20) else (64 << 20)
    vmem_limit = int(min(max(need, 16 << 20), ceiling))

    return pl.pallas_call(
        kernel,
        out_shape=jax.ShapeDtypeStruct((8, npad), jnp.int32),
        grid=(npad // tm,),
        in_specs=[pl.BlockSpec((8, tm), lambda r: (0, r)),
                  pl.BlockSpec((npad, 8), lambda r: (0, 0))],   # grid-invariant block
        out_specs=pl.BlockSpec((8, tm), lambda r: (0, r)),
        compiler_params=pltpu.CompilerParams(
            dimension_semantics=("parallel",),
            vmem_limit_bytes=vmem_limit),
    )(q_ld, cand_nm)


# ----------------------------------------------------------------------------
# Single-jit device pipeline: significance -> mask -> compaction -> knn
# ----------------------------------------------------------------------------
@jax.jit
def _device_pipeline(e, sigma, x, y, z, eta, phi, pt):
    n = e.shape[0]
    npad = max(CHUNK, ((n + CHUNK - 1) // CHUNK) * CHUNK)

    # significance is a trivially memory-bound elementwise op: plain XLA so it
    # fuses with the cut / cumsum / compaction scatter (matches numpy semantics,
    # Sigma == 0 -> inf which passes the cut).
    sig = jnp.abs(e / sigma)                                     # [n] f32
    mask = sig >= SIGNIF_CUT                                     # [n] bool
    n2 = jnp.sum(mask.astype(jnp.int32))

    # on-device compaction into a fixed-size padded buffer (no host round trip)
    pos = jnp.cumsum(mask.astype(jnp.int32)) - 1
    scat = jnp.where(mask, pos, npad)                            # npad -> dropped
    feats = jnp.stack([x, y, z, eta, phi, e, sigma, pt, sig], axis=1)   # [n, 9]
    comp = jnp.zeros((npad, 9), jnp.float32).at[scat].set(feats, mode="drop")

    # candidates, node-major [Npad, 8]: cols 0..2 = xyz; padded rows get sentinel
    # coords so their distance exceeds VALID_THRESH (no valid-flag column needed).
    in_range = jnp.arange(npad) < n2
    cand_xyz = jnp.where(in_range[:, None], comp[:, :3], jnp.float32(PAD_COORD))
    cand_nm = jnp.concatenate([cand_xyz, jnp.zeros((npad, 5), jnp.float32)], axis=1)
    # queries, lane-dense [8, Npad]: xyz in sublanes, nodes in lanes
    q_ld = jnp.zeros((8, npad), jnp.float32).at[:3, :].set(comp[:, :3].T)

    nbr = knn_neighbours_pallas(q_ld, cand_nm)                   # [8, npad] int32
    return sig, mask, comp, n2, nbr


# ----------------------------------------------------------------------------
# EdgeBuilder.forward equivalent (name='knn')
# ----------------------------------------------------------------------------
def edge_builder_forward(cells):
    """cells: dict of [N] arrays mimicking the h5 structured-array fields."""
    f32 = lambda key: jnp.asarray(cells[key], jnp.float32)
    sig, mask, comp, n2, nbr = jax.block_until_ready(_device_pipeline(
        f32("cell_E"), f32("cell_Sigma"),
        f32("cell_xCells"), f32("cell_yCells"), f32("cell_zCells"),
        f32("cell_eta"), f32("cell_phi"), f32("cell_pt")))
    n2 = int(n2)
    mask_np = np.asarray(mask)

    # int64 cell ids stay on host (jax default is x32); data-dependent slicing here
    ids2 = np.asarray(cells["cell_IdCells"], dtype=np.int64)[mask_np][:, None]

    nbr_np = np.asarray(nbr)[:K, :].T[:n2]                       # [n2, K]
    tgt = np.broadcast_to(np.arange(n2)[:, None], (n2, K))
    valid_e = nbr_np < n2                                        # drop sentinel picks
    # torch_geometric knn_graph convention (flow='source_to_target'):
    # row 0 = source (neighbour), row 1 = target (centre node)
    edge_indices = np.stack([nbr_np[valid_e], tgt[valid_e]], axis=0).astype(np.int64)

    feature_out = comp[:n2][:, jnp.array([0, 1, 2, 3, 4, 8])]    # x,y,z,eta,phi,signif
    return feature_out, edge_indices, ids2


if __name__ == "__main__":
    key = jax.random.PRNGKey(0)
    N = 200
    ks = jax.random.split(key, 8)
    cells = {
        "cell_xCells": jax.random.normal(ks[0], (N,), jnp.float32) * 100.0,
        "cell_yCells": jax.random.normal(ks[1], (N,), jnp.float32) * 100.0,
        "cell_zCells": jax.random.normal(ks[2], (N,), jnp.float32) * 150.0,
        "cell_eta":    jax.random.uniform(ks[3], (N,), jnp.float32, -2.5, 2.5),
        "cell_phi":    jax.random.uniform(ks[4], (N,), jnp.float32, -np.pi, np.pi),
        "cell_E":      jax.random.normal(ks[5], (N,), jnp.float32) * 3.0,
        "cell_Sigma":  jax.random.uniform(ks[6], (N,), jnp.float32, 0.8, 1.2),
        "cell_pt":     jnp.abs(jax.random.normal(ks[7], (N,), jnp.float32)) * 2.0,
        "cell_IdCells": np.arange(N, dtype=np.int64) * 7 + 3,
    }

    feature_out, edge_indices, cell_id = edge_builder_forward(cells)
    feature_out = jax.block_until_ready(feature_out)

    n2 = feature_out.shape[0]
    assert feature_out.ndim == 2 and feature_out.shape[1] == 6
    assert edge_indices.shape[0] == 2 and edge_indices.dtype == np.int64
    assert cell_id.shape == (n2, 1) and cell_id.dtype == np.int64
    # structural checks on the knn graph
    assert np.all(edge_indices >= 0) and np.all(edge_indices < n2)
    assert np.all(edge_indices[0] != edge_indices[1])            # loop=False
    if n2 > K:
        assert edge_indices.shape[1] == n2 * K                   # exactly K neighbours each
    print("KERNEL_OK")
</pallas_src>

<mosaic_0001>
module attributes {stable_mosaic.version = 11 : i64} {
  func.func @knn_kernel(%arg0: i32, %arg1: memref<8x256xf32, #tpu.memory_space<vmem>>, %arg2: memref<512x8xf32, #tpu.memory_space<vmem>>, %arg3: memref<8x256xi32, #tpu.memory_space<vmem>>) attributes {dimension_semantics = [#tpu.dimension_semantics<parallel>], iteration_bounds = array<i64: 2>, scalar_prefetch = 0 : i64, scratch_operands = 0 : i64, tpu.core_type = #tpu.core_type<tc>, window_params = [{transform_indices = @transform_0, window_bounds = array<i64: 8, 256>}, {pipeline_mode = #tpu.pipeline_mode<synchronous>, transform_indices = @transform_1, window_bounds = array<i64: 512, 8>}, {transform_indices = @transform_2, window_bounds = array<i64: 8, 256>}]} {
    %c0 = arith.constant 0 : index
    %c0_0 = arith.constant 0 : index
    %0 = vector.load %arg1[%c0, %c0_0] : memref<8x256xf32, #tpu.memory_space<vmem>>, vector<1x256xf32>
    %c1 = arith.constant 1 : index
    %c0_1 = arith.constant 0 : index
    %1 = vector.load %arg1[%c1, %c0_1] : memref<8x256xf32, #tpu.memory_space<vmem>>, vector<1x256xf32>
    %c2 = arith.constant 2 : index
    %c0_2 = arith.constant 0 : index
    %2 = vector.load %arg1[%c2, %c0_2] : memref<8x256xf32, #tpu.memory_space<vmem>>, vector<1x256xf32>
    %c256_i32 = arith.constant 256 : i32
    %3 = arith.muli %arg0, %c256_i32 : i32
    %4 = tpu.iota {dimensions = array<i32: 1>} : vector<1x256xi32>
    %5 = vector.broadcast %3 : i32 to vector<1x256xi32>
    %6 = arith.addi %5, %4 : vector<1x256xi32>
    %cst = arith.constant 3.000000e+38 : f32
    %7 = vector.broadcast %cst : f32 to vector<4x256xf32>
    %cst_3 = arith.constant 3.000000e+38 : f32
    %c0_i32 = arith.constant 0 : i32
    %c512_i32 = arith.constant 512 : i32
    %8 = arith.muli %c0_i32, %c512_i32 : i32
    %9 = tpu.assume_multiple %8, 512 : i32
    %10 = arith.index_cast %9 : i32 to index
    %c0_4 = arith.constant 0 : index
    %11 = vector.load %arg2[%10, %c0_4] : memref<512x8xf32, #tpu.memory_space<vmem>>, vector<512x8xf32>
    %12 = vector.extract_strided_slice %11 {offsets = [0, 0], sizes = [512, 1], strides = [1, 1]} : vector<512x8xf32> to vector<512x1xf32>
    %13 = vector.broadcast %12 : vector<512x1xf32> to vector<512x256xf32>
    %14 = vector.broadcast %0 : vector<1x256xf32> to vector<512x256xf32>
    %15 = arith.subf %13, %14 : vector<512x256xf32>
    %16 = vector.extract_strided_slice %11 {offsets = [0, 1], sizes = [512, 1], strides = [1, 1]} : vector<512x8xf32> to vector<512x1xf32>
    %17 = vector.broadcast %16 : vector<512x1xf32> to vector<512x256xf32>
    %18 = vector.broadcast %1 : vector<1x256xf32> to vector<512x256xf32>
    %19 = arith.subf %17, %18 : vector<512x256xf32>
    %20 = vector.extract_strided_slice %11 {offsets = [0, 2], sizes = [512, 1], strides = [1, 1]} : vector<512x8xf32> to vector<512x1xf32>
    %21 = vector.broadcast %20 : vector<512x1xf32> to vector<512x256xf32>
    %22 = vector.broadcast %2 : vector<1x256xf32> to vector<512x256xf32>
    %23 = arith.subf %21, %22 : vector<512x256xf32>
    %24 = arith.mulf %15, %15 : vector<512x256xf32>
    %25 = arith.mulf %19, %19 : vector<512x256xf32>
    %26 = arith.addf %24, %25 : vector<512x256xf32>
    %27 = arith.mulf %23, %23 : vector<512x256xf32>
    %28 = arith.addf %26, %27 : vector<512x256xf32>
    %29 = tpu.iota {dimensions = array<i32: 0>} : vector<512x1xi32>
    %30 = vector.broadcast %9 : i32 to vector<512x1xi32>
    %31 = arith.addi %30, %29 : vector<512x1xi32>
    %32 = vector.broadcast %31 : vector<512x1xi32> to vector<512x256xi32>
    %33 = vector.broadcast %6 : vector<1x256xi32> to vector<512x256xi32>
    %34 = arith.cmpi eq, %32, %33 : vector<512x256xi32>
    %cst_5 = arith.constant 1.000000e+30 : f32
    %35 = vector.broadcast %cst_5 : f32 to vector<512x256xf32>
    %36 = arith.select %34, %35, %28 : vector<512x256xi1>, vector<512x256xf32>
    %cst_6 = arith.constant 1.000000e+00 : f32
    %37 = vector.broadcast %cst_6 : f32 to vector<512x256xf32>
    %38 = arith.addf %36, %37 : vector<512x256xf32>
    %39 = tpu.bitcast %38 : vector<512x256xf32> -> vector<512x256xi32>
    %c-512_i32 = arith.constant -512 : i32
    %40 = vector.broadcast %c-512_i32 : i32 to vector<512x256xi32>
    %41 = arith.andi %39, %40 : vector<512x256xi32>
    %42 = vector.broadcast %31 : vector<512x1xi32> to vector<512x256xi32>
    %43 = arith.ori %41, %42 : vector<512x256xi32>
    %44 = tpu.bitcast %43 : vector<512x256xi32> -> vector<512x256xf32>
    %cst_7 = arith.constant dense<0x7F800000> : vector<256xf32>
    %45 = vector.multi_reduction <minimumf>, %44, %cst_7 [0] : vector<512x256xf32> to vector<256xf32>
    %46 = vector.shape_cast %45 : vector<256xf32> to vector<1x256xf32>
    %47 = vector.broadcast %46 : vector<1x256xf32> to vector<512x256xf32>
    %48 = arith.cmpf ogt, %44, %47 : vector<512x256xf32>
    %49 = vector.broadcast %cst_3 : f32 to vector<512x256xf32>
    %50 = arith.select %48, %44, %49 : vector<512x256xi1>, vector<512x256xf32>
    %cst_8 = arith.constant dense<0x7F800000> : vector<256xf32>
    %51 = vector.multi_reduction <minimumf>, %50, %cst_8 [0] : vector<512x256xf32> to vector<256xf32>
    %52 = vector.shape_cast %51 : vector<256xf32> to vector<1x256xf32>
    %53 = vector.broadcast %52 : vector<1x256xf32> to vector<512x256xf32>
    %54 = arith.cmpf ogt, %44, %53 : vector<512x256xf32>
    %55 = vector.broadcast %cst_3 : f32 to vector<512x256xf32>
    %56 = arith.select %54, %44, %55 : vector<512x256xi1>, vector<512x256xf32>
    %cst_9 = arith.constant dense<0x7F800000> : vector<256xf32>
    %57 = vector.multi_reduction <minimumf>, %56, %cst_9 [0] : vector<512x256xf32> to vector<256xf32>
    %58 = vector.shape_cast %57 : vector<256xf32> to vector<1x256xf32>
    %59 = vector.broadcast %58 : vector<1x256xf32> to vector<512x256xf32>
    %60 = arith.cmpf ogt, %44, %59 : vector<512x256xf32>
    %61 = vector.broadcast %cst_3 : f32 to vector<512x256xf32>
    %62 = arith.select %60, %44, %61 : vector<512x256xi1>, vector<512x256xf32>
    %cst_10 = arith.constant dense<0x7F800000> : vector<256xf32>
    %63 = vector.multi_reduction <minimumf>, %62, %cst_10 [0] : vector<512x256xf32> to vector<256xf32>
    %64 = vector.shape_cast %63 : vector<256xf32> to vector<1x256xf32>
    %65 = tpu.concatenate %46, %52, %58, %64 in 0 : vector<1x256xf32>, vector<1x256xf32>, vector<1x256xf32>, vector<1x256xf32> -> vector<4x256xf32>
    %66 = tpu.concatenate %7, %65 in 0 : vector<4x256xf32>, vector<4x256xf32> -> vector<8x256xf32>
    %cst_11 = arith.constant dense<0x7F800000> : vector<256xf32>
    %67 = vector.multi_reduction <minimumf>, %66, %cst_11 [0] : vector<8x256xf32> to vector<256xf32>
    %68 = vector.shape_cast %67 : vector<256xf32> to vector<1x256xf32>
    %69 = vector.broadcast %68 : vector<1x256xf32> to vector<8x256xf32>
    %70 = arith.cmpf ogt, %66, %69 : vector<8x256xf32>
    %71 = vector.broadcast %cst_3 : f32 to vector<8x256xf32>
    %72 = arith.select %70, %66, %71 : vector<8x256xi1>, vector<8x256xf32>
    %cst_12 = arith.constant dense<0x7F800000> : vector<256xf32>
    %73 = vector.multi_reduction <minimumf>, %72, %cst_12 [0] : vector<8x256xf32> to vector<256xf32>
    %74 = vector.shape_cast %73 : vector<256xf32> to vector<1x256xf32>
    %75 = vector.broadcast %74 : vector<1x256xf32> to vector<8x256xf32>
    %76 = arith.cmpf ogt, %66, %75 : vector<8x256xf32>
    %77 = vector.broadcast %cst_3 : f32 to vector<8x256xf32>
    %78 = arith.select %76, %66, %77 : vector<8x256xi1>, vector<8x256xf32>
    %cst_13 = arith.constant dense<0x7F800000> : vector<256xf32>
    %79 = vector.multi_reduction <minimumf>, %78, %cst_13 [0] : vector<8x256xf32> to vector<256xf32>
    %80 = vector.shape_cast %79 : vector<256xf32> to vector<1x256xf32>
    %81 = vector.broadcast %80 : vector<1x256xf32> to vector<8x256xf32>
    %82 = arith.cmpf ogt, %66, %81 : vector<8x256xf32>
    %83 = vector.broadcast %cst_3 : f32 to vector<8x256xf32>
    %84 = arith.select %82, %66, %83 : vector<8x256xi1>, vector<8x256xf32>
    %cst_14 = arith.constant dense<0x7F800000> : vector<256xf32>
    %85 = vector.multi_reduction <minimumf>, %84, %cst_14 [0] : vector<8x256xf32> to vector<256xf32>
    %86 = vector.shape_cast %85 : vector<256xf32> to vector<1x256xf32>
    %87 = tpu.concatenate %68, %74, %80, %86 in 0 : vector<1x256xf32>, vector<1x256xf32>, vector<1x256xf32>, vector<1x256xf32> -> vector<4x256xf32>
    %c1_i32 = arith.constant 1 : i32
    %88 = tpu.bitcast %87 : vector<4x256xf32> -> vector<4x256xi32>
    %c511_i32 = arith.constant 511 : i32
    %89 = vector.broadcast %c511_i32 : i32 to vector<4x256xi32>
    %90 = arith.andi %88, %89 : vector<4x256xi32>
    %cst_15 = arith.constant 1.000000e+29 : f32
    %91 = vector.broadcast %cst_15 : f32 to vector<4x256xf32>
    %92 = arith.cmpf olt, %87, %91 : vector<4x256xf32>
    %c512_i32_16 = arith.constant 512 : i32
    %93 = vector.broadcast %c512_i32_16 : i32 to vector<4x256xi32>
    %94 = arith.select %92, %90, %93 : vector<4x256xi1>, vector<4x256xi32>
    %c512_i32_17 = arith.constant 512 : i32
    %95 = vector.broadcast %c512_i32_17 : i32 to vector<4x256xi32>
    %96 = tpu.concatenate %94, %95 in 0 : vector<4x256xi32>, vector<4x256xi32> -> vector<8x256xi32>
    %c0_18 = arith.constant 0 : index
    %c0_19 = arith.constant 0 : index
    %97 = vector.load %arg3[%c0_18, %c0_19] : memref<8x256xi32, #tpu.memory_space<vmem>>, vector<8x256xi32>
    tpu.vector_store %arg3[%c0_18, %c0_19], %96 {strides = array<i32>} : memref<8x256xi32, #tpu.memory_space<vmem>>, vector<8x256xi32>,
    return
  }
  func.func @transform_0(%arg0: i32) -> (i32, i32) {
    %c0_i32 = arith.constant 0 : i32
    %c0_i32_0 = arith.constant 0 : i32
    return %c0_i32, %arg0 : i32, i32
  }
  func.func @transform_1(%arg0: i32) -> (i32, i32) {
    %c0_i32 = arith.constant 0 : i32
    %c0_i32_0 = arith.constant 0 : i32
    %c0_i32_1 = arith.constant 0 : i32
    return %c0_i32, %c0_i32_0 : i32, i32
  }
  func.func @transform_2(%arg0: i32) -> (i32, i32) {
    %c0_i32 = arith.constant 0 : i32
    %c0_i32_0 = arith.constant 0 : i32
    return %c0_i32, %arg0 : i32, i32
  }
}

</mosaic_0001>

<llo_original>
// kernel: _device_pipeline.1
$region0: #{_device_pipeline.1}
  #allocation0 [shape = 'u32[]', space=smem, size = 0x4, offset = 0x4, fixed_abs, tag = 'smem constant byte address 0x4 - core index']
  #allocation1 [shape = 'u32[144,128]{1,0:T(1,128)}', space=vmem, size = 0x12000, scoped, tag = 'internal scratch']
  %s0 = inlined_call_operand.vmem [shape: f32[8,512], index: 0, kind: input, shape index: {}]
  %s1 = inlined_call_operand.vmem [shape: f32[512,8], index: 1, kind: input, shape index: {}]
  %s2 = inlined_call_operand.hbm [shape: s32[8,512], index: 2, kind: output, shape index: {}]
  %s3 = sld [smem:[#allocation0]]
  $region41: #{_device_pipeline.1} parent=0
    _
  %s5 = ssub.s32 1, %s3
  %s6 = scalar_select 0, %s5, %s3
  $region1: #{_device_pipeline.1} parent=0
    #allocation2 [shape = 'u8[16384]{0}', space=vmem, size = 0x4000, scoped, tag = 'output window, operand 0']
    #allocation3 [shape = 's32[2]{0}', space=sflag, size = 0x8, scoped, tag = 'scoped memory for _device_pipeline.1']
    %7 = vsyncpa [#allocation3], 0
    %s8 = scalar_lea.sflag [#allocation3], 1
    %9 = vsyncpa %s8, 0
    loop: start=0, step=1, limit=4
    $region2: #{_device_pipeline.1} parent=1 // loop_pre_header
      _
    $region3: #{_device_pipeline.1} parent=1 // loop_header
      %s11 = sphi 0, %s15
      %p12 = scmp.ge.s32.totalorder %s11, 4
      %s21 = sphi 0, %s23
      %s24 = sphi 0, %s21
      %s25 = sphi 0, %s24
      %s41 = sphi 0, %s25
      %s45 = sphi 0, %s45
      %s47 = sphi 0, %s45
      %s48 = sphi 0, %s47
      %s62 = sphi 0, %s48
      %s68 = sphi 0, %s70
      %s71 = sphi 0, %s68
      %s72 = sphi 0, %s71
      %s88 = sphi 0, %s72
    $region4: #{_device_pipeline.1} parent=1 // loop_header_branch
      %14 = sbr.rel (%p12) target = $region8
    $region5: #{_device_pipeline.1} parent=1 // loop_body
      %s16 = ssub.s32 %s11, 1
      %s17 = ssub.s32 %s11, 2
      %s18 = sadd.s32 %s11, 1
      %s19 = ssub.s32 %s11, %s18
      %p20 = scmp.eq.s32.totalorder %s19, 0
      %s22 = sadd.s32 %s21, 1
      %s23 = scalar_select %p20, %s21, %s22
      %p26 = pneg %p20
      %p27 = scmp.eq.s32.totalorder %s11, 1
      %p28 = por %p26, %p27
      %p29 = scmp.ne.s32.totalorder %s21, %s24
      %p30 = scmp.eq.s32.totalorder %s11, 0
      %p31 = por %p29, %p30
      %p32 = scmp.ne.s32.totalorder %s21, %s24
      %p33 = scmp.eq.s32.totalorder %s16, 1
      %p34 = por %p32, %p33
      %p35 = scmp.ne.s32.totalorder %s24, %s25
      %p36 = scmp.eq.s32.totalorder %s16, 0
      %p37 = por %p35, %p36
      %p38 = scmp.ne.s32.totalorder %s24, %s25
      %p39 = scmp.eq.s32.totalorder %s17, 1
      %p40 = por %p38, %p39
      %p42 = scmp.ne.s32.totalorder %s25, %s41
      %p43 = scmp.eq.s32.totalorder %s17, 0
      %p44 = por %p42, %p43
      %s46 = sadd.s32 %s45, 1
      %p49 = scmp.eq.s32.totalorder %s11, 1
      %p50 = scmp.ne.s32.totalorder %s45, %s47
      %p51 = scmp.eq.s32.totalorder %s11, 0
      %p52 = por %p50, %p51
      %p53 = scmp.ne.s32.totalorder %s45, %s47
      %p54 = scmp.eq.s32.totalorder %s16, 1
      %p55 = por %p53, %p54
      %p56 = scmp.ne.s32.totalorder %s47, %s48
      %p57 = scmp.eq.s32.totalorder %s16, 0
      %p58 = por %p56, %p57
      %p59 = scmp.ne.s32.totalorder %s47, %s48
      %p60 = scmp.eq.s32.totalorder %s17, 1
      %p61 = por %p59, %p60
      %p63 = scmp.ne.s32.totalorder %s48, %s62
      %p64 = scmp.eq.s32.totalorder %s17, 0
      %p65 = por %p63, %p64
      %s66 = ssub.s32 %s11, %s18
      %p67 = scmp.eq.s32.totalorder %s66, 0
      %s69 = sadd.s32 %s68, 1
      %s70 = scalar_select %p67, %s68, %s69
      %p73 = pneg %p67
      %p74 = scmp.eq.s32.totalorder %s11, 1
      %p75 = por %p73, %p74
      %p76 = scmp.ne.s32.totalorder %s68, %s71
      %p77 = scmp.eq.s32.totalorder %s11, 0
      %p78 = por %p76, %p77
      %p79 = scmp.ne.s32.totalorder %s68, %s71
      %p80 = scmp.eq.s32.totalorder %s16, 1
      %p81 = por %p79, %p80
      %p82 = scmp.ne.s32.totalorder %s71, %s72
      %p83 = scmp.eq.s32.totalorder %s16, 0
      %p84 = por %p82, %p83
      %p85 = scmp.ne.s32.totalorder %s71, %s72
      %p86 = scmp.eq.s32.totalorder %s17, 1
      %p87 = por %p85, %p86
      %p89 = scmp.ne.s32.totalorder %s72, %s88
      %p90 = scmp.eq.s32.totalorder %s17, 0
      %p91 = por %p89, %p90
      %p92 = scmp.le.s32.totalorder 1, %s11
      %p93 = scmp.lt.s32.totalorder %s11, 3
      %p94 = pnand %p92, %p93
      %p95 = pneg %p94
      // Predicated region
      $region9: #{_device_pipeline.1} parent=5 // pred_check
        _
      $region10: #{_device_pipeline.1} parent=5 // pred_check_branch
        %97 = sbr.rel (%p94) target = $region12
      $region11: #{_device_pipeline.1} parent=5 // pred_region
        %s98 = ssub.s32 %s11, 1
        // Predicated region
        $region13: #{_device_pipeline.1} parent=11 // pred_check
          %p99 = pneg %p58
        $region14: #{_device_pipeline.1} parent=11 // pred_check_branch
          %101 = sbr.rel (%p99) target = $region16
        $region15: #{_device_pipeline.1} parent=11 // pred_region
          _
        $region16: #{_device_pipeline.1} parent=11 // pred_fallthru
          _
      $region12: #{_device_pipeline.1} parent=5 // pred_fallthru
        _
      %p102 = scmp.lt.s32.totalorder %s11, 2
      // Predicated region
      $region17: #{_device_pipeline.1} parent=5 // pred_check
        %p103 = pneg %p102
      $region18: #{_device_pipeline.1} parent=5 // pred_check_branch
        %105 = sbr.rel (%p103) target = $region20
      $region19: #{_device_pipeline.1} parent=5 // pred_region
        // Predicated region
        $region21: #{_device_pipeline.1} parent=19 // pred_check
          %p106 = pneg %p31
        $region22: #{_device_pipeline.1} parent=19 // pred_check_branch
          %108 = sbr.rel (%p106) target = $region24
        $region23: #{_device_pipeline.1} parent=19 // pred_region
          %s109 = smul.u32 2, %s11
          %p110 = scmp.lt.s32.totalorder %s109, 3
          %s111 = scalar_select %p110, %s109, 3
          %s112 = smul.addr %s111, 8
          %s113 = scalar_lea.vmem %s0, %s112
          %s114 = smul.u32 2, %s11
        $region24: #{_device_pipeline.1} parent=19 // pred_fallthru
          _
      $region20: #{_device_pipeline.1} parent=5 // pred_fallthru
        _
      %p115 = scmp.le.s32.totalorder 1, %s11
      %p116 = scmp.lt.s32.totalorder %s11, 3
      %p117 = pnand %p115, %p116
      %p118 = pneg %p117
      // Predicated region
      $region25: #{_device_pipeline.1} parent=5 // pred_check
        _
      $region26: #{_device_pipeline.1} parent=5 // pred_check_branch
        %120 = sbr.rel (%p117) target = $region28
      $region27: #{_device_pipeline.1} parent=5 // pred_region
        %s121 = ssub.s32 %s11, 1
        %s122 = smul.u32 2, %s16
        %p123 = scmp.lt.s32.totalorder %s122, 3
        %s124 = scalar_select %p123, %s122, 3
        %s125 = smul.addr %s124, 8
        %s126 = scalar_lea.vmem %s0, %s125
        %p127 = pneg %p37
        %p128 = pneg %p34
        %p129 = pneg %p58
        %p130 = pneg %p55
        %p131 = pneg %p84
        %p132 = pneg %p81
        %s133 = sand.u32 %s71, 1
        %s134 = scalar_lea.sflag [#allocation3], %s133
        %s135 = sand.u32 %s71, 1
        %s136 = smul.addr %s135, 16
        %s137 = scalar_lea.vmem [#allocation2], %s136
        %s138 = smul.u32 2, %s16
        %p139 = scmp.lt.s32.totalorder %s138, 3
        %s140 = scalar_select %p139, %s138, 3
        %s141 = smul.addr %s140, 8
        %s142 = scalar_lea.vmem %s0, %s141
        %s143 = smul.u32 2, %s16
        %s144 = smul.u32 2, %s16
        %v145 = vld [vmem:[%s142] ss:$8 sm:$0x3]
        %s146 = scalar_lea.vmem %s142, 1
        %v147 = vld [vmem:[%s146] ss:$8 sm:$0x3]
        %s148 = scalar_lea.vmem %s142, 2
        %v149 = vld [vmem:[%s148] ss:$8 sm:$0x3]
        %s150 = smul.u32 %s16, 256
        %v151 = vlaneseq
        %v152 = vand.u32 %v151, 127
        %v153 = vadd.s32 %v152, 128
        %v154 = vstv %s150
        %v155 = vadd.s32 %v154, %v152
        %v156 = vadd.s32 %v154, %v153
        %v157 = vld [vmem:[%s1] sm:$0xff]
        %v158 = vld [vmem:[%s1 + $0x8] sm:$0xff]
        %v159 = vld [vmem:[%s1 + $0x10] sm:$0xff]
        %v160 = vld [vmem:[%s1 + $0x18] sm:$0xff]
        %v161 = vld [vmem:[%s1 + $0x20] sm:$0xff]
        %v162 = vld [vmem:[%s1 + $0x28] sm:$0xff]
        %v163 = vld [vmem:[%s1 + $0x30] sm:$0xff]
        %v164 = vld [vmem:[%s1 + $0x38] sm:$0xff]
        %v165 = vld [vmem:[%s1 + $0x40] sm:$0xff]
        %v166 = vld [vmem:[%s1 + $0x48] sm:$0xff]
        %v167 = vld [vmem:[%s1 + $0x50] sm:$0xff]
        %v168 = vld [vmem:[%s1 + $0x58] sm:$0xff]
        %v169 = vld [vmem:[%s1 + $0x60] sm:$0xff]
        %v170 = vld [vmem:[%s1 + $0x68] sm:$0xff]
        %v171 = vld [vmem:[%s1 + $0x70] sm:$0xff]
        %v172 = vld [vmem:[%s1 + $0x78] sm:$0xff]
        %v173 = vld [vmem:[%s1 + $0x80] sm:$0xff]
        %v174 = vld [vmem:[%s1 + $0x88] sm:$0xff]
        %v175 = vld [vmem:[%s1 + $0x90] sm:$0xff]
        %v176 = vld [vmem:[%s1 + $0x98] sm:$0xff]
        %v177 = vld [vmem:[%s1 + $0xa0] sm:$0xff]
        %v178 = vld [vmem:[%s1 + $0xa8] sm:$0xff]
        %v179 = vld [vmem:[%s1 + $0xb0] sm:$0xff]
        %v180 = vld [vmem:[%s1 + $0xb8] sm:$0xff]
        %v181 = vld [vmem:[%s1 + $0xc0] sm:$0xff]
        %v182 = vld [vmem:[%s1 + $0xc8] sm:$0xff]
        %v183 = vld [vmem:[%s1 + $0xd0] sm:$0xff]
        %v184 = vld [vmem:[%s1 + $0xd8] sm:$0xff]
        %v185 = vld [vmem:[%s1 + $0xe0] sm:$0xff]
        %v186 = vld [vmem:[%s1 + $0xe8] sm:$0xff]
        %v187 = vld [vmem:[%s1 + $0xf0] sm:$0xff]
        %v188 = vld [vmem:[%s1 + $0xf8] sm:$0xff]
        %v189 = vld [vmem:[%s1 + $0x100] sm:$0xff]
        %v190 = vld [vmem:[%s1 + $0x108] sm:$0xff]
        %v191 = vld [vmem:[%s1 + $0x110] sm:$0xff]
        %v192 = vld [vmem:[%s1 + $0x118] sm:$0xff]
        %v193 = vld [vmem:[%s1 + $0x120] sm:$0xff]
        %v194 = vld [vmem:[%s1 + $0x128] sm:$0xff]
        %v195 = vld [vmem:[%s1 + $0x130] sm:$0xff]
        %v196 = vld [vmem:[%s1 + $0x138] sm:$0xff]
        %v197 = vld [vmem:[%s1 + $0x140] sm:$0xff]
        %v198 = vld [vmem:[%s1 + $0x148] sm:$0xff]
        %v199 = vld [vmem:[%s1 + $0x150] sm:$0xff]
        %v200 = vld [vmem:[%s1 + $0x158] sm:$0xff]
        %v201 = vld [vmem:[%s1 + $0x160] sm:$0xff]
        %v202 = vld [vmem:[%s1 + $0x168] sm:$0xff]
        %v203 = vld [vmem:[%s1 + $0x170] sm:$0xff]
        %v204 = vld [vmem:[%s1 + $0x178] sm:$0xff]
        %v205 = vld [vmem:[%s1 + $0x180] sm:$0xff]
        %v206 = vld [vmem:[%s1 + $0x188] sm:$0xff]
        %v207 = vld [vmem:[%s1 + $0x190] sm:$0xff]
        %v208 = vld [vmem:[%s1 + $0x198] sm:$0xff]
        %v209 = vld [vmem:[%s1 + $0x1a0] sm:$0xff]
        %v210 = vld [vmem:[%s1 + $0x1a8] sm:$0xff]
        %v211 = vld [vmem:[%s1 + $0x1b0] sm:$0xff]
        %v212 = vld [vmem:[%s1 + $0x1b8] sm:$0xff]
        %v213 = vld [vmem:[%s1 + $0x1c0] sm:$0xff]
        %v214 = vld [vmem:[%s1 + $0x1c8] sm:$0xff]
        %v215 = vld [vmem:[%s1 + $0x1d0] sm:$0xff]
        %v216 = vld [vmem:[%s1 + $0x1d8] sm:$0xff]
        %v217 = vld [vmem:[%s1 + $0x1e0] sm:$0xff]
        %v218 = vld [vmem:[%s1 + $0x1e8] sm:$0xff]
        %v219 = vld [vmem:[%s1 + $0x1f0] sm:$0xff]
        %v220 = vld [vmem:[%s1 + $0x1f8] sm:$0xff]
        %222 = vset.pattern.permute.xlu0 0
        %223 = vperm.xlu0 %222, %v157
        %v224 = vpop.permute.xlu0 %223
        %227 = vset.pattern.permute.xlu0 0
        %228 = vperm.xlu0 %227, %v158
        %v229 = vpop.permute.xlu0 %228
        %232 = vset.pattern.permute.xlu0 0
        %233 = vperm.xlu0 %232, %v159
        %v234 = vpop.permute.xlu0 %233
        %237 = vset.pattern.permute.xlu0 0
        %238 = vperm.xlu0 %237, %v160
        %v239 = vpop.permute.xlu0 %238
        %242 = vset.pattern.permute.xlu0 0
        %243 = vperm.xlu0 %242, %v161
        %v244 = vpop.permute.xlu0 %243
        %247 = vset.pattern.permute.xlu0 0
        %248 = vperm.xlu0 %247, %v162
        %v249 = vpop.permute.xlu0 %248
        %252 = vset.pattern.permute.xlu0 0
        %253 = vperm.xlu0 %252, %v163
        %v254 = vpop.permute.xlu0 %253
        %257 = vset.pattern.permute.xlu0 0
        %258 = vperm.xlu0 %257, %v164
        %v259 = vpop.permute.xlu0 %258
        %262 = vset.pattern.permute.xlu0 0
        %263 = vperm.xlu0 %262, %v165
        %v264 = vpop.permute.xlu0 %263
        %267 = vset.pattern.permute.xlu0 0
        %268 = vperm.xlu0 %267, %v166
        %v269 = vpop.permute.xlu0 %268
        %272 = vset.pattern.permute.xlu0 0
        %273 = vperm.xlu0 %272, %v167
        %v274 = vpop.permute.xlu0 %273
        %277 = vset.pattern.permute.xlu0 0
        %278 = vperm.xlu0 %277, %v168
        %v279 = vpop.permute.xlu0 %278
        %282 = vset.pattern.permute.xlu0 0
        %283 = vperm.xlu0 %282, %v169
        %v284 = vpop.permute.xlu0 %283
        %287 = vset.pattern.permute.xlu0 0
        %288 = vperm.xlu0 %287, %v170
        %v289 = vpop.permute.xlu0 %288
        %292 = vset.pattern.permute.xlu0 0
        %293 = vperm.xlu0 %292, %v171
        %v294 = vpop.permute.xlu0 %293
        %297 = vset.pattern.permute.xlu0 0
        %298 = vperm.xlu0 %297, %v172
        %v299 = vpop.permute.xlu0 %298
        %302 = vset.pattern.permute.xlu0 0
        %303 = vperm.xlu0 %302, %v173
        %v304 = vpop.permute.xlu0 %303
        %307 = vset.pattern.permute.xlu0 0
        %308 = vperm.xlu0 %307, %v174
        %v309 = vpop.permute.xlu0 %308
        %312 = vset.pattern.permute.xlu0 0
        %313 = vperm.xlu0 %312, %v175
        %v314 = vpop.permute.xlu0 %313
        %317 = vset.pattern.permute.xlu0 0
        %318 = vperm.xlu0 %317, %v176
        %v319 = vpop.permute.xlu0 %318
        %322 = vset.pattern.permute.xlu0 0
        %323 = vperm.xlu0 %322, %v177
        %v324 = vpop.permute.xlu0 %323
        %327 = vset.pattern.permute.xlu0 0
        %328 = vperm.xlu0 %327, %v178
        %v329 = vpop.permute.xlu0 %328
        %332 = vset.pattern.permute.xlu0 0
        %333 = vperm.xlu0 %332, %v179
        %v334 = vpop.permute.xlu0 %333
        %337 = vset.pattern.permute.xlu0 0
        %338 = vperm.xlu0 %337, %v180
        %v339 = vpop.permute.xlu0 %338
        %342 = vset.pattern.permute.xlu0 0
        %343 = vperm.xlu0 %342, %v181
        %v344 = vpop.permute.xlu0 %343
        %347 = vset.pattern.permute.xlu0 0
        %348 = vperm.xlu0 %347, %v182
        %v349 = vpop.permute.xlu0 %348
        %352 = vset.pattern.permute.xlu0 0
        %353 = vperm.xlu0 %352, %v183
        %v354 = vpop.permute.xlu0 %353
        %357 = vset.pattern.permute.xlu0 0
        %358 = vperm.xlu0 %357, %v184
        %v359 = vpop.permute.xlu0 %358
        %362 = vset.pattern.permute.xlu0 0
        %363 = vperm.xlu0 %362, %v185
        %v364 = vpop.permute.xlu0 %363
        %367 = vset.pattern.permute.xlu0 0
        %368 = vperm.xlu0 %367, %v186
        %v369 = vpop.permute.xlu0 %368
        %372 = vset.pattern.permute.xlu0 0
        %373 = vperm.xlu0 %372, %v187
        %v374 = vpop.permute.xlu0 %373
        %377 = vset.pattern.permute.xlu0 0
        %378 = vperm.xlu0 %377, %v188
        %v379 = vpop.permute.xlu0 %378
        %382 = vset.pattern.permute.xlu0 0
        %383 = vperm.xlu0 %382, %v189
        %v384 = vpop.permute.xlu0 %383
        %387 = vset.pattern.permute.xlu0 0
        %388 = vperm.xlu0 %387, %v190
        %v389 = vpop.permute.xlu0 %388
        %392 = vset.pattern.permute.xlu0 0
        %393 = vperm.xlu0 %392, %v191
        %v394 = vpop.permute.xlu0 %393
        %397 = vset.pattern.permute.xlu0 0
        %398 = vperm.xlu0 %397, %v192
        %v399 = vpop.permute.xlu0 %398
        %402 = vset.pattern.permute.xlu0 0
        %403 = vperm.xlu0 %402, %v193
        %v404 = vpop.permute.xlu0 %403
        %407 = vset.pattern.permute.xlu0 0
        %408 = vperm.xlu0 %407, %v194
        %v409 = vpop.permute.xlu0 %408
        %412 = vset.pattern.permute.xlu0 0
        %413 = vperm.xlu0 %412, %v195
        %v414 = vpop.permute.xlu0 %413
        %417 = vset.pattern.permute.xlu0 0
        %418 = vperm.xlu0 %417, %v196
        %v419 = vpop.permute.xlu0 %418
        %422 = vset.pattern.permute.xlu0 0
        %423 = vperm.xlu0 %422, %v197
        %v424 = vpop.permute.xlu0 %423
        %427 = vset.pattern.permute.xlu0 0
        %428 = vperm.xlu0 %427, %v198
        %v429 = vpop.permute.xlu0 %428
        %432 = vset.pattern.permute.xlu0 0
        %433 = vperm.xlu0 %432, %v199
        %v434 = vpop.permute.xlu0 %433
        %437 = vset.pattern.permute.xlu0 0
        %438 = vperm.xlu0 %437, %v200
        %v439 = vpop.permute.xlu0 %438
        %442 = vset.pattern.permute.xlu0 0
        %443 = vperm.xlu0 %442, %v201
        %v444 = vpop.permute.xlu0 %443
        %447 = vset.pattern.permute.xlu0 0
        %448 = vperm.xlu0 %447, %v202
        %v449 = vpop.permute.xlu0 %448
        %452 = vset.pattern.permute.xlu0 0
        %453 = vperm.xlu0 %452, %v203
        %v454 = vpop.permute.xlu0 %453
        %457 = vset.pattern.permute.xlu0 0
        %458 = vperm.xlu0 %457, %v204
        %v459 = vpop.permute.xlu0 %458
        %462 = vset.pattern.permute.xlu0 0
        %463 = vperm.xlu0 %462, %v205
        %v464 = vpop.permute.xlu0 %463
        %467 = vset.pattern.permute.xlu0 0
        %468 = vperm.xlu0 %467, %v206
        %v469 = vpop.permute.xlu0 %468
        %472 = vset.pattern.permute.xlu0 0
        %473 = vperm.xlu0 %472, %v207
        %v474 = vpop.permute.xlu0 %473
        %477 = vset.pattern.permute.xlu0 0
        %478 = vperm.xlu0 %477, %v208
        %v479 = vpop.permute.xlu0 %478
        %482 = vset.pattern.permute.xlu0 0
        %483 = vperm.xlu0 %482, %v209
        %v484 = vpop.permute.xlu0 %483
        %487 = vset.pattern.permute.xlu0 0
        %488 = vperm.xlu0 %487, %v210
        %v489 = vpop.permute.xlu0 %488
        %492 = vset.pattern.permute.xlu0 0
        %493 = vperm.xlu0 %492, %v211
        %v494 = vpop.permute.xlu0 %493
        %497 = vset.pattern.permute.xlu0 0
        %498 = vperm.xlu0 %497, %v212
        %v499 = vpop.permute.xlu0 %498
        %502 = vset.pattern.permute.xlu0 0
        %503 = vperm.xlu0 %502, %v213
        %v504 = vpop.permute.xlu0 %503
        %507 = vset.pattern.permute.xlu0 0
        %508 = vperm.xlu0 %507, %v214
        %v509 = vpop.permute.xlu0 %508
        %512 = vset.pattern.permute.xlu0 0
        %513 = vperm.xlu0 %512, %v215
        %v514 = vpop.permute.xlu0 %513
        %517 = vset.pattern.permute.xlu0 0
        %518 = vperm.xlu0 %517, %v216
        %v519 = vpop.permute.xlu0 %518
        %522 = vset.pattern.permute.xlu0 0
        %523 = vperm.xlu0 %522, %v217
        %v524 = vpop.permute.xlu0 %523
        %527 = vset.pattern.permute.xlu0 0
        %528 = vperm.xlu0 %527, %v218
        %v529 = vpop.permute.xlu0 %528
        %532 = vset.pattern.permute.xlu0 0
        %533 = vperm.xlu0 %532, %v219
        %v534 = vpop.permute.xlu0 %533
        %537 = vset.pattern.permute.xlu0 0
        %538 = vperm.xlu0 %537, %v220
        %v539 = vpop.permute.xlu0 %538
        %v542 = vlaneseq
        %v543 = vshrl.u32 %v542, 7
        %v544 = vsub.s32 0, %v543
        %v545 = vrot.slane %v145, %v544
        %v546 = vlaneseq
        %v547 = vshrl.u32 %v546, 7
        %v548 = vsub.s32 1, %v547
        %v549 = vrot.slane %v145, %v548
        %v552 = vsub.f32 %v224, %v545
        %v553 = vsub.f32 %v224, %v549
        %v554 = vsub.f32 %v229, %v545
        %v555 = vsub.f32 %v229, %v549
        %v556 = vsub.f32 %v234, %v545
        %v557 = vsub.f32 %v234, %v549
        %v558 = vsub.f32 %v239, %v545
        %v559 = vsub.f32 %v239, %v549
        %v560 = vsub.f32 %v244, %v545
        %v561 = vsub.f32 %v244, %v549
        %v562 = vsub.f32 %v249, %v545
        %v563 = vsub.f32 %v249, %v549
        %v564 = vsub.f32 %v254, %v545
        %v565 = vsub.f32 %v254, %v549
        %v566 = vsub.f32 %v259, %v545
        %v567 = vsub.f32 %v259, %v549
        %v568 = vsub.f32 %v264, %v545
        %v569 = vsub.f32 %v264, %v549
        %v570 = vsub.f32 %v269, %v545
        %v571 = vsub.f32 %v269, %v549
        %v572 = vsub.f32 %v274, %v545
        %v573 = vsub.f32 %v274, %v549
        %v574 = vsub.f32 %v279, %v545
        %v575 = vsub.f32 %v279, %v549
        %v576 = vsub.f32 %v284, %v545
        %v577 = vsub.f32 %v284, %v549
        %v578 = vsub.f32 %v289, %v545
        %v579 = vsub.f32 %v289, %v549
        %v580 = vsub.f32 %v294, %v545
        %v581 = vsub.f32 %v294, %v549
        %v582 = vsub.f32 %v299, %v545
        %v583 = vsub.f32 %v299, %v549
        %v584 = vsub.f32 %v304, %v545
        %v585 = vsub.f32 %v304, %v549
        %v586 = vsub.f32 %v309, %v545
        %v587 = vsub.f32 %v309, %v549
        %v588 = vsub.f32 %v314, %v545
        %v589 = vsub.f32 %v314, %v549
        %v590 = vsub.f32 %v319, %v545
        %v591 = vsub.f32 %v319, %v549
        %v592 = vsub.f32 %v324, %v545
        %v593 = vsub.f32 %v324, %v549
        %v594 = vsub.f32 %v329, %v545
        %v595 = vsub.f32 %v329, %v549
        %v596 = vsub.f32 %v334, %v545
        %v597 = vsub.f32 %v334, %v549
        %v598 = vsub.f32 %v339, %v545
        %v599 = vsub.f32 %v339, %v549
        %v600 = vsub.f32 %v344, %v545
        %v601 = vsub.f32 %v344, %v549
        %v602 = vsub.f32 %v349, %v545
        %v603 = vsub.f32 %v349, %v549
        %v604 = vsub.f32 %v354, %v545
        %v605 = vsub.f32 %v354, %v549
        %v606 = vsub.f32 %v359, %v545
        %v607 = vsub.f32 %v359, %v549
        %v608 = vsub.f32 %v364, %v545
        %v609 = vsub.f32 %v364, %v549
        %v610 = vsub.f32 %v369, %v545
        %v611 = vsub.f32 %v369, %v549
        %v612 = vsub.f32 %v374, %v545
        %v613 = vsub.f32 %v374, %v549
        %v614 = vsub.f32 %v379, %v545
        %v615 = vsub.f32 %v379, %v549
        %v616 = vsub.f32 %v384, %v545
        %v617 = vsub.f32 %v384, %v549
        %v618 = vsub.f32 %v389, %v545
        %v619 = vsub.f32 %v389, %v549
        %v620 = vsub.f32 %v394, %v545
        %v621 = vsub.f32 %v394, %v549
        %v622 = vsub.f32 %v399, %v545
        %v623 = vsub.f32 %v399, %v549
        %v624 = vsub.f32 %v404, %v545
        %v625 = vsub.f32 %v404, %v549
        %v626 = vsub.f32 %v409, %v545
        %v627 = vsub.f32 %v409, %v549
        %v628 = vsub.f32 %v414, %v545
        %v629 = vsub.f32 %v414, %v549
        %v630 = vsub.f32 %v419, %v545
        %v631 = vsub.f32 %v419, %v549
        %v632 = vsub.f32 %v424, %v545
        %v633 = vsub.f32 %v424, %v549
        %v634 = vsub.f32 %v429, %v545
        %v635 = vsub.f32 %v429, %v549
        %v636 = vsub.f32 %v434, %v545
        %v637 = vsub.f32 %v434, %v549
        %v638 = vsub.f32 %v439, %v545
        %v639 = vsub.f32 %v439, %v549
        %v640 = vsub.f32 %v444, %v545
        %v641 = vsub.f32 %v444, %v549
        %v642 = vsub.f32 %v449, %v545
        %v643 = vsub.f32 %v449, %v549
        %v644 = vsub.f32 %v454, %v545
        %v645 = vsub.f32 %v454, %v549
        %v646 = vsub.f32 %v459, %v545
        %v647 = vsub.f32 %v459, %v549
        %v648 = vsub.f32 %v464, %v545
        %v649 = vsub.f32 %v464, %v549
        %v650 = vsub.f32 %v469, %v545
        %v651 = vsub.f32 %v469, %v549
        %v652 = vsub.f32 %v474, %v545
        %v653 = vsub.f32 %v474, %v549
        %v654 = vsub.f32 %v479, %v545
        %v655 = vsub.f32 %v479, %v549
        %v656 = vsub.f32 %v484, %v545
        %v657 = vsub.f32 %v484, %v549
        %v658 = vsub.f32 %v489, %v545
        %v659 = vsub.f32 %v489, %v549
        %v660 = vsub.f32 %v494, %v545
        %v661 = vsub.f32 %v494, %v549
        %v662 = vsub.f32 %v499, %v545
        %v663 = vsub.f32 %v499, %v549
        %v664 = vsub.f32 %v504, %v545
        %v665 = vsub.f32 %v504, %v549
        %v666 = vsub.f32 %v509, %v545
        %v667 = vsub.f32 %v509, %v549
        %v668 = vsub.f32 %v514, %v545
        %v669 = vsub.f32 %v514, %v549
        %v670 = vsub.f32 %v519, %v545
        %v671 = vsub.f32 %v519, %v549
        %v672 = vsub.f32 %v524, %v545
        %v673 = vsub.f32 %v524, %v549
        %v674 = vsub.f32 %v529, %v545
        %v675 = vsub.f32 %v529, %v549
        %v676 = vsub.f32 %v534, %v545
        %v677 = vsub.f32 %v534, %v549
        %v678 = vsub.f32 %v539, %v545
        %v679 = vsub.f32 %v539, %v549
        %680 = vset.pattern.permute.xlu0 1
        %681 = vperm.xlu0 %680, %v157
        %v682 = vpop.permute.xlu0 %681
        %684 = vset.pattern.permute.xlu0 1
        %685 = vperm.xlu0 %684, %v158
        %v686 = vpop.permute.xlu0 %685
        %688 = vset.pattern.permute.xlu0 1
        %689 = vperm.xlu0 %688, %v159
        %v690 = vpop.permute.xlu0 %689
        %692 = vset.pattern.permute.xlu0 1
        %693 = vperm.xlu0 %692, %v160
        %v694 = vpop.permute.xlu0 %693
        %696 = vset.pattern.permute.xlu0 1
        %697 = vperm.xlu0 %696, %v161
        %v698 = vpop.permute.xlu0 %697
        %700 = vset.pattern.permute.xlu0 1
        %701 = vperm.xlu0 %700, %v162
        %v702 = vpop.permute.xlu0 %701
        %704 = vset.pattern.permute.xlu0 1
        %705 = vperm.xlu0 %704, %v163
        %v706 = vpop.permute.xlu0 %705
        %708 = vset.pattern.permute.xlu0 1
        %709 = vperm.xlu0 %708, %v164
        %v710 = vpop.permute.xlu0 %709
        %712 = vset.pattern.permute.xlu0 1
        %713 = vperm.xlu0 %712, %v165
        %v714 = vpop.permute.xlu0 %713
        %716 = vset.pattern.permute.xlu0 1
        %717 = vperm.xlu0 %716, %v166
        %v718 = vpop.permute.xlu0 %717
        %720 = vset.pattern.permute.xlu0 1
        %721 = vperm.xlu0 %720, %v167
        %v722 = vpop.permute.xlu0 %721
        %724 = vset.pattern.permute.xlu0 1
        %725 = vperm.xlu0 %724, %v168
        %v726 = vpop.permute.xlu0 %725
        %728 = vset.pattern.permute.xlu0 1
        %729 = vperm.xlu0 %728, %v169
        %v730 = vpop.permute.xlu0 %729
        %732 = vset.pattern.permute.xlu0 1
        %733 = vperm.xlu0 %732, %v170
        %v734 = vpop.permute.xlu0 %733
        %736 = vset.pattern.permute.xlu0 1
        %737 = vperm.xlu0 %736, %v171
        %v738 = vpop.permute.xlu0 %737
        %740 = vset.pattern.permute.xlu0 1
        %741 = vperm.xlu0 %740, %v172
        %v742 = vpop.permute.xlu0 %741
        %744 = vset.pattern.permute.xlu0 1
        %745 = vperm.xlu0 %744, %v173
        %v746 = vpop.permute.xlu0 %745
        %748 = vset.pattern.permute.xlu0 1
        %749 = vperm.xlu0 %748, %v174
        %v750 = vpop.permute.xlu0 %749
        %752 = vset.pattern.permute.xlu0 1
        %753 = vperm.xlu0 %752, %v175
        %v754 = vpop.permute.xlu0 %753
        %756 = vset.pattern.permute.xlu0 1
        %757 = vperm.xlu0 %756, %v176
        %v758 = vpop.permute.xlu0 %757
        %760 = vset.pattern.permute.xlu0 1
        %761 = vperm.xlu0 %760, %v177
        %v762 = vpop.permute.xlu0 %761
        %764 = vset.pattern.permute.xlu0 1
        %765 = vperm.xlu0 %764, %v178
        %v766 = vpop.permute.xlu0 %765
        %768 = vset.pattern.permute.xlu0 1
        %769 = vperm.xlu0 %768, %v179
        %v770 = vpop.permute.xlu0 %769
        %772 = vset.pattern.permute.xlu0 1
        %773 = vperm.xlu0 %772, %v180
        %v774 = vpop.permute.xlu0 %773
        %776 = vset.pattern.permute.xlu0 1
        %777 = vperm.xlu0 %776, %v181
        %v778 = vpop.permute.xlu0 %777
        %780 = vset.pattern.permute.xlu0 1
        %781 = vperm.xlu0 %780, %v182
        %v782 = vpop.permute.xlu0 %781
        %784 = vset.pattern.permute.xlu0 1
        %785 = vperm.xlu0 %784, %v183
        %v786 = vpop.permute.xlu0 %785
        %788 = vset.pattern.permute.xlu0 1
        %789 = vperm.xlu0 %788, %v184
        %v790 = vpop.permute.xlu0 %789
        %792 = vset.pattern.permute.xlu0 1
        %793 = vperm.xlu0 %792, %v185
        %v794 = vpop.permute.xlu0 %793
        %796 = vset.pattern.permute.xlu0 1
        %797 = vperm.xlu0 %796, %v186
        %v798 = vpop.permute.xlu0 %797
        %800 = vset.pattern.permute.xlu0 1
        %801 = vperm.xlu0 %800, %v187
        %v802 = vpop.permute.xlu0 %801
        %804 = vset.pattern.permute.xlu0 1
        %805 = vperm.xlu0 %804, %v188
        %v806 = vpop.permute.xlu0 %805
        %808 = vset.pattern.permute.xlu0 1
        %809 = vperm.xlu0 %808, %v189
        %v810 = vpop.permute.xlu0 %809
        %812 = vset.pattern.permute.xlu0 1
        %813 = vperm.xlu0 %812, %v190
        %v814 = vpop.permute.xlu0 %813
        %816 = vset.pattern.permute.xlu0 1
        %817 = vperm.xlu0 %816, %v191
        %v818 = vpop.permute.xlu0 %817
        %820 = vset.pattern.permute.xlu0 1
        %821 = vperm.xlu0 %820, %v192
        %v822 = vpop.permute.xlu0 %821
        %824 = vset.pattern.permute.xlu0 1
        %825 = vperm.xlu0 %824, %v193
        %v826 = vpop.permute.xlu0 %825
        %828 = vset.pattern.permute.xlu0 1
        %829 = vperm.xlu0 %828, %v194
        %v830 = vpop.permute.xlu0 %829
        %832 = vset.pattern.permute.xlu0 1
        %833 = vperm.xlu0 %832, %v195
        %v834 = vpop.permute.xlu0 %833
        %836 = vset.pattern.permute.xlu0 1
        %837 = vperm.xlu0 %836, %v196
        %v838 = vpop.permute.xlu0 %837
        %840 = vset.pattern.permute.xlu0 1
        %841 = vperm.xlu0 %840, %v197
        %v842 = vpop.permute.xlu0 %841
        %844 = vset.pattern.permute.xlu0 1
        %845 = vperm.xlu0 %844, %v198
        %v846 = vpop.permute.xlu0 %845
        %848 = vset.pattern.permute.xlu0 1
        %849 = vperm.xlu0 %848, %v199
        %v850 = vpop.permute.xlu0 %849
        %852 = vset.pattern.permute.xlu0 1
        %853 = vperm.xlu0 %852, %v200
        %v854 = vpop.permute.xlu0 %853
        %856 = vset.pattern.permute.xlu0 1
        %857 = vperm.xlu0 %856, %v201
        %v858 = vpop.permute.xlu0 %857
        %860 = vset.pattern.permute.xlu0 1
        %861 = vperm.xlu0 %860, %v202
        %v862 = vpop.permute.xlu0 %861
        %864 = vset.pattern.permute.xlu0 1
        %865 = vperm.xlu0 %864, %v203
        %v866 = vpop.permute.xlu0 %865
        %868 = vset.pattern.permute.xlu0 1
        %869 = vperm.xlu0 %868, %v204
        %v870 = vpop.permute.xlu0 %869
        %872 = vset.pattern.permute.xlu0 1
        %873 = vperm.xlu0 %872, %v205
        %v874 = vpop.permute.xlu0 %873
        %876 = vset.pattern.permute.xlu0 1
        %877 = vperm.xlu0 %876, %v206
        %v878 = vpop.permute.xlu0 %877
        %880 = vset.pattern.permute.xlu0 1
        %881 = vperm.xlu0 %880, %v207
        %v882 = vpop.permute.xlu0 %881
        %884 = vset.pattern.permute.xlu0 1
        %885 = vperm.xlu0 %884, %v208
        %v886 = vpop.permute.xlu0 %885
        %888 = vset.pattern.permute.xlu0 1
        %889 = vperm.xlu0 %888, %v209
        %v890 = vpop.permute.xlu0 %889
        %892 = vset.pattern.permute.xlu0 1
        %893 = vperm.xlu0 %892, %v210
        %v894 = vpop.permute.xlu0 %893
        %896 = vset.pattern.permute.xlu0 1
        %897 = vperm.xlu0 %896, %v211
        %v898 = vpop.permute.xlu0 %897
        %900 = vset.pattern.permute.xlu0 1
        %901 = vperm.xlu0 %900, %v212
        %v902 = vpop.permute.xlu0 %901
        %904 = vset.pattern.permute.xlu0 1
        %905 = vperm.xlu0 %904, %v213
        %v906 = vpop.permute.xlu0 %905
        %908 = vset.pattern.permute.xlu0 1
        %909 = vperm.xlu0 %908, %v214
        %v910 = vpop.permute.xlu0 %909
        %912 = vset.pattern.permute.xlu0 1
        %913 = vperm.xlu0 %912, %v215
        %v914 = vpop.permute.xlu0 %913
        %916 = vset.pattern.permute.xlu0 1
        %917 = vperm.xlu0 %916, %v216
        %v918 = vpop.permute.xlu0 %917
        %920 = vset.pattern.permute.xlu0 1
        %921 = vperm.xlu0 %920, %v217
        %v922 = vpop.permute.xlu0 %921
        %924 = vset.pattern.permute.xlu0 1
        %925 = vperm.xlu0 %924, %v218
        %v926 = vpop.permute.xlu0 %925
        %928 = vset.pattern.permute.xlu0 1
        %929 = vperm.xlu0 %928, %v219
        %v930 = vpop.permute.xlu0 %929
        %932 = vset.pattern.permute.xlu0 1
        %933 = vperm.xlu0 %932, %v220
        %v934 = vpop.permute.xlu0 %933
        %v937 = vlaneseq
        %v938 = vshrl.u32 %v937, 7
        %v939 = vsub.s32 0, %v938
        %v940 = vrot.slane %v147, %v939
        %v941 = vlaneseq
        %v942 = vshrl.u32 %v941, 7
        %v943 = vsub.s32 1, %v942
        %v944 = vrot.slane %v147, %v943
        %v947 = vsub.f32 %v682, %v940
        %v948 = vsub.f32 %v682, %v944
        %v949 = vsub.f32 %v686, %v940
        %v950 = vsub.f32 %v686, %v944
        %v951 = vsub.f32 %v690, %v940
        %v952 = vsub.f32 %v690, %v944
        %v953 = vsub.f32 %v694, %v940
        %v954 = vsub.f32 %v694, %v944
        %v955 = vsub.f32 %v698, %v940
        %v956 = vsub.f32 %v698, %v944
        %v957 = vsub.f32 %v702, %v940
        %v958 = vsub.f32 %v702, %v944
        %v959 = vsub.f32 %v706, %v940
        %v960 = vsub.f32 %v706, %v944
        %v961 = vsub.f32 %v710, %v940
        %v962 = vsub.f32 %v710, %v944
        %v963 = vsub.f32 %v714, %v940
        %v964 = vsub.f32 %v714, %v944
        %v965 = vsub.f32 %v718, %v940
        %v966 = vsub.f32 %v718, %v944
        %v967 = vsub.f32 %v722, %v940
        %v968 = vsub.f32 %v722, %v944
        %v969 = vsub.f32 %v726, %v940
        %v970 = vsub.f32 %v726, %v944
        %v971 = vsub.f32 %v730, %v940
        %v972 = vsub.f32 %v730, %v944
        %v973 = vsub.f32 %v734, %v940
        %v974 = vsub.f32 %v734, %v944
        %v975 = vsub.f32 %v738, %v940
        %v976 = vsub.f32 %v738, %v944
        %v977 = vsub.f32 %v742, %v940
        %v978 = vsub.f32 %v742, %v944
        %v979 = vsub.f32 %v746, %v940
        %v980 = vsub.f32 %v746, %v944
        %v981 = vsub.f32 %v750, %v940
        %v982 = vsub.f32 %v750, %v944
        %v983 = vsub.f32 %v754, %v940
        %v984 = vsub.f32 %v754, %v944
        %v985 = vsub.f32 %v758, %v940
        %v986 = vsub.f32 %v758, %v944
        %v987 = vsub.f32 %v762, %v940
        %v988 = vsub.f32 %v762, %v944
        %v989 = vsub.f32 %v766, %v940
        %v990 = vsub.f32 %v766, %v944
        %v991 = vsub.f32 %v770, %v940
        %v992 = vsub.f32 %v770, %v944
        %v993 = vsub.f32 %v774, %v940
        %v994 = vsub.f32 %v774, %v944
        %v995 = vsub.f32 %v778, %v940
        %v996 = vsub.f32 %v778, %v944
        %v997 = vsub.f32 %v782, %v940
        %v998 = vsub.f32 %v782, %v944
        %v999 = vsub.f32 %v786, %v940
        %v1000 = vsub.f32 %v786, %v944
        %v1001 = vsub.f32 %v790, %v940
        %v1002 = vsub.f32 %v790, %v944
        %v1003 = vsub.f32 %v794, %v940
        %v1004 = vsub.f32 %v794, %v944
        %v1005 = vsub.f32 %v798, %v940
        %v1006 = vsub.f32 %v798, %v944
        %v1007 = vsub.f32 %v802, %v940
        %v1008 = vsub.f32 %v802, %v944
        %v1009 = vsub.f32 %v806, %v940
        %v1010 = vsub.f32 %v806, %v944
        %v1011 = vsub.f32 %v810, %v940
        %v1012 = vsub.f32 %v810, %v944
        %v1013 = vsub.f32 %v814, %v940
        %v1014 = vsub.f32 %v814, %v944
        %v1015 = vsub.f32 %v818, %v940
        %v1016 = vsub.f32 %v818, %v944
        %v1017 = vsub.f32 %v822, %v940
        %v1018 = vsub.f32 %v822, %v944
        %v1019 = vsub.f32 %v826, %v940
        %v1020 = vsub.f32 %v826, %v944
        %v1021 = vsub.f32 %v830, %v940
        %v1022 = vsub.f32 %v830, %v944
        %v1023 = vsub.f32 %v834, %v940
        %v1024 = vsub.f32 %v834, %v944
        %v1025 = vsub.f32 %v838, %v940
        %v1026 = vsub.f32 %v838, %v944
        %v1027 = vsub.f32 %v842, %v940
        %v1028 = vsub.f32 %v842, %v944
        %v1029 = vsub.f32 %v846, %v940
        %v1030 = vsub.f32 %v846, %v944
        %v1031 = vsub.f32 %v850, %v940
        %v1032 = vsub.f32 %v850, %v944
        %v1033 = vsub.f32 %v854, %v940
        %v1034 = vsub.f32 %v854, %v944
        %v1035 = vsub.f32 %v858, %v940
        %v1036 = vsub.f32 %v858, %v944
        %v1037 = vsub.f32 %v862, %v940
        %v1038 = vsub.f32 %v862, %v944
        %v1039 = vsub.f32 %v866, %v940
        %v1040 = vsub.f32 %v866, %v944
        %v1041 = vsub.f32 %v870, %v940
        %v1042 = vsub.f32 %v870, %v944
        %v1043 = vsub.f32 %v874, %v940
        %v1044 = vsub.f32 %v874, %v944
        %v1045 = vsub.f32 %v878, %v940
        %v1046 = vsub.f32 %v878, %v944
        %v1047 = vsub.f32 %v882, %v940
        %v1048 = vsub.f32 %v882, %v944
        %v1049 = vsub.f32 %v886, %v940
        %v1050 = vsub.f32 %v886, %v944
        %v1051 = vsub.f32 %v890, %v940
        %v1052 = vsub.f32 %v890, %v944
        %v1053 = vsub.f32 %v894, %v940
        %v1054 = vsub.f32 %v894, %v944
        %v1055 = vsub.f32 %v898, %v940
        %v1056 = vsub.f32 %v898, %v944
        %v1057 = vsub.f32 %v902, %v940
        %v1058 = vsub.f32 %v902, %v944
        %v1059 = vsub.f32 %v906, %v940
        %v1060 = vsub.f32 %v906, %v944
        %v1061 = vsub.f32 %v910, %v940
        %v1062 = vsub.f32 %v910, %v944
        %v1063 = vsub.f32 %v914, %v940
        %v1064 = vsub.f32 %v914, %v944
        %v1065 = vsub.f32 %v918, %v940
        %v1066 = vsub.f32 %v918, %v944
        %v1067 = vsub.f32 %v922, %v940
        %v1068 = vsub.f32 %v922, %v944
        %v1069 = vsub.f32 %v926, %v940
        %v1070 = vsub.f32 %v926, %v944
        %v1071 = vsub.f32 %v930, %v940
        %v1072 = vsub.f32 %v930, %v944
        %v1073 = vsub.f32 %v934, %v940
        %v1074 = vsub.f32 %v934, %v944
        %1075 = vset.pattern.permute.xlu0 2
        %1076 = vperm.xlu0 %1075, %v157
        %v1077 = vpop.permute.xlu0 %1076
        %1079 = vset.pattern.permute.xlu0 2
        %1080 = vperm.xlu0 %1079, %v158
        %v1081 = vpop.permute.xlu0 %1080
        %1083 = vset.pattern.permute.xlu0 2
        %1084 = vperm.xlu0 %1083, %v159
        %v1085 = vpop.permute.xlu0 %1084
        %1087 = vset.pattern.permute.xlu0 2
        %1088 = vperm.xlu0 %1087, %v160
        %v1089 = vpop.permute.xlu0 %1088
        %1091 = vset.pattern.permute.xlu0 2
        %1092 = vperm.xlu0 %1091, %v161
        %v1093 = vpop.permute.xlu0 %1092
        %1095 = vset.pattern.permute.xlu0 2
        %1096 = vperm.xlu0 %1095, %v162
        %v1097 = vpop.permute.xlu0 %1096
        %1099 = vset.pattern.permute.xlu0 2
        %1100 = vperm.xlu0 %1099, %v163
        %v1101 = vpop.permute.xlu0 %1100
        %1103 = vset.pattern.permute.xlu0 2
        %1104 = vperm.xlu0 %1103, %v164
        %v1105 = vpop.permute.xlu0 %1104
        %1107 = vset.pattern.permute.xlu0 2
        %1108 = vperm.xlu0 %1107, %v165
        %v1109 = vpop.permute.xlu0 %1108
        %1111 = vset.pattern.permute.xlu0 2
        %1112 = vperm.xlu0 %1111, %v166
        %v1113 = vpop.permute.xlu0 %1112
        %1115 = vset.pattern.permute.xlu0 2
        %1116 = vperm.xlu0 %1115, %v167
        %v1117 = vpop.permute.xlu0 %1116
        %1119 = vset.pattern.permute.xlu0 2
        %1120 = vperm.xlu0 %1119, %v168
        %v1121 = vpop.permute.xlu0 %1120
        %1123 = vset.pattern.permute.xlu0 2
        %1124 = vperm.xlu0 %1123, %v169
        %v1125 = vpop.permute.xlu0 %1124
        %1127 = vset.pattern.permute.xlu0 2
        %1128 = vperm.xlu0 %1127, %v170
        %v1129 = vpop.permute.xlu0 %1128
        %1131 = vset.pattern.permute.xlu0 2
        %1132 = vperm.xlu0 %1131, %v171
        %v1133 = vpop.permute.xlu0 %1132
        %1135 = vset.pattern.permute.xlu0 2
        %1136 = vperm.xlu0 %1135, %v172
        %v1137 = vpop.permute.xlu0 %1136
        %1139 = vset.pattern.permute.xlu0 2
        %1140 = vperm.xlu0 %1139, %v173
        %v1141 = vpop.permute.xlu0 %1140
        %1143 = vset.pattern.permute.xlu0 2
        %1144 = vperm.xlu0 %1143, %v174
        %v1145 = vpop.permute.xlu0 %1144
        %1147 = vset.pattern.permute.xlu0 2
        %1148 = vperm.xlu0 %1147, %v175
        %v1149 = vpop.permute.xlu0 %1148
        %1151 = vset.pattern.permute.xlu0 2
        %1152 = vperm.xlu0 %1151, %v176
        %v1153 = vpop.permute.xlu0 %1152
        %1155 = vset.pattern.permute.xlu0 2
        %1156 = vperm.xlu0 %1155, %v177
        %v1157 = vpop.permute.xlu0 %1156
        %1159 = vset.pattern.permute.xlu0 2
        %1160 = vperm.xlu0 %1159, %v178
        %v1161 = vpop.permute.xlu0 %1160
        %1163 = vset.pattern.permute.xlu0 2
        %1164 = vperm.xlu0 %1163, %v179
        %v1165 = vpop.permute.xlu0 %1164
        %1167 = vset.pattern.permute.xlu0 2
        %1168 = vperm.xlu0 %1167, %v180
        %v1169 = vpop.permute.xlu0 %1168
        %1171 = vset.pattern.permute.xlu0 2
        %1172 = vperm.xlu0 %1171, %v181
        %v1173 = vpop.permute.xlu0 %1172
        %1175 = vset.pattern.permute.xlu0 2
        %1176 = vperm.xlu0 %1175, %v182
        %v1177 = vpop.permute.xlu0 %1176
        %1179 = vset.pattern.permute.xlu0 2
        %1180 = vperm.xlu0 %1179, %v183
        %v1181 = vpop.permute.xlu0 %1180
        %1183 = vset.pattern.permute.xlu0 2
        %1184 = vperm.xlu0 %1183, %v184
        %v1185 = vpop.permute.xlu0 %1184
        %1187 = vset.pattern.permute.xlu0 2
        %1188 = vperm.xlu0 %1187, %v185
        %v1189 = vpop.permute.xlu0 %1188
        %1191 = vset.pattern.permute.xlu0 2
        %1192 = vperm.xlu0 %1191, %v186
        %v1193 = vpop.permute.xlu0 %1192
        %1195 = vset.pattern.permute.xlu0 2
        %1196 = vperm.xlu0 %1195, %v187
        %v1197 = vpop.permute.xlu0 %1196
        %1199 = vset.pattern.permute.xlu0 2
        %1200 = vperm.xlu0 %1199, %v188
        %v1201 = vpop.permute.xlu0 %1200
        %1203 = vset.pattern.permute.xlu0 2
        %1204 = vperm.xlu0 %1203, %v189
        %v1205 = vpop.permute.xlu0 %1204
        %1207 = vset.pattern.permute.xlu0 2
        %1208 = vperm.xlu0 %1207, %v190
        %v1209 = vpop.permute.xlu0 %1208
        %1211 = vset.pattern.permute.xlu0 2
        %1212 = vperm.xlu0 %1211, %v191
        %v1213 = vpop.permute.xlu0 %1212
        %1215 = vset.pattern.permute.xlu0 2
        %1216 = vperm.xlu0 %1215, %v192
        %v1217 = vpop.permute.xlu0 %1216
        %1219 = vset.pattern.permute.xlu0 2
        %1220 = vperm.xlu0 %1219, %v193
        %v1221 = vpop.permute.xlu0 %1220
        %1223 = vset.pattern.permute.xlu0 2
        %1224 = vperm.xlu0 %1223, %v194
        %v1225 = vpop.permute.xlu0 %1224
        %1227 = vset.pattern.permute.xlu0 2
        %1228 = vperm.xlu0 %1227, %v195
        %v1229 = vpop.permute.xlu0 %1228
        %1231 = vset.pattern.permute.xlu0 2
        %1232 = vperm.xlu0 %1231, %v196
        %v1233 = vpop.permute.xlu0 %1232
        %1235 = vset.pattern.permute.xlu0 2
        %1236 = vperm.xlu0 %1235, %v197
        %v1237 = vpop.permute.xlu0 %1236
        %1239 = vset.pattern.permute.xlu0 2
        %1240 = vperm.xlu0 %1239, %v198
        %v1241 = vpop.permute.xlu0 %1240
        %1243 = vset.pattern.permute.xlu0 2
        %1244 = vperm.xlu0 %1243, %v199
        %v1245 = vpop.permute.xlu0 %1244
        %1247 = vset.pattern.permute.xlu0 2
        %1248 = vperm.xlu0 %1247, %v200
        %v1249 = vpop.permute.xlu0 %1248
        %1251 = vset.pattern.permute.xlu0 2
        %1252 = vperm.xlu0 %1251, %v201
        %v1253 = vpop.permute.xlu0 %1252
        %1255 = vset.pattern.permute.xlu0 2
        %1256 = vperm.xlu0 %1255, %v202
        %v1257 = vpop.permute.xlu0 %1256
        %1259 = vset.pattern.permute.xlu0 2
        %1260 = vperm.xlu0 %1259, %v203
        %v1261 = vpop.permute.xlu0 %1260
        %1263 = vset.pattern.permute.xlu0 2
        %1264 = vperm.xlu0 %1263, %v204
        %v1265 = vpop.permute.xlu0 %1264
        %1267 = vset.pattern.permute.xlu0 2
        %1268 = vperm.xlu0 %1267, %v205
        %v1269 = vpop.permute.xlu0 %1268
        %1271 = vset.pattern.permute.xlu0 2
        %1272 = vperm.xlu0 %1271, %v206
        %v1273 = vpop.permute.xlu0 %1272
        %1275 = vset.pattern.permute.xlu0 2
        %1276 = vperm.xlu0 %1275, %v207
        %v1277 = vpop.permute.xlu0 %1276
        %1279 = vset.pattern.permute.xlu0 2
        %1280 = vperm.xlu0 %1279, %v208
        %v1281 = vpop.permute.xlu0 %1280
        %1283 = vset.pattern.permute.xlu0 2
        %1284 = vperm.xlu0 %1283, %v209
        %v1285 = vpop.permute.xlu0 %1284
        %1287 = vset.pattern.permute.xlu0 2
        %1288 = vperm.xlu0 %1287, %v210
        %v1289 = vpop.permute.xlu0 %1288
        %1291 = vset.pattern.permute.xlu0 2
        %1292 = vperm.xlu0 %1291, %v211
        %v1293 = vpop.permute.xlu0 %1292
        %1295 = vset.pattern.permute.xlu0 2
        %1296 = vperm.xlu0 %1295, %v212
        %v1297 = vpop.permute.xlu0 %1296
        %1299 = vset.pattern.permute.xlu0 2
        %1300 = vperm.xlu0 %1299, %v213
        %v1301 = vpop.permute.xlu0 %1300
        %1303 = vset.pattern.permute.xlu0 2
        %1304 = vperm.xlu0 %1303, %v214
        %v1305 = vpop.permute.xlu0 %1304
        %1307 = vset.pattern.permute.xlu0 2
        %1308 = vperm.xlu0 %1307, %v215
        %v1309 = vpop.permute.xlu0 %1308
        %1311 = vset.pattern.permute.xlu0 2
        %1312 = vperm.xlu0 %1311, %v216
        %v1313 = vpop.permute.xlu0 %1312
        %1315 = vset.pattern.permute.xlu0 2
        %1316 = vperm.xlu0 %1315, %v217
        %v1317 = vpop.permute.xlu0 %1316
        %1319 = vset.pattern.permute.xlu0 2
        %1320 = vperm.xlu0 %1319, %v218
        %v1321 = vpop.permute.xlu0 %1320
        %1323 = vset.pattern.permute.xlu0 2
        %1324 = vperm.xlu0 %1323, %v219
        %v1325 = vpop.permute.xlu0 %1324
        %1327 = vset.pattern.permute.xlu0 2
        %1328 = vperm.xlu0 %1327, %v220
        %v1329 = vpop.permute.xlu0 %1328
        %v1332 = vlaneseq
        %v1333 = vshrl.u32 %v1332, 7
        %v1334 = vsub.s32 0, %v1333
        %v1335 = vrot.slane %v149, %v1334
        %v1336 = vlaneseq
        %v1337 = vshrl.u32 %v1336, 7
        %v1338 = vsub.s32 1, %v1337
        %v1339 = vrot.slane %v149, %v1338
        %v1342 = vsub.f32 %v1077, %v1335
        %v1343 = vsub.f32 %v1077, %v1339
        %v1344 = vsub.f32 %v1081, %v1335
        %v1345 = vsub.f32 %v1081, %v1339
        %v1346 = vsub.f32 %v1085, %v1335
        %v1347 = vsub.f32 %v1085, %v1339
        %v1348 = vsub.f32 %v1089, %v1335
        %v1349 = vsub.f32 %v1089, %v1339
        %v1350 = vsub.f32 %v1093, %v1335
        %v1351 = vsub.f32 %v1093, %v1339
        %v1352 = vsub.f32 %v1097, %v1335
        %v1353 = vsub.f32 %v1097, %v1339
        %v1354 = vsub.f32 %v1101, %v1335
        %v1355 = vsub.f32 %v1101, %v1339
        %v1356 = vsub.f32 %v1105, %v1335
        %v1357 = vsub.f32 %v1105, %v1339
        %v1358 = vsub.f32 %v1109, %v1335
        %v1359 = vsub.f32 %v1109, %v1339
        %v1360 = vsub.f32 %v1113, %v1335
        %v1361 = vsub.f32 %v1113, %v1339
        %v1362 = vsub.f32 %v1117, %v1335
        %v1363 = vsub.f32 %v1117, %v1339
        %v1364 = vsub.f32 %v1121, %v1335
        %v1365 = vsub.f32 %v1121, %v1339
        %v1366 = vsub.f32 %v1125, %v1335
        %v1367 = vsub.f32 %v1125, %v1339
        %v1368 = vsub.f32 %v1129, %v1335
        %v1369 = vsub.f32 %v1129, %v1339
        %v1370 = vsub.f32 %v1133, %v1335
        %v1371 = vsub.f32 %v1133, %v1339
        %v1372 = vsub.f32 %v1137, %v1335
        %v1373 = vsub.f32 %v1137, %v1339
        %v1374 = vsub.f32 %v1141, %v1335
        %v1375 = vsub.f32 %v1141, %v1339
        %v1376 = vsub.f32 %v1145, %v1335
        %v1377 = vsub.f32 %v1145, %v1339
        %v1378 = vsub.f32 %v1149, %v1335
        %v1379 = vsub.f32 %v1149, %v1339
        %v1380 = vsub.f32 %v1153, %v1335
        %v1381 = vsub.f32 %v1153, %v1339
        %v1382 = vsub.f32 %v1157, %v1335
        %v1383 = vsub.f32 %v1157, %v1339
        %v1384 = vsub.f32 %v1161, %v1335
        %v1385 = vsub.f32 %v1161, %v1339
        %v1386 = vsub.f32 %v1165, %v1335
        %v1387 = vsub.f32 %v1165, %v1339
        %v1388 = vsub.f32 %v1169, %v1335
        %v1389 = vsub.f32 %v1169, %v1339
        %v1390 = vsub.f32 %v1173, %v1335
        %v1391 = vsub.f32 %v1173, %v1339
        %v1392 = vsub.f32 %v1177, %v1335
        %v1393 = vsub.f32 %v1177, %v1339
        %v1394 = vsub.f32 %v1181, %v1335
        %v1395 = vsub.f32 %v1181, %v1339
        %v1396 = vsub.f32 %v1185, %v1335
        %v1397 = vsub.f32 %v1185, %v1339
        %v1398 = vsub.f32 %v1189, %v1335
        %v1399 = vsub.f32 %v1189, %v1339
        %v1400 = vsub.f32 %v1193, %v1335
        %v1401 = vsub.f32 %v1193, %v1339
        %v1402 = vsub.f32 %v1197, %v1335
        %v1403 = vsub.f32 %v1197, %v1339
        %v1404 = vsub.f32 %v1201, %v1335
        %v1405 = vsub.f32 %v1201, %v1339
        %v1406 = vsub.f32 %v1205, %v1335
        %v1407 = vsub.f32 %v1205, %v1339
        %v1408 = vsub.f32 %v1209, %v1335
        %v1409 = vsub.f32 %v1209, %v1339
        %v1410 = vsub.f32 %v1213, %v1335
        %v1411 = vsub.f32 %v1213, %v1339
        %v1412 = vsub.f32 %v1217, %v1335
        %v1413 = vsub.f32 %v1217, %v1339
        %v1414 = vsub.f32 %v1221, %v1335
        %v1415 = vsub.f32 %v1221, %v1339
        %v1416 = vsub.f32 %v1225, %v1335
        %v1417 = vsub.f32 %v1225, %v1339
        %v1418 = vsub.f32 %v1229, %v1335
        %v1419 = vsub.f32 %v1229, %v1339
        %v1420 = vsub.f32 %v1233, %v1335
        %v1421 = vsub.f32 %v1233, %v1339
        %v1422 = vsub.f32 %v1237, %v1335
        %v1423 = vsub.f32 %v1237, %v1339
        %v1424 = vsub.f32 %v1241, %v1335
        %v1425 = vsub.f32 %v1241, %v1339
        %v1426 = vsub.f32 %v1245, %v1335
        %v1427 = vsub.f32 %v1245, %v1339
        %v1428 = vsub.f32 %v1249, %v1335
        %v1429 = vsub.f32 %v1249, %v1339
        %v1430 = vsub.f32 %v1253, %v1335
        %v1431 = vsub.f32 %v1253, %v1339
        %v1432 = vsub.f32 %v1257, %v1335
        %v1433 = vsub.f32 %v1257, %v1339
        %v1434 = vsub.f32 %v1261, %v1335
        %v1435 = vsub.f32 %v1261, %v1339
        %v1436 = vsub.f32 %v1265, %v1335
        %v1437 = vsub.f32 %v1265, %v1339
        %v1438 = vsub.f32 %v1269, %v1335
        %v1439 = vsub.f32 %v1269, %v1339
        %v1440 = vsub.f32 %v1273, %v1335
        %v1441 = vsub.f32 %v1273, %v1339
        %v1442 = vsub.f32 %v1277, %v1335
        %v1443 = vsub.f32 %v1277, %v1339
        %v1444 = vsub.f32 %v1281, %v1335
        %v1445 = vsub.f32 %v1281, %v1339
        %v1446 = vsub.f32 %v1285, %v1335
        %v1447 = vsub.f32 %v1285, %v1339
        %v1448 = vsub.f32 %v1289, %v1335
        %v1449 = vsub.f32 %v1289, %v1339
        %v1450 = vsub.f32 %v1293, %v1335
        %v1451 = vsub.f32 %v1293, %v1339
        %v1452 = vsub.f32 %v1297, %v1335
        %v1453 = vsub.f32 %v1297, %v1339
        %v1454 = vsub.f32 %v1301, %v1335
        %v1455 = vsub.f32 %v1301, %v1339
        %v1456 = vsub.f32 %v1305, %v1335
        %v1457 = vsub.f32 %v1305, %v1339
        %v1458 = vsub.f32 %v1309, %v1335
        %v1459 = vsub.f32 %v1309, %v1339
        %v1460 = vsub.f32 %v1313, %v1335
        %v1461 = vsub.f32 %v1313, %v1339
        %v1462 = vsub.f32 %v1317, %v1335
        %v1463 = vsub.f32 %v1317, %v1339
        %v1464 = vsub.f32 %v1321, %v1335
        %v1465 = vsub.f32 %v1321, %v1339
        %v1466 = vsub.f32 %v1325, %v1335
        %v1467 = vsub.f32 %v1325, %v1339
        %v1468 = vsub.f32 %v1329, %v1335
        %v1469 = vsub.f32 %v1329, %v1339
        %v1470 = vmul.f32 %v552, %v552
        %v1471 = vmul.f32 %v553, %v553
        %v1472 = vmul.f32 %v554, %v554
        %v1473 = vmul.f32 %v555, %v555
        %v1474 = vmul.f32 %v556, %v556
        %v1475 = vmul.f32 %v557, %v557
        %v1476 = vmul.f32 %v558, %v558
        %v1477 = vmul.f32 %v559, %v559
        %v1478 = vmul.f32 %v560, %v560
        %v1479 = vmul.f32 %v561, %v561
        %v1480 = vmul.f32 %v562, %v562
        %v1481 = vmul.f32 %v563, %v563
        %v1482 = vmul.f32 %v564, %v564
        %v1483 = vmul.f32 %v565, %v565
        %v1484 = vmul.f32 %v566, %v566
        %v1485 = vmul.f32 %v567, %v567
        %v1486 = vmul.f32 %v568, %v568
        %v1487 = vmul.f32 %v569, %v569
        %v1488 = vmul.f32 %v570, %v570
        %v1489 = vmul.f32 %v571, %v571
        %v1490 = vmul.f32 %v572, %v572
        %v1491 = vmul.f32 %v573, %v573
        %v1492 = vmul.f32 %v574, %v574
        %v1493 = vmul.f32 %v575, %v575
        %v1494 = vmul.f32 %v576, %v576
        %v1495 = vmul.f32 %v577, %v577
        %v1496 = vmul.f32 %v578, %v578
        %v1497 = vmul.f32 %v579, %v579
        %v1498 = vmul.f32 %v580, %v580
        %v1499 = vmul.f32 %v581, %v581
        %v1500 = vmul.f32 %v582, %v582
        %v1501 = vmul.f32 %v583, %v583
        %v1502 = vmul.f32 %v584, %v584
        %v1503 = vmul.f32 %v585, %v585
        %v1504 = vmul.f32 %v586, %v586
        %v1505 = vmul.f32 %v587, %v587
        %v1506 = vmul.f32 %v588, %v588
        %v1507 = vmul.f32 %v589, %v589
        %v1508 = vmul.f32 %v590, %v590
        %v1509 = vmul.f32 %v591, %v591
        %v1510 = vmul.f32 %v592, %v592
        %v1511 = vmul.f32 %v593, %v593
        %v1512 = vmul.f32 %v594, %v594
        %v1513 = vmul.f32 %v595, %v595
        %v1514 = vmul.f32 %v596, %v596
        %v1515 = vmul.f32 %v597, %v597
        %v1516 = vmul.f32 %v598, %v598
        %v1517 = vmul.f32 %v599, %v599
        %v1518 = vmul.f32 %v600, %v600
        %v1519 = vmul.f32 %v601, %v601
        %v1520 = vmul.f32 %v602, %v602
        %v1521 = vmul.f32 %v603, %v603
        %v1522 = vmul.f32 %v604, %v604
        %v1523 = vmul.f32 %v605, %v605
        %v1524 = vmul.f32 %v606, %v606
        %v1525 = vmul.f32 %v607, %v607
        %v1526 = vmul.f32 %v608, %v608
        %v1527 = vmul.f32 %v609, %v609
        %v1528 = vmul.f32 %v610, %v610
        %v1529 = vmul.f32 %v611, %v611
        %v1530 = vmul.f32 %v612, %v612
        %v1531 = vmul.f32 %v613, %v613
        %v1532 = vmul.f32 %v614, %v614
        %v1533 = vmul.f32 %v615, %v615
        %v1534 = vmul.f32 %v616, %v616
        %v1535 = vmul.f32 %v617, %v617
        %v1536 = vmul.f32 %v618, %v618
        %v1537 = vmul.f32 %v619, %v619
        %v1538 = vmul.f32 %v620, %v620
        %v1539 = vmul.f32 %v621, %v621
        %v1540 = vmul.f32 %v622, %v622
        %v1541 = vmul.f32 %v623, %v623
        %v1542 = vmul.f32 %v624, %v624
        %v1543 = vmul.f32 %v625, %v625
        %v1544 = vmul.f32 %v626, %v626
        %v1545 = vmul.f32 %v627, %v627
        %v1546 = vmul.f32 %v628, %v628
        %v1547 = vmul.f32 %v629, %v629
        %v1548 = vmul.f32 %v630, %v630
        %v1549 = vmul.f32 %v631, %v631
        %v1550 = vmul.f32 %v632, %v632
        %v1551 = vmul.f32 %v633, %v633
        %v1552 = vmul.f32 %v634, %v634
        %v1553 = vmul.f32 %v635, %v635
        %v1554 = vmul.f32 %v636, %v636
        %v1555 = vmul.f32 %v637, %v637
        %v1556 = vmul.f32 %v638, %v638
        %v1557 = vmul.f32 %v639, %v639
        %v1558 = vmul.f32 %v640, %v640
        %v1559 = vmul.f32 %v641, %v641
        %v1560 = vmul.f32 %v642, %v642
        %v1561 = vmul.f32 %v643, %v643
        %v1562 = vmul.f32 %v644, %v644
        %v1563 = vmul.f32 %v645, %v645
        %v1564 = vmul.f32 %v646, %v646
        %v1565 = vmul.f32 %v647, %v647
        %v1566 = vmul.f32 %v648, %v648
        %v1567 = vmul.f32 %v649, %v649
        %v1568 = vmul.f32 %v650, %v650
        %v1569 = vmul.f32 %v651, %v651
        %v1570 = vmul.f32 %v652, %v652
        %v1571 = vmul.f32 %v653, %v653
        %v1572 = vmul.f32 %v654, %v654
        %v1573 = vmul.f32 %v655, %v655
        %v1574 = vmul.f32 %v656, %v656
        %v1575 = vmul.f32 %v657, %v657
        %v1576 = vmul.f32 %v658, %v658
        %v1577 = vmul.f32 %v659, %v659
        %v1578 = vmul.f32 %v660, %v660
        %v1579 = vmul.f32 %v661, %v661
        %v1580 = vmul.f32 %v662, %v662
        %v1581 = vmul.f32 %v663, %v663
        %v1582 = vmul.f32 %v664, %v664
        %v1583 = vmul.f32 %v665, %v665
        %v1584 = vmul.f32 %v666, %v666
        %v1585 = vmul.f32 %v667, %v667
        %v1586 = vmul.f32 %v668, %v668
        %v1587 = vmul.f32 %v669, %v669
        %v1588 = vmul.f32 %v670, %v670
        %v1589 = vmul.f32 %v671, %v671
        %v1590 = vmul.f32 %v672, %v672
        %v1591 = vmul.f32 %v673, %v673
        %v1592 = vmul.f32 %v674, %v674
        %v1593 = vmul.f32 %v675, %v675
        %v1594 = vmul.f32 %v676, %v676
        %v1595 = vmul.f32 %v677, %v677
        %v1596 = vmul.f32 %v678, %v678
        %v1597 = vmul.f32 %v679, %v679
        %v1598 = vmul.f32 %v947, %v947
        %v1599 = vmul.f32 %v948, %v948
        %v1600 = vmul.f32 %v949, %v949
        %v1601 = vmul.f32 %v950, %v950
        %v1602 = vmul.f32 %v951, %v951
        %v1603 = vmul.f32 %v952, %v952
        %v1604 = vmul.f32 %v953, %v953
        %v1605 = vmul.f32 %v954, %v954
        %v1606 = vmul.f32 %v955, %v955
        %v1607 = vmul.f32 %v956, %v956
        %v1608 = vmul.f32 %v957, %v957
        %v1609 = vmul.f32 %v958, %v958
        %v1610 = vmul.f32 %v959, %v959
        %v1611 = vmul.f32 %v960, %v960
        %v1612 = vmul.f32 %v961, %v961
        %v1613 = vmul.f32 %v962, %v962
        %v1614 = vmul.f32 %v963, %v963
        %v1615 = vmul.f32 %v964, %v964
        %v1616 = vmul.f32 %v965, %v965
        %v1617 = vmul.f32 %v966, %v966
        %v1618 = vmul.f32 %v967, %v967
        %v1619 = vmul.f32 %v968, %v968
        %v1620 = vmul.f32 %v969, %v969
        %v1621 = vmul.f32 %v970, %v970
        %v1622 = vmul.f32 %v971, %v971
        %v1623 = vmul.f32 %v972, %v972
        %v1624 = vmul.f32 %v973, %v973
        %v1625 = vmul.f32 %v974, %v974
        %v1626 = vmul.f32 %v975, %v975
        %v1627 = vmul.f32 %v976, %v976
        %v1628 = vmul.f32 %v977, %v977
        %v1629 = vmul.f32 %v978, %v978
        %v1630 = vmul.f32 %v979, %v979
        %v1631 = vmul.f32 %v980, %v980
        %v1632 = vmul.f32 %v981, %v981
        %v1633 = vmul.f32 %v982, %v982
        %v1634 = vmul.f32 %v983, %v983
        %v1635 = vmul.f32 %v984, %v984
        %v1636 = vmul.f32 %v985, %v985
        %v1637 = vmul.f32 %v986, %v986
        %v1638 = vmul.f32 %v987, %v987
        %v1639 = vmul.f32 %v988, %v988
        %v1640 = vmul.f32 %v989, %v989
        %v1641 = vmul.f32 %v990, %v990
        %v1642 = vmul.f32 %v991, %v991
        %v1643 = vmul.f32 %v992, %v992
        %v1644 = vmul.f32 %v993, %v993
        %v1645 = vmul.f32 %v994, %v994
        %v1646 = vmul.f32 %v995, %v995
        %v1647 = vmul.f32 %v996, %v996
        %v1648 = vmul.f32 %v997, %v997
        %v1649 = vmul.f32 %v998, %v998
        %v1650 = vmul.f32 %v999, %v999
        %v1651 = vmul.f32 %v1000, %v1000
        %v1652 = vmul.f32 %v1001, %v1001
        %v1653 = vmul.f32 %v1002, %v1002
        %v1654 = vmul.f32 %v1003, %v1003
        %v1655 = vmul.f32 %v1004, %v1004
        %v1656 = vmul.f32 %v1005, %v1005
        %v1657 = vmul.f32 %v1006, %v1006
        %v1658 = vmul.f32 %v1007, %v1007
        %v1659 = vmul.f32 %v1008, %v1008
        %v1660 = vmul.f32 %v1009, %v1009
        %v1661 = vmul.f32 %v1010, %v1010
        %v1662 = vmul.f32 %v1011, %v1011
        %v1663 = vmul.f32 %v1012, %v1012
        %v1664 = vmul.f32 %v1013, %v1013
        %v1665 = vmul.f32 %v1014, %v1014
        %v1666 = vmul.f32 %v1015, %v1015
        %v1667 = vmul.f32 %v1016, %v1016
        %v1668 = vmul.f32 %v1017, %v1017
        %v1669 = vmul.f32 %v1018, %v1018
        %v1670 = vmul.f32 %v1019, %v1019
        %v1671 = vmul.f32 %v1020, %v1020
        %v1672 = vmul.f32 %v1021, %v1021
        %v1673 = vmul.f32 %v1022, %v1022
        %v1674 = vmul.f32 %v1023, %v1023
        %v1675 = vmul.f32 %v1024, %v1024
        %v1676 = vmul.f32 %v1025, %v1025
        %v1677 = vmul.f32 %v1026, %v1026
        %v1678 = vmul.f32 %v1027, %v1027
        %v1679 = vmul.f32 %v1028, %v1028
        %v1680 = vmul.f32 %v1029, %v1029
        %v1681 = vmul.f32 %v1030, %v1030
        %v1682 = vmul.f32 %v1031, %v1031
        %v1683 = vmul.f32 %v1032, %v1032
        %v1684 = vmul.f32 %v1033, %v1033
        %v1685 = vmul.f32 %v1034, %v1034
        %v1686 = vmul.f32 %v1035, %v1035
        %v1687 = vmul.f32 %v1036, %v1036
        %v1688 = vmul.f32 %v1037, %v1037
        %v1689 = vmul.f32 %v1038, %v1038
        %v1690 = vmul.f32 %v1039, %v1039
        %v1691 = vmul.f32 %v1040, %v1040
        %v1692 = vmul.f32 %v1041, %v1041
        %v1693 = vmul.f32 %v1042, %v1042
        %v1694 = vmul.f32 %v1043, %v1043
        %v1695 = vmul.f32 %v1044, %v1044
        %v1696 = vmul.f32 %v1045, %v1045
        %v1697 = vmul.f32 %v1046, %v1046
        %v1698 = vmul.f32 %v1047, %v1047
        %v1699 = vmul.f32 %v1048, %v1048
        %v1700 = vmul.f32 %v1049, %v1049
        %v1701 = vmul.f32 %v1050, %v1050
        %v1702 = vmul.f32 %v1051, %v1051
        %v1703 = vmul.f32 %v1052, %v1052
        %v1704 = vmul.f32 %v1053, %v1053
        %v1705 = vmul.f32 %v1054, %v1054
        %v1706 = vmul.f32 %v1055, %v1055
        %v1707 = vmul.f32 %v1056, %v1056
        %v1708 = vmul.f32 %v1057, %v1057
        %v1709 = vmul.f32 %v1058, %v1058
        %v1710 = vmul.f32 %v1059, %v1059
        %v1711 = vmul.f32 %v1060, %v1060
        %v1712 = vmul.f32 %v1061, %v1061
        %v1713 = vmul.f32 %v1062, %v1062
        %v1714 = vmul.f32 %v1063, %v1063
        %v1715 = vmul.f32 %v1064, %v1064
        %v1716 = vmul.f32 %v1065, %v1065
        %v1717 = vmul.f32 %v1066, %v1066
        %v1718 = vmul.f32 %v1067, %v1067
        %v1719 = vmul.f32 %v1068, %v1068
        %v1720 = vmul.f32 %v1069, %v1069
        %v1721 = vmul.f32 %v1070, %v1070
        %v1722 = vmul.f32 %v1071, %v1071
        %v1723 = vmul.f32 %v1072, %v1072
        %v1724 = vmul.f32 %v1073, %v1073
        %v1725 = vmul.f32 %v1074, %v1074
        %v1726 = vadd.f32 %v1470, %v1598
        %v1727 = vadd.f32 %v1471, %v1599
        %v1728 = vadd.f32 %v1472, %v1600
        %v1729 = vadd.f32 %v1473, %v1601
        %v1730 = vadd.f32 %v1474, %v1602
        %v1731 = vadd.f32 %v1475, %v1603
        %v1732 = vadd.f32 %v1476, %v1604
        %v1733 = vadd.f32 %v1477, %v1605
        %v1734 = vadd.f32 %v1478, %v1606
        %v1735 = vadd.f32 %v1479, %v1607
        %v1736 = vadd.f32 %v1480, %v1608
        %v1737 = vadd.f32 %v1481, %v1609
        %v1738 = vadd.f32 %v1482, %v1610
        %v1739 = vadd.f32 %v1483, %v1611
        %v1740 = vadd.f32 %v1484, %v1612
        %v1741 = vadd.f32 %v1485, %v1613
        %v1742 = vadd.f32 %v1486, %v1614
        %v1743 = vadd.f32 %v1487, %v1615
        %v1744 = vadd.f32 %v1488, %v1616
        %v1745 = vadd.f32 %v1489, %v1617
        %v1746 = vadd.f32 %v1490, %v1618
        %v1747 = vadd.f32 %v1491, %v1619
        %v1748 = vadd.f32 %v1492, %v1620
        %v1749 = vadd.f32 %v1493, %v1621
        %v1750 = vadd.f32 %v1494, %v1622
        %v1751 = vadd.f32 %v1495, %v1623
        %v1752 = vadd.f32 %v1496, %v1624
        %v1753 = vadd.f32 %v1497, %v1625
        %v1754 = vadd.f32 %v1498, %v1626
        %v1755 = vadd.f32 %v1499, %v1627
        %v1756 = vadd.f32 %v1500, %v1628
        %v1757 = vadd.f32 %v1501, %v1629
        %v1758 = vadd.f32 %v1502, %v1630
        %v1759 = vadd.f32 %v1503, %v1631
        %v1760 = vadd.f32 %v1504, %v1632
        %v1761 = vadd.f32 %v1505, %v1633
        %v1762 = vadd.f32 %v1506, %v1634
        %v1763 = vadd.f32 %v1507, %v1635
        %v1764 = vadd.f32 %v1508, %v1636
        %v1765 = vadd.f32 %v1509, %v1637
        %v1766 = vadd.f32 %v1510, %v1638
        %v1767 = vadd.f32 %v1511, %v1639
        %v1768 = vadd.f32 %v1512, %v1640
        %v1769 = vadd.f32 %v1513, %v1641
        %v1770 = vadd.f32 %v1514, %v1642
        %v1771 = vadd.f32 %v1515, %v1643
        %v1772 = vadd.f32 %v1516, %v1644
        %v1773 = vadd.f32 %v1517, %v1645
        %v1774 = vadd.f32 %v1518, %v1646
        %v1775 = vadd.f32 %v1519, %v1647
        %v1776 = vadd.f32 %v1520, %v1648
        %v1777 = vadd.f32 %v1521, %v1649
        %v1778 = vadd.f32 %v1522, %v1650
        %v1779 = vadd.f32 %v1523, %v1651
        %v1780 = vadd.f32 %v1524, %v1652
        %v1781 = vadd.f32 %v1525, %v1653
        %v1782 = vadd.f32 %v1526, %v1654
        %v1783 = vadd.f32 %v1527, %v1655
        %v1784 = vadd.f32 %v1528, %v1656
        %v1785 = vadd.f32 %v1529, %v1657
        %v1786 = vadd.f32 %v1530, %v1658
        %v1787 = vadd.f32 %v1531, %v1659
        %v1788 = vadd.f32 %v1532, %v1660
        %v1789 = vadd.f32 %v1533, %v1661
        %v1790 = vadd.f32 %v1534, %v1662
        %v1791 = vadd.f32 %v1535, %v1663
        %v1792 = vadd.f32 %v1536, %v1664
        %v1793 = vadd.f32 %v1537, %v1665
        %v1794 = vadd.f32 %v1538, %v1666
        %v1795 = vadd.f32 %v1539, %v1667
        %v1796 = vadd.f32 %v1540, %v1668
        %v1797 = vadd.f32 %v1541, %v1669
        %v1798 = vadd.f32 %v1542, %v1670
        %v1799 = vadd.f32 %v1543, %v1671
        %v1800 = vadd.f32 %v1544, %v1672
        %v1801 = vadd.f32 %v1545, %v1673
        %v1802 = vadd.f32 %v1546, %v1674
        %v1803 = vadd.f32 %v1547, %v1675
        %v1804 = vadd.f32 %v1548, %v1676
        %v1805 = vadd.f32 %v1549, %v1677
        %v1806 = vadd.f32 %v1550, %v1678
        %v1807 = vadd.f32 %v1551, %v1679
        %v1808 = vadd.f32 %v1552, %v1680
        %v1809 = vadd.f32 %v1553, %v1681
        %v1810 = vadd.f32 %v1554, %v1682
        %v1811 = vadd.f32 %v1555, %v1683
        %v1812 = vadd.f32 %v1556, %v1684
        %v1813 = vadd.f32 %v1557, %v1685
        %v1814 = vadd.f32 %v1558, %v1686
        %v1815 = vadd.f32 %v1559, %v1687
        %v1816 = vadd.f32 %v1560, %v1688
        %v1817 = vadd.f32 %v1561, %v1689
        %v1818 = vadd.f32 %v1562, %v1690
        %v1819 = vadd.f32 %v1563, %v1691
        %v1820 = vadd.f32 %v1564, %v1692
        %v1821 = vadd.f32 %v1565, %v1693
        %v1822 = vadd.f32 %v1566, %v1694
        %v1823 = vadd.f32 %v1567, %v1695
        %v1824 = vadd.f32 %v1568, %v1696
        %v1825 = vadd.f32 %v1569, %v1697
        %v1826 = vadd.f32 %v1570, %v1698
        %v1827 = vadd.f32 %v1571, %v1699
        %v1828 = vadd.f32 %v1572, %v1700
        %v1829 = vadd.f32 %v1573, %v1701
        %v1830 = vadd.f32 %v1574, %v1702
        %v1831 = vadd.f32 %v1575, %v1703
        %v1832 = vadd.f32 %v1576, %v1704
        %v1833 = vadd.f32 %v1577, %v1705
        %v1834 = vadd.f32 %v1578, %v1706
        %v1835 = vadd.f32 %v1579, %v1707
        %v1836 = vadd.f32 %v1580, %v1708
        %v1837 = vadd.f32 %v1581, %v1709
        %v1838 = vadd.f32 %v1582, %v1710
        %v1839 = vadd.f32 %v1583, %v1711
        %v1840 = vadd.f32 %v1584, %v1712
        %v1841 = vadd.f32 %v1585, %v1713
        %v1842 = vadd.f32 %v1586, %v1714
        %v1843 = vadd.f32 %v1587, %v1715
        %v1844 = vadd.f32 %v1588, %v1716
        %v1845 = vadd.f32 %v1589, %v1717
        %v1846 = vadd.f32 %v1590, %v1718
        %v1847 = vadd.f32 %v1591, %v1719
        %v1848 = vadd.f32 %v1592, %v1720
        %v1849 = vadd.f32 %v1593, %v1721
        %v1850 = vadd.f32 %v1594, %v1722
        %v1851 = vadd.f32 %v1595, %v1723
        %v1852 = vadd.f32 %v1596, %v1724
        %v1853 = vadd.f32 %v1597, %v1725
        %v1854 = vmul.f32 %v1342, %v1342
        %v1855 = vmul.f32 %v1343, %v1343
        %v1856 = vmul.f32 %v1344, %v1344
        %v1857 = vmul.f32 %v1345, %v1345
        %v1858 = vmul.f32 %v1346, %v1346
        %v1859 = vmul.f32 %v1347, %v1347
        %v1860 = vmul.f32 %v1348, %v1348
        %v1861 = vmul.f32 %v1349, %v1349
        %v1862 = vmul.f32 %v1350, %v1350
        %v1863 = vmul.f32 %v1351, %v1351
        %v1864 = vmul.f32 %v1352, %v1352
        %v1865 = vmul.f32 %v1353, %v1353
        %v1866 = vmul.f32 %v1354, %v1354
        %v1867 = vmul.f32 %v1355, %v1355
        %v1868 = vmul.f32 %v1356, %v1356
        %v1869 = vmul.f32 %v1357, %v1357
        %v1870 = vmul.f32 %v1358, %v1358
        %v1871 = vmul.f32 %v1359, %v1359
        %v1872 = vmul.f32 %v1360, %v1360
        %v1873 = vmul.f32 %v1361, %v1361
        %v1874 = vmul.f32 %v1362, %v1362
        %v1875 = vmul.f32 %v1363, %v1363
        %v1876 = vmul.f32 %v1364, %v1364
        %v1877 = vmul.f32 %v1365, %v1365
        %v1878 = vmul.f32 %v1366, %v1366
        %v1879 = vmul.f32 %v1367, %v1367
        %v1880 = vmul.f32 %v1368, %v1368
        %v1881 = vmul.f32 %v1369, %v1369
        %v1882 = vmul.f32 %v1370, %v1370
        %v1883 = vmul.f32 %v1371, %v1371
        %v1884 = vmul.f32 %v1372, %v1372
        %v1885 = vmul.f32 %v1373, %v1373
        %v1886 = vmul.f32 %v1374, %v1374
        %v1887 = vmul.f32 %v1375, %v1375
        %v1888 = vmul.f32 %v1376, %v1376
        %v1889 = vmul.f32 %v1377, %v1377
        %v1890 = vmul.f32 %v1378, %v1378
        %v1891 = vmul.f32 %v1379, %v1379
        %v1892 = vmul.f32 %v1380, %v1380
        %v1893 = vmul.f32 %v1381, %v1381
        %v1894 = vmul.f32 %v1382, %v1382
        %v1895 = vmul.f32 %v1383, %v1383
        %v1896 = vmul.f32 %v1384, %v1384
        %v1897 = vmul.f32 %v1385, %v1385
        %v1898 = vmul.f32 %v1386, %v1386
        %v1899 = vmul.f32 %v1387, %v1387
        %v1900 = vmul.f32 %v1388, %v1388
        %v1901 = vmul.f32 %v1389, %v1389
        %v1902 = vmul.f32 %v1390, %v1390
        %v1903 = vmul.f32 %v1391, %v1391
        %v1904 = vmul.f32 %v1392, %v1392
        %v1905 = vmul.f32 %v1393, %v1393
        %v1906 = vmul.f32 %v1394, %v1394
        %v1907 = vmul.f32 %v1395, %v1395
        %v1908 = vmul.f32 %v1396, %v1396
        %v1909 = vmul.f32 %v1397, %v1397
        %v1910 = vmul.f32 %v1398, %v1398
        %v1911 = vmul.f32 %v1399, %v1399
        %v1912 = vmul.f32 %v1400, %v1400
        %v1913 = vmul.f32 %v1401, %v1401
        %v1914 = vmul.f32 %v1402, %v1402
        %v1915 = vmul.f32 %v1403, %v1403
        %v1916 = vmul.f32 %v1404, %v1404
        %v1917 = vmul.f32 %v1405, %v1405
        %v1918 = vmul.f32 %v1406, %v1406
        %v1919 = vmul.f32 %v1407, %v1407
        %v1920 = vmul.f32 %v1408, %v1408
        %v1921 = vmul.f32 %v1409, %v1409
        %v1922 = vmul.f32 %v1410, %v1410
        %v1923 = vmul.f32 %v1411, %v1411
        %v1924 = vmul.f32 %v1412, %v1412
        %v1925 = vmul.f32 %v1413, %v1413
        %v1926 = vmul.f32 %v1414, %v1414
        %v1927 = vmul.f32 %v1415, %v1415
        %v1928 = vmul.f32 %v1416, %v1416
        %v1929 = vmul.f32 %v1417, %v1417
        %v1930 = vmul.f32 %v1418, %v1418
        %v1931 = vmul.f32 %v1419, %v1419
        %v1932 = vmul.f32 %v1420, %v1420
        %v1933 = vmul.f32 %v1421, %v1421
        %v1934 = vmul.f32 %v1422, %v1422
        %v1935 = vmul.f32 %v1423, %v1423
        %v1936 = vmul.f32 %v1424, %v1424
        %v1937 = vmul.f32 %v1425, %v1425
        %v1938 = vmul.f32 %v1426, %v1426
        %v1939 = vmul.f32 %v1427, %v1427
        %v1940 = vmul.f32 %v1428, %v1428
        %v1941 = vmul.f32 %v1429, %v1429
        %v1942 = vmul.f32 %v1430, %v1430
        %v1943 = vmul.f32 %v1431, %v1431
        %v1944 = vmul.f32 %v1432, %v1432
        %v1945 = vmul.f32 %v1433, %v1433
        %v1946 = vmul.f32 %v1434, %v1434
        %v1947 = vmul.f32 %v1435, %v1435
        %v1948 = vmul.f32 %v1436, %v1436
        %v1949 = vmul.f32 %v1437, %v1437
        %v1950 = vmul.f32 %v1438, %v1438
        %v1951 = vmul.f32 %v1439, %v1439
        %v1952 = vmul.f32 %v1440, %v1440
        %v1953 = vmul.f32 %v1441, %v1441
        %v1954 = vmul.f32 %v1442, %v1442
        %v1955 = vmul.f32 %v1443, %v1443
        %v1956 = vmul.f32 %v1444, %v1444
        %v1957 = vmul.f32 %v1445, %v1445
        %v1958 = vmul.f32 %v1446, %v1446
        %v1959 = vmul.f32 %v1447, %v1447
        %v1960 = vmul.f32 %v1448, %v1448
        %v1961 = vmul.f32 %v1449, %v1449
        %v1962 = vmul.f32 %v1450, %v1450
        %v1963 = vmul.f32 %v1451, %v1451
        %v1964 = vmul.f32 %v1452, %v1452
        %v1965 = vmul.f32 %v1453, %v1453
        %v1966 = vmul.f32 %v1454, %v1454
        %v1967 = vmul.f32 %v1455, %v1455
        %v1968 = vmul.f32 %v1456, %v1456
        %v1969 = vmul.f32 %v1457, %v1457
        %v1970 = vmul.f32 %v1458, %v1458
        %v1971 = vmul.f32 %v1459, %v1459
        %v1972 = vmul.f32 %v1460, %v1460
        %v1973 = vmul.f32 %v1461, %v1461
        %v1974 = vmul.f32 %v1462, %v1462
        %v1975 = vmul.f32 %v1463, %v1463
        %v1976 = vmul.f32 %v1464, %v1464
        %v1977 = vmul.f32 %v1465, %v1465
        %v1978 = vmul.f32 %v1466, %v1466
        %v1979 = vmul.f32 %v1467, %v1467
        %v1980 = vmul.f32 %v1468, %v1468
        %v1981 = vmul.f32 %v1469, %v1469
        %v1982 = vadd.f32 %v1726, %v1854
        %v1983 = vadd.f32 %v1727, %v1855
        %v1984 = vadd.f32 %v1728, %v1856
        %v1985 = vadd.f32 %v1729, %v1857
        %v1986 = vadd.f32 %v1730, %v1858
        %v1987 = vadd.f32 %v1731, %v1859
        %v1988 = vadd.f32 %v1732, %v1860
        %v1989 = vadd.f32 %v1733, %v1861
        %v1990 = vadd.f32 %v1734, %v1862
        %v1991 = vadd.f32 %v1735, %v1863
        %v1992 = vadd.f32 %v1736, %v1864
        %v1993 = vadd.f32 %v1737, %v1865
        %v1994 = vadd.f32 %v1738, %v1866
        %v1995 = vadd.f32 %v1739, %v1867
        %v1996 = vadd.f32 %v1740, %v1868
        %v1997 = vadd.f32 %v1741, %v1869
        %v1998 = vadd.f32 %v1742, %v1870
        %v1999 = vadd.f32 %v1743, %v1871
        %v2000 = vadd.f32 %v1744, %v1872
        %v2001 = vadd.f32 %v1745, %v1873
        %v2002 = vadd.f32 %v1746, %v1874
        %v2003 = vadd.f32 %v1747, %v1875
        %v2004 = vadd.f32 %v1748, %v1876
        %v2005 = vadd.f32 %v1749, %v1877
        %v2006 = vadd.f32 %v1750, %v1878
        %v2007 = vadd.f32 %v1751, %v1879
        %v2008 = vadd.f32 %v1752, %v1880
        %v2009 = vadd.f32 %v1753, %v1881
        %v2010 = vadd.f32 %v1754, %v1882
        %v2011 = vadd.f32 %v1755, %v1883
        %v2012 = vadd.f32 %v1756, %v1884
        %v2013 = vadd.f32 %v1757, %v1885
        %v2014 = vadd.f32 %v1758, %v1886
        %v2015 = vadd.f32 %v1759, %v1887
        %v2016 = vadd.f32 %v1760, %v1888
        %v2017 = vadd.f32 %v1761, %v1889
        %v2018 = vadd.f32 %v1762, %v1890
        %v2019 = vadd.f32 %v1763, %v1891
        %v2020 = vadd.f32 %v1764, %v1892
        %v2021 = vadd.f32 %v1765, %v1893
        %v2022 = vadd.f32 %v1766, %v1894
        %v2023 = vadd.f32 %v1767, %v1895
        %v2024 = vadd.f32 %v1768, %v1896
        %v2025 = vadd.f32 %v1769, %v1897
        %v2026 = vadd.f32 %v1770, %v1898
        %v2027 = vadd.f32 %v1771, %v1899
        %v2028 = vadd.f32 %v1772, %v1900
        %v2029 = vadd.f32 %v1773, %v1901
        %v2030 = vadd.f32 %v1774, %v1902
        %v2031 = vadd.f32 %v1775, %v1903
        %v2032 = vadd.f32 %v1776, %v1904
        %v2033 = vadd.f32 %v1777, %v1905
        %v2034 = vadd.f32 %v1778, %v1906
        %v2035 = vadd.f32 %v1779, %v1907
        %v2036 = vadd.f32 %v1780, %v1908
        %v2037 = vadd.f32 %v1781, %v1909
        %v2038 = vadd.f32 %v1782, %v1910
        %v2039 = vadd.f32 %v1783, %v1911
        %v2040 = vadd.f32 %v1784, %v1912
        %v2041 = vadd.f32 %v1785, %v1913
        %v2042 = vadd.f32 %v1786, %v1914
        %v2043 = vadd.f32 %v1787, %v1915
        %v2044 = vadd.f32 %v1788, %v1916
        %v2045 = vadd.f32 %v1789, %v1917
        %v2046 = vadd.f32 %v1790, %v1918
        %v2047 = vadd.f32 %v1791, %v1919
        %v2048 = vadd.f32 %v1792, %v1920
        %v2049 = vadd.f32 %v1793, %v1921
        %v2050 = vadd.f32 %v1794, %v1922
        %v2051 = vadd.f32 %v1795, %v1923
        %v2052 = vadd.f32 %v1796, %v1924
        %v2053 = vadd.f32 %v1797, %v1925
        %v2054 = vadd.f32 %v1798, %v1926
        %v2055 = vadd.f32 %v1799, %v1927
        %v2056 = vadd.f32 %v1800, %v1928
        %v2057 = vadd.f32 %v1801, %v1929
        %v2058 = vadd.f32 %v1802, %v1930
        %v2059 = vadd.f32 %v1803, %v1931
        %v2060 = vadd.f32 %v1804, %v1932
        %v2061 = vadd.f32 %v1805, %v1933
        %v2062 = vadd.f32 %v1806, %v1934
        %v2063 = vadd.f32 %v1807, %v1935
        %v2064 = vadd.f32 %v1808, %v1936
        %v2065 = vadd.f32 %v1809, %v1937
        %v2066 = vadd.f32 %v1810, %v1938
        %v2067 = vadd.f32 %v1811, %v1939
        %v2068 = vadd.f32 %v1812, %v1940
        %v2069 = vadd.f32 %v1813, %v1941
        %v2070 = vadd.f32 %v1814, %v1942
        %v2071 = vadd.f32 %v1815, %v1943
        %v2072 = vadd.f32 %v1816, %v1944
        %v2073 = vadd.f32 %v1817, %v1945
        %v2074 = vadd.f32 %v1818, %v1946
        %v2075 = vadd.f32 %v1819, %v1947
        %v2076 = vadd.f32 %v1820, %v1948
        %v2077 = vadd.f32 %v1821, %v1949
        %v2078 = vadd.f32 %v1822, %v1950
        %v2079 = vadd.f32 %v1823, %v1951
        %v2080 = vadd.f32 %v1824, %v1952
        %v2081 = vadd.f32 %v1825, %v1953
        %v2082 = vadd.f32 %v1826, %v1954
        %v2083 = vadd.f32 %v1827, %v1955
        %v2084 = vadd.f32 %v1828, %v1956
        %v2085 = vadd.f32 %v1829, %v1957
        %v2086 = vadd.f32 %v1830, %v1958
        %v2087 = vadd.f32 %v1831, %v1959
        %v2088 = vadd.f32 %v1832, %v1960
        %v2089 = vadd.f32 %v1833, %v1961
        %v2090 = vadd.f32 %v1834, %v1962
        %v2091 = vadd.f32 %v1835, %v1963
        %v2092 = vadd.f32 %v1836, %v1964
        %v2093 = vadd.f32 %v1837, %v1965
        %v2094 = vadd.f32 %v1838, %v1966
        %v2095 = vadd.f32 %v1839, %v1967
        %v2096 = vadd.f32 %v1840, %v1968
        %v2097 = vadd.f32 %v1841, %v1969
        %v2098 = vadd.f32 %v1842, %v1970
        %v2099 = vadd.f32 %v1843, %v1971
        %v2100 = vadd.f32 %v1844, %v1972
        %v2101 = vadd.f32 %v1845, %v1973
        %v2102 = vadd.f32 %v1846, %v1974
        %v2103 = vadd.f32 %v1847, %v1975
        %v2104 = vadd.f32 %v1848, %v1976
        %v2105 = vadd.f32 %v1849, %v1977
        %v2106 = vadd.f32 %v1850, %v1978
        %v2107 = vadd.f32 %v1851, %v1979
        %v2108 = vadd.f32 %v1852, %v1980
        %v2109 = vadd.f32 %v1853, %v1981
        %v2110 = vlaneseq
        %v2111 = vshrl.u32 %v2110, 7
        %v2112 = vadd.s32 %v2111, 8
        %v2113 = vadd.s32 %v2111, 16
        %v2114 = vadd.s32 %v2111, 24
        %v2115 = vadd.s32 %v2111, 32
        %v2116 = vadd.s32 %v2111, 40
        %v2117 = vadd.s32 %v2111, 48
        %v2118 = vadd.s32 %v2111, 56
        %v2119 = vadd.s32 %v2111, 64
        %v2120 = vadd.s32 %v2111, 72
        %v2121 = vadd.s32 %v2111, 80
        %v2122 = vadd.s32 %v2111, 88
        %v2123 = vadd.s32 %v2111, 96
        %v2124 = vadd.s32 %v2111, 104
        %v2125 = vadd.s32 %v2111, 112
        %v2126 = vadd.s32 %v2111, 120
        %v2127 = vadd.s32 %v2111, 128
        %v2128 = vadd.s32 %v2111, 136
        %v2129 = vadd.s32 %v2111, 144
        %v2130 = vadd.s32 %v2111, 152
        %v2131 = vadd.s32 %v2111, 160
        %v2132 = vadd.s32 %v2111, 168
        %v2133 = vadd.s32 %v2111, 176
        %v2134 = vadd.s32 %v2111, 184
        %v2135 = vadd.s32 %v2111, 192
        %v2136 = vadd.s32 %v2111, 200
        %v2137 = vadd.s32 %v2111, 208
        %v2138 = vadd.s32 %v2111, 216
        %v2139 = vadd.s32 %v2111, 224
        %v2140 = vadd.s32 %v2111, 232
        %v2141 = vadd.s32 %v2111, 240
        %v2142 = vadd.s32 %v2111, 248
        %v2143 = vadd.s32 %v2111, 256
        %v2144 = vadd.s32 %v2111, 264
        %v2145 = vadd.s32 %v2111, 272
        %v2146 = vadd.s32 %v2111, 280
        %v2147 = vadd.s32 %v2111, 288
        %v2148 = vadd.s32 %v2111, 296
        %v2149 = vadd.s32 %v2111, 304
        %v2150 = vadd.s32 %v2111, 312
        %v2151 = vadd.s32 %v2111, 320
        %v2152 = vadd.s32 %v2111, 328
        %v2153 = vadd.s32 %v2111, 336
        %v2154 = vadd.s32 %v2111, 344
        %v2155 = vadd.s32 %v2111, 352
        %v2156 = vadd.s32 %v2111, 360
        %v2157 = vadd.s32 %v2111, 368
        %v2158 = vadd.s32 %v2111, 376
        %v2159 = vadd.s32 %v2111, 384
        %v2160 = vadd.s32 %v2111, 392
        %v2161 = vadd.s32 %v2111, 400
        %v2162 = vadd.s32 %v2111, 408
        %v2163 = vadd.s32 %v2111, 416
        %v2164 = vadd.s32 %v2111, 424
        %v2165 = vadd.s32 %v2111, 432
        %v2166 = vadd.s32 %v2111, 440
        %v2167 = vadd.s32 %v2111, 448
        %v2168 = vadd.s32 %v2111, 456
        %v2169 = vadd.s32 %v2111, 464
        %v2170 = vadd.s32 %v2111, 472
        %v2171 = vadd.s32 %v2111, 480
        %v2172 = vadd.s32 %v2111, 488
        %v2173 = vadd.s32 %v2111, 496
        %v2174 = vadd.s32 %v2111, 504
        %v2175 = vstv 0
        %v2176 = vadd.s32 %v2175, %v2111
        %v2177 = vadd.s32 %v2175, %v2112
        %v2178 = vadd.s32 %v2175, %v2113
        %v2179 = vadd.s32 %v2175, %v2114
        %v2180 = vadd.s32 %v2175, %v2115
        %v2181 = vadd.s32 %v2175, %v2116
        %v2182 = vadd.s32 %v2175, %v2117
        %v2183 = vadd.s32 %v2175, %v2118
        %v2184 = vadd.s32 %v2175, %v2119
        %v2185 = vadd.s32 %v2175, %v2120
        %v2186 = vadd.s32 %v2175, %v2121
        %v2187 = vadd.s32 %v2175, %v2122
        %v2188 = vadd.s32 %v2175, %v2123
        %v2189 = vadd.s32 %v2175, %v2124
        %v2190 = vadd.s32 %v2175, %v2125
        %v2191 = vadd.s32 %v2175, %v2126
        %v2192 = vadd.s32 %v2175, %v2127
        %v2193 = vadd.s32 %v2175, %v2128
        %v2194 = vadd.s32 %v2175, %v2129
        %v2195 = vadd.s32 %v2175, %v2130
        %v2196 = vadd.s32 %v2175, %v2131
        %v2197 = vadd.s32 %v2175, %v2132
        %v2198 = vadd.s32 %v2175, %v2133
        %v2199 = vadd.s32 %v2175, %v2134
        %v2200 = vadd.s32 %v2175, %v2135
        %v2201 = vadd.s32 %v2175, %v2136
        %v2202 = vadd.s32 %v2175, %v2137
        %v2203 = vadd.s32 %v2175, %v2138
        %v2204 = vadd.s32 %v2175, %v2139
        %v2205 = vadd.s32 %v2175, %v2140
        %v2206 = vadd.s32 %v2175, %v2141
        %v2207 = vadd.s32 %v2175, %v2142
        %v2208 = vadd.s32 %v2175, %v2143
        %v2209 = vadd.s32 %v2175, %v2144
        %v2210 = vadd.s32 %v2175, %v2145
        %v2211 = vadd.s32 %v2175, %v2146
        %v2212 = vadd.s32 %v2175, %v2147
        %v2213 = vadd.s32 %v2175, %v2148
        %v2214 = vadd.s32 %v2175, %v2149
        %v2215 = vadd.s32 %v2175, %v2150
        %v2216 = vadd.s32 %v2175, %v2151
        %v2217 = vadd.s32 %v2175, %v2152
        %v2218 = vadd.s32 %v2175, %v2153
        %v2219 = vadd.s32 %v2175, %v2154
        %v2220 = vadd.s32 %v2175, %v2155
        %v2221 = vadd.s32 %v2175, %v2156
        %v2222 = vadd.s32 %v2175, %v2157
        %v2223 = vadd.s32 %v2175, %v2158
        %v2224 = vadd.s32 %v2175, %v2159
        %v2225 = vadd.s32 %v2175, %v2160
        %v2226 = vadd.s32 %v2175, %v2161
        %v2227 = vadd.s32 %v2175, %v2162
        %v2228 = vadd.s32 %v2175, %v2163
        %v2229 = vadd.s32 %v2175, %v2164
        %v2230 = vadd.s32 %v2175, %v2165
        %v2231 = vadd.s32 %v2175, %v2166
        %v2232 = vadd.s32 %v2175, %v2167
        %v2233 = vadd.s32 %v2175, %v2168
        %v2234 = vadd.s32 %v2175, %v2169
        %v2235 = vadd.s32 %v2175, %v2170
        %v2236 = vadd.s32 %v2175, %v2171
        %v2237 = vadd.s32 %v2175, %v2172
        %v2238 = vadd.s32 %v2175, %v2173
        %v2239 = vadd.s32 %v2175, %v2174
        %vm2240 = vcmp.eq.s32.totalorder %v2176, %v155
        %vm2241 = vcmp.eq.s32.totalorder %v2176, %v156
        %vm2242 = vcmp.eq.s32.totalorder %v2177, %v155
        %vm2243 = vcmp.eq.s32.totalorder %v2177, %v156
        %vm2244 = vcmp.eq.s32.totalorder %v2178, %v155
        %vm2245 = vcmp.eq.s32.totalorder %v2178, %v156
        %vm2246 = vcmp.eq.s32.totalorder %v2179, %v155
        %vm2247 = vcmp.eq.s32.totalorder %v2179, %v156
        %vm2248 = vcmp.eq.s32.totalorder %v2180, %v155
        %vm2249 = vcmp.eq.s32.totalorder %v2180, %v156
        %vm2250 = vcmp.eq.s32.totalorder %v2181, %v155
        %vm2251 = vcmp.eq.s32.totalorder %v2181, %v156
        %vm2252 = vcmp.eq.s32.totalorder %v2182, %v155
        %vm2253 = vcmp.eq.s32.totalorder %v2182, %v156
        %vm2254 = vcmp.eq.s32.totalorder %v2183, %v155
        %vm2255 = vcmp.eq.s32.totalorder %v2183, %v156
        %vm2256 = vcmp.eq.s32.totalorder %v2184, %v155
        %vm2257 = vcmp.eq.s32.totalorder %v2184, %v156
        %vm2258 = vcmp.eq.s32.totalorder %v2185, %v155
        %vm2259 = vcmp.eq.s32.totalorder %v2185, %v156
        %vm2260 = vcmp.eq.s32.totalorder %v2186, %v155
        %vm2261 = vcmp.eq.s32.totalorder %v2186, %v156
        %vm2262 = vcmp.eq.s32.totalorder %v2187, %v155
        %vm2263 = vcmp.eq.s32.totalorder %v2187, %v156
        %vm2264 = vcmp.eq.s32.totalorder %v2188, %v155
        %vm2265 = vcmp.eq.s32.totalorder %v2188, %v156
        %vm2266 = vcmp.eq.s32.totalorder %v2189, %v155
        %vm2267 = vcmp.eq.s32.totalorder %v2189, %v156
        %vm2268 = vcmp.eq.s32.totalorder %v2190, %v155
        %vm2269 = vcmp.eq.s32.totalorder %v2190, %v156
        %vm2270 = vcmp.eq.s32.totalorder %v2191, %v155
        %vm2271 = vcmp.eq.s32.totalorder %v2191, %v156
        %vm2272 = vcmp.eq.s32.totalorder %v2192, %v155
        %vm2273 = vcmp.eq.s32.totalorder %v2192, %v156
        %vm2274 = vcmp.eq.s32.totalorder %v2193, %v155
        %vm2275 = vcmp.eq.s32.totalorder %v2193, %v156
        %vm2276 = vcmp.eq.s32.totalorder %v2194, %v155
        %vm2277 = vcmp.eq.s32.totalorder %v2194, %v156
        %vm2278 = vcmp.eq.s32.totalorder %v2195, %v155
        %vm2279 = vcmp.eq.s32.totalorder %v2195, %v156
        %vm2280 = vcmp.eq.s32.totalorder %v2196, %v155
        %vm2281 = vcmp.eq.s32.totalorder %v2196, %v156
        %vm2282 = vcmp.eq.s32.totalorder %v2197, %v155
        %vm2283 = vcmp.eq.s32.totalorder %v2197, %v156
        %vm2284 = vcmp.eq.s32.totalorder %v2198, %v155
        %vm2285 = vcmp.eq.s32.totalorder %v2198, %v156
        %vm2286 = vcmp.eq.s32.totalorder %v2199, %v155
        %vm2287 = vcmp.eq.s32.totalorder %v2199, %v156
        %vm2288 = vcmp.eq.s32.totalorder %v2200, %v155
        %vm2289 = vcmp.eq.s32.totalorder %v2200, %v156
        %vm2290 = vcmp.eq.s32.totalorder %v2201, %v155
        %vm2291 = vcmp.eq.s32.totalorder %v2201, %v156
        %vm2292 = vcmp.eq.s32.totalorder %v2202, %v155
        %vm2293 = vcmp.eq.s32.totalorder %v2202, %v156
        %vm2294 = vcmp.eq.s32.totalorder %v2203, %v155
        %vm2295 = vcmp.eq.s32.totalorder %v2203, %v156
        %vm2296 = vcmp.eq.s32.totalorder %v2204, %v155
        %vm2297 = vcmp.eq.s32.totalorder %v2204, %v156
        %vm2298 = vcmp.eq.s32.totalorder %v2205, %v155
        %vm2299 = vcmp.eq.s32.totalorder %v2205, %v156
        %vm2300 = vcmp.eq.s32.totalorder %v2206, %v155
        %vm2301 = vcmp.eq.s32.totalorder %v2206, %v156
        %vm2302 = vcmp.eq.s32.totalorder %v2207, %v155
        %vm2303 = vcmp.eq.s32.totalorder %v2207, %v156
        %vm2304 = vcmp.eq.s32.totalorder %v2208, %v155
        %vm2305 = vcmp.eq.s32.totalorder %v2208, %v156
        %vm2306 = vcmp.eq.s32.totalorder %v2209, %v155
        %vm2307 = vcmp.eq.s32.totalorder %v2209, %v156
        %vm2308 = vcmp.eq.s32.totalorder %v2210, %v155
        %vm2309 = vcmp.eq.s32.totalorder %v2210, %v156
        %vm2310 = vcmp.eq.s32.totalorder %v2211, %v155
        %vm2311 = vcmp.eq.s32.totalorder %v2211, %v156
        %vm2312 = vcmp.eq.s32.totalorder %v2212, %v155
        %vm2313 = vcmp.eq.s32.totalorder %v2212, %v156
        %vm2314 = vcmp.eq.s32.totalorder %v2213, %v155
        %vm2315 = vcmp.eq.s32.totalorder %v2213, %v156
        %vm2316 = vcmp.eq.s32.totalorder %v2214, %v155
        %vm2317 = vcmp.eq.s32.totalorder %v2214, %v156
        %vm2318 = vcmp.eq.s32.totalorder %v2215, %v155
        %vm2319 = vcmp.eq.s32.totalorder %v2215, %v156
        %vm2320 = vcmp.eq.s32.totalorder %v2216, %v155
        %vm2321 = vcmp.eq.s32.totalorder %v2216, %v156
        %vm2322 = vcmp.eq.s32.totalorder %v2217, %v155
        %vm2323 = vcmp.eq.s32.totalorder %v2217, %v156
        %vm2324 = vcmp.eq.s32.totalorder %v2218, %v155
        %vm2325 = vcmp.eq.s32.totalorder %v2218, %v156
        %vm2326 = vcmp.eq.s32.totalorder %v2219, %v155
        %vm2327 = vcmp.eq.s32.totalorder %v2219, %v156
        %vm2328 = vcmp.eq.s32.totalorder %v2220, %v155
        %vm2329 = vcmp.eq.s32.totalorder %v2220, %v156
        %vm2330 = vcmp.eq.s32.totalorder %v2221, %v155
        %vm2331 = vcmp.eq.s32.totalorder %v2221, %v156
        %vm2332 = vcmp.eq.s32.totalorder %v2222, %v155
        %vm2333 = vcmp.eq.s32.totalorder %v2222, %v156
        %vm2334 = vcmp.eq.s32.totalorder %v2223, %v155
        %vm2335 = vcmp.eq.s32.totalorder %v2223, %v156
        %vm2336 = vcmp.eq.s32.totalorder %v2224, %v155
        %vm2337 = vcmp.eq.s32.totalorder %v2224, %v156
        %vm2338 = vcmp.eq.s32.totalorder %v2225, %v155
        %vm2339 = vcmp.eq.s32.totalorder %v2225, %v156
        %vm2340 = vcmp.eq.s32.totalorder %v2226, %v155
        %vm2341 = vcmp.eq.s32.totalorder %v2226, %v156
        %vm2342 = vcmp.eq.s32.totalorder %v2227, %v155
        %vm2343 = vcmp.eq.s32.totalorder %v2227, %v156
        %vm2344 = vcmp.eq.s32.totalorder %v2228, %v155
        %vm2345 = vcmp.eq.s32.totalorder %v2228, %v156
        %vm2346 = vcmp.eq.s32.totalorder %v2229, %v155
        %vm2347 = vcmp.eq.s32.totalorder %v2229, %v156
        %vm2348 = vcmp.eq.s32.totalorder %v2230, %v155
        %vm2349 = vcmp.eq.s32.totalorder %v2230, %v156
        %vm2350 = vcmp.eq.s32.totalorder %v2231, %v155
        %vm2351 = vcmp.eq.s32.totalorder %v2231, %v156
        %vm2352 = vcmp.eq.s32.totalorder %v2232, %v155
        %vm2353 = vcmp.eq.s32.totalorder %v2232, %v156
        %vm2354 = vcmp.eq.s32.totalorder %v2233, %v155
        %vm2355 = vcmp.eq.s32.totalorder %v2233, %v156
        %vm2356 = vcmp.eq.s32.totalorder %v2234, %v155
        %vm2357 = vcmp.eq.s32.totalorder %v2234, %v156
        %vm2358 = vcmp.eq.s32.totalorder %v2235, %v155
        %vm2359 = vcmp.eq.s32.totalorder %v2235, %v156
        %vm2360 = vcmp.eq.s32.totalorder %v2236, %v155
        %vm2361 = vcmp.eq.s32.totalorder %v2236, %v156
        %vm2362 = vcmp.eq.s32.totalorder %v2237, %v155
        %vm2363 = vcmp.eq.s32.totalorder %v2237, %v156
        %vm2364 = vcmp.eq.s32.totalorder %v2238, %v155
        %vm2365 = vcmp.eq.s32.totalorder %v2238, %v156
        %vm2366 = vcmp.eq.s32.totalorder %v2239, %v155
        %vm2367 = vcmp.eq.s32.totalorder %v2239, %v156
        %v2368 = vsel %vm2240, 1e+30, %v1982
        %v2369 = vsel %vm2241, 1e+30, %v1983
        %v2370 = vsel %vm2242, 1e+30, %v1984
        %v2371 = vsel %vm2243, 1e+30, %v1985
        %v2372 = vsel %vm2244, 1e+30, %v1986
        %v2373 = vsel %vm2245, 1e+30, %v1987
        %v2374 = vsel %vm2246, 1e+30, %v1988
        %v2375 = vsel %vm2247, 1e+30, %v1989
        %v2376 = vsel %vm2248, 1e+30, %v1990
        %v2377 = vsel %vm2249, 1e+30, %v1991
        %v2378 = vsel %vm2250, 1e+30, %v1992
        %v2379 = vsel %vm2251, 1e+30, %v1993
        %v2380 = vsel %vm2252, 1e+30, %v1994
        %v2381 = vsel %vm2253, 1e+30, %v1995
        %v2382 = vsel %vm2254, 1e+30, %v1996
        %v2383 = vsel %vm2255, 1e+30, %v1997
        %v2384 = vsel %vm2256, 1e+30, %v1998
        %v2385 = vsel %vm2257, 1e+30, %v1999
        %v2386 = vsel %vm2258, 1e+30, %v2000
        %v2387 = vsel %vm2259, 1e+30, %v2001
        %v2388 = vsel %vm2260, 1e+30, %v2002
        %v2389 = vsel %vm2261, 1e+30, %v2003
        %v2390 = vsel %vm2262, 1e+30, %v2004
        %v2391 = vsel %vm2263, 1e+30, %v2005
        %v2392 = vsel %vm2264, 1e+30, %v2006
        %v2393 = vsel %vm2265, 1e+30, %v2007
        %v2394 = vsel %vm2266, 1e+30, %v2008
        %v2395 = vsel %vm2267, 1e+30, %v2009
        %v2396 = vsel %vm2268, 1e+30, %v2010
        %v2397 = vsel %vm2269, 1e+30, %v2011
        %v2398 = vsel %vm2270, 1e+30, %v2012
        %v2399 = vsel %vm2271, 1e+30, %v2013
        %v2400 = vsel %vm2272, 1e+30, %v2014
        %v2401 = vsel %vm2273, 1e+30, %v2015
        %v2402 = vsel %vm2274, 1e+30, %v2016
        %v2403 = vsel %vm2275, 1e+30, %v2017
        %v2404 = vsel %vm2276, 1e+30, %v2018
        %v2405 = vsel %vm2277, 1e+30, %v2019
        %v2406 = vsel %vm2278, 1e+30, %v2020
        %v2407 = vsel %vm2279, 1e+30, %v2021
        %v2408 = vsel %vm2280, 1e+30, %v2022
        %v2409 = vsel %vm2281, 1e+30, %v2023
        %v2410 = vsel %vm2282, 1e+30, %v2024
        %v2411 = vsel %vm2283, 1e+30, %v2025
        %v2412 = vsel %vm2284, 1e+30, %v2026
        %v2413 = vsel %vm2285, 1e+30, %v2027
        %v2414 = vsel %vm2286, 1e+30, %v2028
        %v2415 = vsel %vm2287, 1e+30, %v2029
        %v2416 = vsel %vm2288, 1e+30, %v2030
        %v2417 = vsel %vm2289, 1e+30, %v2031
        %v2418 = vsel %vm2290, 1e+30, %v2032
        %v2419 = vsel %vm2291, 1e+30, %v2033
        %v2420 = vsel %vm2292, 1e+30, %v2034
        %v2421 = vsel %vm2293, 1e+30, %v2035
        %v2422 = vsel %vm2294, 1e+30, %v2036
        %v2423 = vsel %vm2295, 1e+30, %v2037
        %v2424 = vsel %vm2296, 1e+30, %v2038
        %v2425 = vsel %vm2297, 1e+30, %v2039
        %v2426 = vsel %vm2298, 1e+30, %v2040
        %v2427 = vsel %vm2299, 1e+30, %v2041
        %v2428 = vsel %vm2300, 1e+30, %v2042
        %v2429 = vsel %vm2301, 1e+30, %v2043
        %v2430 = vsel %vm2302, 1e+30, %v2044
        %v2431 = vsel %vm2303, 1e+30, %v2045
        %v2432 = vsel %vm2304, 1e+30, %v2046
        %v2433 = vsel %vm2305, 1e+30, %v2047
        %v2434 = vsel %vm2306, 1e+30, %v2048
        %v2435 = vsel %vm2307, 1e+30, %v2049
        %v2436 = vsel %vm2308, 1e+30, %v2050
        %v2437 = vsel %vm2309, 1e+30, %v2051
        %v2438 = vsel %vm2310, 1e+30, %v2052
        %v2439 = vsel %vm2311, 1e+30, %v2053
        %v2440 = vsel %vm2312, 1e+30, %v2054
        %v2441 = vsel %vm2313, 1e+30, %v2055
        %v2442 = vsel %vm2314, 1e+30, %v2056
        %v2443 = vsel %vm2315, 1e+30, %v2057
        %v2444 = vsel %vm2316, 1e+30, %v2058
        %v2445 = vsel %vm2317, 1e+30, %v2059
        %v2446 = vsel %vm2318, 1e+30, %v2060
        %v2447 = vsel %vm2319, 1e+30, %v2061
        %v2448 = vsel %vm2320, 1e+30, %v2062
        %v2449 = vsel %vm2321, 1e+30, %v2063
        %v2450 = vsel %vm2322, 1e+30, %v2064
        %v2451 = vsel %vm2323, 1e+30, %v2065
        %v2452 = vsel %vm2324, 1e+30, %v2066
        %v2453 = vsel %vm2325, 1e+30, %v2067
        %v2454 = vsel %vm2326, 1e+30, %v2068
        %v2455 = vsel %vm2327, 1e+30, %v2069
        %v2456 = vsel %vm2328, 1e+30, %v2070
        %v2457 = vsel %vm2329, 1e+30, %v2071
        %v2458 = vsel %vm2330, 1e+30, %v2072
        %v2459 = vsel %vm2331, 1e+30, %v2073
        %v2460 = vsel %vm2332, 1e+30, %v2074
        %v2461 = vsel %vm2333, 1e+30, %v2075
        %v2462 = vsel %vm2334, 1e+30, %v2076
        %v2463 = vsel %vm2335, 1e+30, %v2077
        %v2464 = vsel %vm2336, 1e+30, %v2078
        %v2465 = vsel %vm2337, 1e+30, %v2079
        %v2466 = vsel %vm2338, 1e+30, %v2080
        %v2467 = vsel %vm2339, 1e+30, %v2081
        %v2468 = vsel %vm2340, 1e+30, %v2082
        %v2469 = vsel %vm2341, 1e+30, %v2083
        %v2470 = vsel %vm2342, 1e+30, %v2084
        %v2471 = vsel %vm2343, 1e+30, %v2085
        %v2472 = vsel %vm2344, 1e+30, %v2086
        %v2473 = vsel %vm2345, 1e+30, %v2087
        %v2474 = vsel %vm2346, 1e+30, %v2088
        %v2475 = vsel %vm2347, 1e+30, %v2089
        %v2476 = vsel %vm2348, 1e+30, %v2090
        %v2477 = vsel %vm2349, 1e+30, %v2091
        %v2478 = vsel %vm2350, 1e+30, %v2092
        %v2479 = vsel %vm2351, 1e+30, %v2093
        %v2480 = vsel %vm2352, 1e+30, %v2094
        %v2481 = vsel %vm2353, 1e+30, %v2095
        %v2482 = vsel %vm2354, 1e+30, %v2096
        %v2483 = vsel %vm2355, 1e+30, %v2097
        %v2484 = vsel %vm2356, 1e+30, %v2098
        %v2485 = vsel %vm2357, 1e+30, %v2099
        %v2486 = vsel %vm2358, 1e+30, %v2100
        %v2487 = vsel %vm2359, 1e+30, %v2101
        %v2488 = vsel %vm2360, 1e+30, %v2102
        %v2489 = vsel %vm2361, 1e+30, %v2103
        %v2490 = vsel %vm2362, 1e+30, %v2104
        %v2491 = vsel %vm2363, 1e+30, %v2105
        %v2492 = vsel %vm2364, 1e+30, %v2106
        %v2493 = vsel %vm2365, 1e+30, %v2107
        %v2494 = vsel %vm2366, 1e+30, %v2108
        %v2495 = vsel %vm2367, 1e+30, %v2109
        %v2496 = vadd.f32 %v2368, 1.0
        %v2497 = vadd.f32 %v2369, 1.0
        %v2498 = vadd.f32 %v2370, 1.0
        %v2499 = vadd.f32 %v2371, 1.0
        %v2500 = vadd.f32 %v2372, 1.0
        %v2501 = vadd.f32 %v2373, 1.0
        %v2502 = vadd.f32 %v2374, 1.0
        %v2503 = vadd.f32 %v2375, 1.0
        %v2504 = vadd.f32 %v2376, 1.0
        %v2505 = vadd.f32 %v2377, 1.0
        %v2506 = vadd.f32 %v2378, 1.0
        %v2507 = vadd.f32 %v2379, 1.0
        %v2508 = vadd.f32 %v2380, 1.0
        %v2509 = vadd.f32 %v2381, 1.0
        %v2510 = vadd.f32 %v2382, 1.0
        %v2511 = vadd.f32 %v2383, 1.0
        %v2512 = vadd.f32 %v2384, 1.0
        %v2513 = vadd.f32 %v2385, 1.0
        %v2514 = vadd.f32 %v2386, 1.0
        %v2515 = vadd.f32 %v2387, 1.0
        %v2516 = vadd.f32 %v2388, 1.0
        %v2517 = vadd.f32 %v2389, 1.0
        %v2518 = vadd.f32 %v2390, 1.0
        %v2519 = vadd.f32 %v2391, 1.0
        %v2520 = vadd.f32 %v2392, 1.0
        %v2521 = vadd.f32 %v2393, 1.0
        %v2522 = vadd.f32 %v2394, 1.0
        %v2523 = vadd.f32 %v2395, 1.0
        %v2524 = vadd.f32 %v2396, 1.0
        %v2525 = vadd.f32 %v2397, 1.0
        %v2526 = vadd.f32 %v2398, 1.0
        %v2527 = vadd.f32 %v2399, 1.0
        %v2528 = vadd.f32 %v2400, 1.0
        %v2529 = vadd.f32 %v2401, 1.0
        %v2530 = vadd.f32 %v2402, 1.0
        %v2531 = vadd.f32 %v2403, 1.0
        %v2532 = vadd.f32 %v2404, 1.0
        %v2533 = vadd.f32 %v2405, 1.0
        %v2534 = vadd.f32 %v2406, 1.0
        %v2535 = vadd.f32 %v2407, 1.0
        %v2536 = vadd.f32 %v2408, 1.0
        %v2537 = vadd.f32 %v2409, 1.0
        %v2538 = vadd.f32 %v2410, 1.0
        %v2539 = vadd.f32 %v2411, 1.0
        %v2540 = vadd.f32 %v2412, 1.0
        %v2541 = vadd.f32 %v2413, 1.0
        %v2542 = vadd.f32 %v2414, 1.0
        %v2543 = vadd.f32 %v2415, 1.0
        %v2544 = vadd.f32 %v2416, 1.0
        %v2545 = vadd.f32 %v2417, 1.0
        %v2546 = vadd.f32 %v2418, 1.0
        %v2547 = vadd.f32 %v2419, 1.0
        %v2548 = vadd.f32 %v2420, 1.0
        %v2549 = vadd.f32 %v2421, 1.0
        %v2550 = vadd.f32 %v2422, 1.0
        %v2551 = vadd.f32 %v2423, 1.0
        %v2552 = vadd.f32 %v2424, 1.0
        %v2553 = vadd.f32 %v2425, 1.0
        %v2554 = vadd.f32 %v2426, 1.0
        %v2555 = vadd.f32 %v2427, 1.0
        %v2556 = vadd.f32 %v2428, 1.0
        %v2557 = vadd.f32 %v2429, 1.0
        %v2558 = vadd.f32 %v2430, 1.0
        %v2559 = vadd.f32 %v2431, 1.0
        %v2560 = vadd.f32 %v2432, 1.0
        %v2561 = vadd.f32 %v2433, 1.0
        %v2562 = vadd.f32 %v2434, 1.0
        %v2563 = vadd.f32 %v2435, 1.0
        %v2564 = vadd.f32 %v2436, 1.0
        %v2565 = vadd.f32 %v2437, 1.0
        %v2566 = vadd.f32 %v2438, 1.0
        %v2567 = vadd.f32 %v2439, 1.0
        %v2568 = vadd.f32 %v2440, 1.0
        %v2569 = vadd.f32 %v2441, 1.0
        %v2570 = vadd.f32 %v2442, 1.0
        %v2571 = vadd.f32 %v2443, 1.0
        %v2572 = vadd.f32 %v2444, 1.0
        %v2573 = vadd.f32 %v2445, 1.0
        %v2574 = vadd.f32 %v2446, 1.0
        %v2575 = vadd.f32 %v2447, 1.0
        %v2576 = vadd.f32 %v2448, 1.0
        %v2577 = vadd.f32 %v2449, 1.0
        %v2578 = vadd.f32 %v2450, 1.0
        %v2579 = vadd.f32 %v2451, 1.0
        %v2580 = vadd.f32 %v2452, 1.0
        %v2581 = vadd.f32 %v2453, 1.0
        %v2582 = vadd.f32 %v2454, 1.0
        %v2583 = vadd.f32 %v2455, 1.0
        %v2584 = vadd.f32 %v2456, 1.0
        %v2585 = vadd.f32 %v2457, 1.0
        %v2586 = vadd.f32 %v2458, 1.0
        %v2587 = vadd.f32 %v2459, 1.0
        %v2588 = vadd.f32 %v2460, 1.0
        %v2589 = vadd.f32 %v2461, 1.0
        %v2590 = vadd.f32 %v2462, 1.0
        %v2591 = vadd.f32 %v2463, 1.0
        %v2592 = vadd.f32 %v2464, 1.0
        %v2593 = vadd.f32 %v2465, 1.0
        %v2594 = vadd.f32 %v2466, 1.0
        %v2595 = vadd.f32 %v2467, 1.0
        %v2596 = vadd.f32 %v2468, 1.0
        %v2597 = vadd.f32 %v2469, 1.0
        %v2598 = vadd.f32 %v2470, 1.0
        %v2599 = vadd.f32 %v2471, 1.0
        %v2600 = vadd.f32 %v2472, 1.0
        %v2601 = vadd.f32 %v2473, 1.0
        %v2602 = vadd.f32 %v2474, 1.0
        %v2603 = vadd.f32 %v2475, 1.0
        %v2604 = vadd.f32 %v2476, 1.0
        %v2605 = vadd.f32 %v2477, 1.0
        %v2606 = vadd.f32 %v2478, 1.0
        %v2607 = vadd.f32 %v2479, 1.0
        %v2608 = vadd.f32 %v2480, 1.0
        %v2609 = vadd.f32 %v2481, 1.0
        %v2610 = vadd.f32 %v2482, 1.0
        %v2611 = vadd.f32 %v2483, 1.0
        %v2612 = vadd.f32 %v2484, 1.0
        %v2613 = vadd.f32 %v2485, 1.0
        %v2614 = vadd.f32 %v2486, 1.0
        %v2615 = vadd.f32 %v2487, 1.0
        %v2616 = vadd.f32 %v2488, 1.0
        %v2617 = vadd.f32 %v2489, 1.0
        %v2618 = vadd.f32 %v2490, 1.0
        %v2619 = vadd.f32 %v2491, 1.0
        %v2620 = vadd.f32 %v2492, 1.0
        %v2621 = vadd.f32 %v2493, 1.0
        %v2622 = vadd.f32 %v2494, 1.0
        %v2623 = vadd.f32 %v2495, 1.0
        %v2752 = vand.u32 %v2496, 4294966784
        %v2753 = vand.u32 %v2497, 4294966784
        %v2754 = vand.u32 %v2498, 4294966784
        %v2755 = vand.u32 %v2499, 4294966784
        %v2756 = vand.u32 %v2500, 4294966784
        %v2757 = vand.u32 %v2501, 4294966784
        %v2758 = vand.u32 %v2502, 4294966784
        %v2759 = vand.u32 %v2503, 4294966784
        %v2760 = vand.u32 %v2504, 4294966784
        %v2761 = vand.u32 %v2505, 4294966784
        %v2762 = vand.u32 %v2506, 4294966784
        %v2763 = vand.u32 %v2507, 4294966784
        %v2764 = vand.u32 %v2508, 4294966784
        %v2765 = vand.u32 %v2509, 4294966784
        %v2766 = vand.u32 %v2510, 4294966784
        %v2767 = vand.u32 %v2511, 4294966784
        %v2768 = vand.u32 %v2512, 4294966784
        %v2769 = vand.u32 %v2513, 4294966784
        %v2770 = vand.u32 %v2514, 4294966784
        %v2771 = vand.u32 %v2515, 4294966784
        %v2772 = vand.u32 %v2516, 4294966784
        %v2773 = vand.u32 %v2517, 4294966784
        %v2774 = vand.u32 %v2518, 4294966784
        %v2775 = vand.u32 %v2519, 4294966784
        %v2776 = vand.u32 %v2520, 4294966784
        %v2777 = vand.u32 %v2521, 4294966784
        %v2778 = vand.u32 %v2522, 4294966784
        %v2779 = vand.u32 %v2523, 4294966784
        %v2780 = vand.u32 %v2524, 4294966784
        %v2781 = vand.u32 %v2525, 4294966784
        %v2782 = vand.u32 %v2526, 4294966784
        %v2783 = vand.u32 %v2527, 4294966784
        %v2784 = vand.u32 %v2528, 4294966784
        %v2785 = vand.u32 %v2529, 4294966784
        %v2786 = vand.u32 %v2530, 4294966784
        %v2787 = vand.u32 %v2531, 4294966784
        %v2788 = vand.u32 %v2532, 4294966784
        %v2789 = vand.u32 %v2533, 4294966784
        %v2790 = vand.u32 %v2534, 4294966784
        %v2791 = vand.u32 %v2535, 4294966784
        %v2792 = vand.u32 %v2536, 4294966784
        %v2793 = vand.u32 %v2537, 4294966784
        %v2794 = vand.u32 %v2538, 4294966784
        %v2795 = vand.u32 %v2539, 4294966784
        %v2796 = vand.u32 %v2540, 4294966784
        %v2797 = vand.u32 %v2541, 4294966784
        %v2798 = vand.u32 %v2542, 4294966784
        %v2799 = vand.u32 %v2543, 4294966784
        %v2800 = vand.u32 %v2544, 4294966784
        %v2801 = vand.u32 %v2545, 4294966784
        %v2802 = vand.u32 %v2546, 4294966784
        %v2803 = vand.u32 %v2547, 4294966784
        %v2804 = vand.u32 %v2548, 4294966784
        %v2805 = vand.u32 %v2549, 4294966784
        %v2806 = vand.u32 %v2550, 4294966784
        %v2807 = vand.u32 %v2551, 4294966784
        %v2808 = vand.u32 %v2552, 4294966784
        %v2809 = vand.u32 %v2553, 4294966784
        %v2810 = vand.u32 %v2554, 4294966784
        %v2811 = vand.u32 %v2555, 4294966784
        %v2812 = vand.u32 %v2556, 4294966784
        %v2813 = vand.u32 %v2557, 4294966784
        %v2814 = vand.u32 %v2558, 4294966784
        %v2815 = vand.u32 %v2559, 4294966784
        %v2816 = vand.u32 %v2560, 4294966784
        %v2817 = vand.u32 %v2561, 4294966784
        %v2818 = vand.u32 %v2562, 4294966784
        %v2819 = vand.u32 %v2563, 4294966784
        %v2820 = vand.u32 %v2564, 4294966784
        %v2821 = vand.u32 %v2565, 4294966784
        %v2822 = vand.u32 %v2566, 4294966784
        %v2823 = vand.u32 %v2567, 4294966784
        %v2824 = vand.u32 %v2568, 4294966784
        %v2825 = vand.u32 %v2569, 4294966784
        %v2826 = vand.u32 %v2570, 4294966784
        %v2827 = vand.u32 %v2571, 4294966784
        %v2828 = vand.u32 %v2572, 4294966784
        %v2829 = vand.u32 %v2573, 4294966784
        %v2830 = vand.u32 %v2574, 4294966784
        %v2831 = vand.u32 %v2575, 4294966784
        %v2832 = vand.u32 %v2576, 4294966784
        %v2833 = vand.u32 %v2577, 4294966784
        %v2834 = vand.u32 %v2578, 4294966784
        %v2835 = vand.u32 %v2579, 4294966784
        %v2836 = vand.u32 %v2580, 4294966784
        %v2837 = vand.u32 %v2581, 4294966784
        %v2838 = vand.u32 %v2582, 4294966784
        %v2839 = vand.u32 %v2583, 4294966784
        %v2840 = vand.u32 %v2584, 4294966784
        %v2841 = vand.u32 %v2585, 4294966784
        %v2842 = vand.u32 %v2586, 4294966784
        %v2843 = vand.u32 %v2587, 4294966784
        %v2844 = vand.u32 %v2588, 4294966784
        %v2845 = vand.u32 %v2589, 4294966784
        %v2846 = vand.u32 %v2590, 4294966784
        %v2847 = vand.u32 %v2591, 4294966784
        %v2848 = vand.u32 %v2592, 4294966784
        %v2849 = vand.u32 %v2593, 4294966784
        %v2850 = vand.u32 %v2594, 4294966784
        %v2851 = vand.u32 %v2595, 4294966784
        %v2852 = vand.u32 %v2596, 4294966784
        %v2853 = vand.u32 %v2597, 4294966784
        %v2854 = vand.u32 %v2598, 4294966784
        %v2855 = vand.u32 %v2599, 4294966784
        %v2856 = vand.u32 %v2600, 4294966784
        %v2857 = vand.u32 %v2601, 4294966784
        %v2858 = vand.u32 %v2602, 4294966784
        %v2859 = vand.u32 %v2603, 4294966784
        %v2860 = vand.u32 %v2604, 4294966784
        %v2861 = vand.u32 %v2605, 4294966784
        %v2862 = vand.u32 %v2606, 4294966784
        %v2863 = vand.u32 %v2607, 4294966784
        %v2864 = vand.u32 %v2608, 4294966784
        %v2865 = vand.u32 %v2609, 4294966784
        %v2866 = vand.u32 %v2610, 4294966784
        %v2867 = vand.u32 %v2611, 4294966784
        %v2868 = vand.u32 %v2612, 4294966784
        %v2869 = vand.u32 %v2613, 4294966784
        %v2870 = vand.u32 %v2614, 4294966784
        %v2871 = vand.u32 %v2615, 4294966784
        %v2872 = vand.u32 %v2616, 4294966784
        %v2873 = vand.u32 %v2617, 4294966784
        %v2874 = vand.u32 %v2618, 4294966784
        %v2875 = vand.u32 %v2619, 4294966784
        %v2876 = vand.u32 %v2620, 4294966784
        %v2877 = vand.u32 %v2621, 4294966784
        %v2878 = vand.u32 %v2622, 4294966784
        %v2879 = vand.u32 %v2623, 4294966784
        %v2880 = vor.u32 %v2752, %v2176
        %v2881 = vor.u32 %v2753, %v2176
        %v2882 = vor.u32 %v2754, %v2177
        %v2883 = vor.u32 %v2755, %v2177
        %v2884 = vor.u32 %v2756, %v2178
        %v2885 = vor.u32 %v2757, %v2178
        %v2886 = vor.u32 %v2758, %v2179
        %v2887 = vor.u32 %v2759, %v2179
        %v2888 = vor.u32 %v2760, %v2180
        %v2889 = vor.u32 %v2761, %v2180
        %v2890 = vor.u32 %v2762, %v2181
        %v2891 = vor.u32 %v2763, %v2181
        %v2892 = vor.u32 %v2764, %v2182
        %v2893 = vor.u32 %v2765, %v2182
        %v2894 = vor.u32 %v2766, %v2183
        %v2895 = vor.u32 %v2767, %v2183
        %v2896 = vor.u32 %v2768, %v2184
        %v2897 = vor.u32 %v2769, %v2184
        %v2898 = vor.u32 %v2770, %v2185
        %v2899 = vor.u32 %v2771, %v2185
        %v2900 = vor.u32 %v2772, %v2186
        %v2901 = vor.u32 %v2773, %v2186
        %v2902 = vor.u32 %v2774, %v2187
        %v2903 = vor.u32 %v2775, %v2187
        %v2904 = vor.u32 %v2776, %v2188
        %v2905 = vor.u32 %v2777, %v2188
        %v2906 = vor.u32 %v2778, %v2189
        %v2907 = vor.u32 %v2779, %v2189
        %v2908 = vor.u32 %v2780, %v2190
        %v2909 = vor.u32 %v2781, %v2190
        %v2910 = vor.u32 %v2782, %v2191
        %v2911 = vor.u32 %v2783, %v2191
        %v2912 = vor.u32 %v2784, %v2192
        %v2913 = vor.u32 %v2785, %v2192
        %v2914 = vor.u32 %v2786, %v2193
        %v2915 = vor.u32 %v2787, %v2193
        %v2916 = vor.u32 %v2788, %v2194
        %v2917 = vor.u32 %v2789, %v2194
        %v2918 = vor.u32 %v2790, %v2195
        %v2919 = vor.u32 %v2791, %v2195
        %v2920 = vor.u32 %v2792, %v2196
        %v2921 = vor.u32 %v2793, %v2196
        %v2922 = vor.u32 %v2794, %v2197
        %v2923 = vor.u32 %v2795, %v2197
        %v2924 = vor.u32 %v2796, %v2198
        %v2925 = vor.u32 %v2797, %v2198
        %v2926 = vor.u32 %v2798, %v2199
        %v2927 = vor.u32 %v2799, %v2199
        %v2928 = vor.u32 %v2800, %v2200
        %v2929 = vor.u32 %v2801, %v2200
        %v2930 = vor.u32 %v2802, %v2201
        %v2931 = vor.u32 %v2803, %v2201
        %v2932 = vor.u32 %v2804, %v2202
        %v2933 = vor.u32 %v2805, %v2202
        %v2934 = vor.u32 %v2806, %v2203
        %v2935 = vor.u32 %v2807, %v2203
        %v2936 = vor.u32 %v2808, %v2204
        %v2937 = vor.u32 %v2809, %v2204
        %v2938 = vor.u32 %v2810, %v2205
        %v2939 = vor.u32 %v2811, %v2205
        %v2940 = vor.u32 %v2812, %v2206
        %v2941 = vor.u32 %v2813, %v2206
        %v2942 = vor.u32 %v2814, %v2207
        %v2943 = vor.u32 %v2815, %v2207
        %v2944 = vor.u32 %v2816, %v2208
        %v2945 = vor.u32 %v2817, %v2208
        %v2946 = vor.u32 %v2818, %v2209
        %v2947 = vor.u32 %v2819, %v2209
        %v2948 = vor.u32 %v2820, %v2210
        %v2949 = vor.u32 %v2821, %v2210
        %v2950 = vor.u32 %v2822, %v2211
        %v2951 = vor.u32 %v2823, %v2211
        %v2952 = vor.u32 %v2824, %v2212
        %v2953 = vor.u32 %v2825, %v2212
        %v2954 = vor.u32 %v2826, %v2213
        %v2955 = vor.u32 %v2827, %v2213
        %v2956 = vor.u32 %v2828, %v2214
        %v2957 = vor.u32 %v2829, %v2214
        %v2958 = vor.u32 %v2830, %v2215
        %v2959 = vor.u32 %v2831, %v2215
        %v2960 = vor.u32 %v2832, %v2216
        %v2961 = vor.u32 %v2833, %v2216
        %v2962 = vor.u32 %v2834, %v2217
        %v2963 = vor.u32 %v2835, %v2217
        %v2964 = vor.u32 %v2836, %v2218
        %v2965 = vor.u32 %v2837, %v2218
        %v2966 = vor.u32 %v2838, %v2219
        %v2967 = vor.u32 %v2839, %v2219
        %v2968 = vor.u32 %v2840, %v2220
        %v2969 = vor.u32 %v2841, %v2220
        %v2970 = vor.u32 %v2842, %v2221
        %v2971 = vor.u32 %v2843, %v2221
        %v2972 = vor.u32 %v2844, %v2222
        %v2973 = vor.u32 %v2845, %v2222
        %v2974 = vor.u32 %v2846, %v2223
        %v2975 = vor.u32 %v2847, %v2223
        %v2976 = vor.u32 %v2848, %v2224
        %v2977 = vor.u32 %v2849, %v2224
        %v2978 = vor.u32 %v2850, %v2225
        %v2979 = vor.u32 %v2851, %v2225
        %v2980 = vor.u32 %v2852, %v2226
        %v2981 = vor.u32 %v2853, %v2226
        %v2982 = vor.u32 %v2854, %v2227
        %v2983 = vor.u32 %v2855, %v2227
        %v2984 = vor.u32 %v2856, %v2228
        %v2985 = vor.u32 %v2857, %v2228
        %v2986 = vor.u32 %v2858, %v2229
        %v2987 = vor.u32 %v2859, %v2229
        %v2988 = vor.u32 %v2860, %v2230
        %v2989 = vor.u32 %v2861, %v2230
        %v2990 = vor.u32 %v2862, %v2231
        %v2991 = vor.u32 %v2863, %v2231
        %v2992 = vor.u32 %v2864, %v2232
        %v2993 = vor.u32 %v2865, %v2232
        %v2994 = vor.u32 %v2866, %v2233
        %v2995 = vor.u32 %v2867, %v2233
        %v2996 = vor.u32 %v2868, %v2234
        %v2997 = vor.u32 %v2869, %v2234
        %v2998 = vor.u32 %v2870, %v2235
        %v2999 = vor.u32 %v2871, %v2235
        %v3000 = vor.u32 %v2872, %v2236
        %v3001 = vor.u32 %v2873, %v2236
        %v3002 = vor.u32 %v2874, %v2237
        %v3003 = vor.u32 %v2875, %v2237
        %v3004 = vor.u32 %v2876, %v2238
        %v3005 = vor.u32 %v2877, %v2238
        %v3006 = vor.u32 %v2878, %v2239
        %v3007 = vor.u32 %v2879, %v2239
        %v3136 = vmin.f32 %v2880, %v2884
        %v3137 = vmin.f32 %v2882, %v2886
        %v3138 = vmin.f32 %v3136, %v2888
        %v3139 = vmin.f32 %v3137, %v2890
        %v3140 = vmin.f32 %v3138, %v2892
        %v3141 = vmin.f32 %v3139, %v2894
        %v3142 = vmin.f32 %v3140, %v2896
        %v3143 = vmin.f32 %v3141, %v2898
        %v3144 = vmin.f32 %v3142, %v2900
        %v3145 = vmin.f32 %v3143, %v2902
        %v3146 = vmin.f32 %v3144, %v2904
        %v3147 = vmin.f32 %v3145, %v2906
        %v3148 = vmin.f32 %v3146, %v2908
        %v3149 = vmin.f32 %v3147, %v2910
        %v3150 = vmin.f32 %v3148, %v2912
        %v3151 = vmin.f32 %v3149, %v2914
        %v3152 = vmin.f32 %v3150, %v2916
        %v3153 = vmin.f32 %v3151, %v2918
        %v3154 = vmin.f32 %v3152, %v2920
        %v3155 = vmin.f32 %v3153, %v2922
        %v3156 = vmin.f32 %v3154, %v2924
        %v3157 = vmin.f32 %v3155, %v2926
        %v3158 = vmin.f32 %v3156, %v2928
        %v3159 = vmin.f32 %v3157, %v2930
        %v3160 = vmin.f32 %v3158, %v2932
        %v3161 = vmin.f32 %v3159, %v2934
        %v3162 = vmin.f32 %v3160, %v2936
        %v3163 = vmin.f32 %v3161, %v2938
        %v3164 = vmin.f32 %v3162, %v2940
        %v3165 = vmin.f32 %v3163, %v2942
        %v3166 = vmin.f32 %v3164, %v2944
        %v3167 = vmin.f32 %v3165, %v2946
        %v3168 = vmin.f32 %v3166, %v2948
        %v3169 = vmin.f32 %v3167, %v2950
        %v3170 = vmin.f32 %v3168, %v2952
        %v3171 = vmin.f32 %v3169, %v2954
        %v3172 = vmin.f32 %v3170, %v2956
        %v3173 = vmin.f32 %v3171, %v2958
        %v3174 = vmin.f32 %v3172, %v2960
        %v3175 = vmin.f32 %v3173, %v2962
        %v3176 = vmin.f32 %v3174, %v2964
        %v3177 = vmin.f32 %v3175, %v2966
        %v3178 = vmin.f32 %v3176, %v2968
        %v3179 = vmin.f32 %v3177, %v2970
        %v3180 = vmin.f32 %v3178, %v2972
        %v3181 = vmin.f32 %v3179, %v2974
        %v3182 = vmin.f32 %v3180, %v2976
        %v3183 = vmin.f32 %v3181, %v2978
        %v3184 = vmin.f32 %v3182, %v2980
        %v3185 = vmin.f32 %v3183, %v2982
        %v3186 = vmin.f32 %v3184, %v2984
        %v3187 = vmin.f32 %v3185, %v2986
        %v3188 = vmin.f32 %v3186, %v2988
        %v3189 = vmin.f32 %v3187, %v2990
        %v3190 = vmin.f32 %v3188, %v2992
        %v3191 = vmin.f32 %v3189, %v2994
        %v3192 = vmin.f32 %v3190, %v2996
        %v3193 = vmin.f32 %v3191, %v2998
        %v3194 = vmin.f32 %v3192, %v3000
        %v3195 = vmin.f32 %v3193, %v3002
        %v3196 = vmin.f32 %v3194, %v3004
        %v3197 = vmin.f32 %v3195, %v3006
        %v3198 = vmin.f32 %v3196, %v3197
        %v3199 = vrot.slane %v3198, 4
        %v3200 = vmin.f32 %v3198, %v3199
        %v3201 = vrot.slane %v3200, 2
        %v3202 = vmin.f32 %v3200, %v3201
        %v3203 = vrot.slane %v3202, 1
        %v3204 = vmin.f32 %v3202, %v3203
        %v3205 = vmin.f32 %v2881, %v2885
        %v3206 = vmin.f32 %v2883, %v2887
        %v3207 = vmin.f32 %v3205, %v2889
        %v3208 = vmin.f32 %v3206, %v2891
        %v3209 = vmin.f32 %v3207, %v2893
        %v3210 = vmin.f32 %v3208, %v2895
        %v3211 = vmin.f32 %v3209, %v2897
        %v3212 = vmin.f32 %v3210, %v2899
        %v3213 = vmin.f32 %v3211, %v2901
        %v3214 = vmin.f32 %v3212, %v2903
        %v3215 = vmin.f32 %v3213, %v2905
        %v3216 = vmin.f32 %v3214, %v2907
        %v3217 = vmin.f32 %v3215, %v2909
        %v3218 = vmin.f32 %v3216, %v2911
        %v3219 = vmin.f32 %v3217, %v2913
        %v3220 = vmin.f32 %v3218, %v2915
        %v3221 = vmin.f32 %v3219, %v2917
        %v3222 = vmin.f32 %v3220, %v2919
        %v3223 = vmin.f32 %v3221, %v2921
        %v3224 = vmin.f32 %v3222, %v2923
        %v3225 = vmin.f32 %v3223, %v2925
        %v3226 = vmin.f32 %v3224, %v2927
        %v3227 = vmin.f32 %v3225, %v2929
        %v3228 = vmin.f32 %v3226, %v2931
        %v3229 = vmin.f32 %v3227, %v2933
        %v3230 = vmin.f32 %v3228, %v2935
        %v3231 = vmin.f32 %v3229, %v2937
        %v3232 = vmin.f32 %v3230, %v2939
        %v3233 = vmin.f32 %v3231, %v2941
        %v3234 = vmin.f32 %v3232, %v2943
        %v3235 = vmin.f32 %v3233, %v2945
        %v3236 = vmin.f32 %v3234, %v2947
        %v3237 = vmin.f32 %v3235, %v2949
        %v3238 = vmin.f32 %v3236, %v2951
        %v3239 = vmin.f32 %v3237, %v2953
        %v3240 = vmin.f32 %v3238, %v2955
        %v3241 = vmin.f32 %v3239, %v2957
        %v3242 = vmin.f32 %v3240, %v2959
        %v3243 = vmin.f32 %v3241, %v2961
        %v3244 = vmin.f32 %v3242, %v2963
        %v3245 = vmin.f32 %v3243, %v2965
        %v3246 = vmin.f32 %v3244, %v2967
        %v3247 = vmin.f32 %v3245, %v2969
        %v3248 = vmin.f32 %v3246, %v2971
        %v3249 = vmin.f32 %v3247, %v2973
        %v3250 = vmin.f32 %v3248, %v2975
        %v3251 = vmin.f32 %v3249, %v2977
        %v3252 = vmin.f32 %v3250, %v2979
        %v3253 = vmin.f32 %v3251, %v2981
        %v3254 = vmin.f32 %v3252, %v2983
        %v3255 = vmin.f32 %v3253, %v2985
        %v3256 = vmin.f32 %v3254, %v2987
        %v3257 = vmin.f32 %v3255, %v2989
        %v3258 = vmin.f32 %v3256, %v2991
        %v3259 = vmin.f32 %v3257, %v2993
        %v3260 = vmin.f32 %v3258, %v2995
        %v3261 = vmin.f32 %v3259, %v2997
        %v3262 = vmin.f32 %v3260, %v2999
        %v3263 = vmin.f32 %v3261, %v3001
        %v3264 = vmin.f32 %v3262, %v3003
        %v3265 = vmin.f32 %v3263, %v3005
        %v3266 = vmin.f32 %v3264, %v3007
        %v3267 = vmin.f32 %v3265, %v3266
        %v3268 = vrot.slane %v3267, 4
        %v3269 = vmin.f32 %v3267, %v3268
        %v3270 = vrot.slane %v3269, 2
        %v3271 = vmin.f32 %v3269, %v3270
        %v3272 = vrot.slane %v3271, 1
        %v3273 = vmin.f32 %v3271, %v3272
        %vm3274 = vcmp.gt.f32.partialorder %v2880, %v3204
        %vm3275 = vcmp.gt.f32.partialorder %v2881, %v3273
        %vm3276 = vcmp.gt.f32.partialorder %v2882, %v3204
        %vm3277 = vcmp.gt.f32.partialorder %v2883, %v3273
        %vm3278 = vcmp.gt.f32.partialorder %v2884, %v3204
        %vm3279 = vcmp.gt.f32.partialorder %v2885, %v3273
        %vm3280 = vcmp.gt.f32.partialorder %v2886, %v3204
        %vm3281 = vcmp.gt.f32.partialorder %v2887, %v3273
        %vm3282 = vcmp.gt.f32.partialorder %v2888, %v3204
        %vm3283 = vcmp.gt.f32.partialorder %v2889, %v3273
        %vm3284 = vcmp.gt.f32.partialorder %v2890, %v3204
        %vm3285 = vcmp.gt.f32.partialorder %v2891, %v3273
        %vm3286 = vcmp.gt.f32.partialorder %v2892, %v3204
        %vm3287 = vcmp.gt.f32.partialorder %v2893, %v3273
        %vm3288 = vcmp.gt.f32.partialorder %v2894, %v3204
        %vm3289 = vcmp.gt.f32.partialorder %v2895, %v3273
        %vm3290 = vcmp.gt.f32.partialorder %v2896, %v3204
        %vm3291 = vcmp.gt.f32.partialorder %v2897, %v3273
        %vm3292 = vcmp.gt.f32.partialorder %v2898, %v3204
        %vm3293 = vcmp.gt.f32.partialorder %v2899, %v3273
        %vm3294 = vcmp.gt.f32.partialorder %v2900, %v3204
        %vm3295 = vcmp.gt.f32.partialorder %v2901, %v3273
        %vm3296 = vcmp.gt.f32.partialorder %v2902, %v3204
        %vm3297 = vcmp.gt.f32.partialorder %v2903, %v3273
        %vm3298 = vcmp.gt.f32.partialorder %v2904, %v3204
        %vm3299 = vcmp.gt.f32.partialorder %v2905, %v3273
        %vm3300 = vcmp.gt.f32.partialorder %v2906, %v3204
        %vm3301 = vcmp.gt.f32.partialorder %v2907, %v3273
        %vm3302 = vcmp.gt.f32.partialorder %v2908, %v3204
        %vm3303 = vcmp.gt.f32.partialorder %v2909, %v3273
        %vm3304 = vcmp.gt.f32.partialorder %v2910, %v3204
        %vm3305 = vcmp.gt.f32.partialorder %v2911, %v3273
        %vm3306 = vcmp.gt.f32.partialorder %v2912, %v3204
        %vm3307 = vcmp.gt.f32.partialorder %v2913, %v3273
        %vm3308 = vcmp.gt.f32.partialorder %v2914, %v3204
        %vm3309 = vcmp.gt.f32.partialorder %v2915, %v3273
        %vm3310 = vcmp.gt.f32.partialorder %v2916, %v3204
        %vm3311 = vcmp.gt.f32.partialorder %v2917, %v3273
        %vm3312 = vcmp.gt.f32.partialorder %v2918, %v3204
        %vm3313 = vcmp.gt.f32.partialorder %v2919, %v3273
        %vm3314 = vcmp.gt.f32.partialorder %v2920, %v3204
        %vm3315 = vcmp.gt.f32.partialorder %v2921, %v3273
        %vm3316 = vcmp.gt.f32.partialorder %v2922, %v3204
        %vm3317 = vcmp.gt.f32.partialorder %v2923, %v3273
        %vm3318 = vcmp.gt.f32.partialorder %v2924, %v3204
        %vm3319 = vcmp.gt.f32.partialorder %v2925, %v3273
        %vm3320 = vcmp.gt.f32.partialorder %v2926, %v3204
        %vm3321 = vcmp.gt.f32.partialorder %v2927, %v3273
        %vm3322 = vcmp.gt.f32.partialorder %v2928, %v3204
        %vm3323 = vcmp.gt.f32.partialorder %v2929, %v3273
        %vm3324 = vcmp.gt.f32.partialorder %v2930, %v3204
        %vm3325 = vcmp.gt.f32.partialorder %v2931, %v3273
        %vm3326 = vcmp.gt.f32.partialorder %v2932, %v3204
        %vm3327 = vcmp.gt.f32.partialorder %v2933, %v3273
        %vm3328 = vcmp.gt.f32.partialorder %v2934, %v3204
        %vm3329 = vcmp.gt.f32.partialorder %v2935, %v3273
        %vm3330 = vcmp.gt.f32.partialorder %v2936, %v3204
        %vm3331 = vcmp.gt.f32.partialorder %v2937, %v3273
        %vm3332 = vcmp.gt.f32.partialorder %v2938, %v3204
        %vm3333 = vcmp.gt.f32.partialorder %v2939, %v3273
        %vm3334 = vcmp.gt.f32.partialorder %v2940, %v3204
        %vm3335 = vcmp.gt.f32.partialorder %v2941, %v3273
        %vm3336 = vcmp.gt.f32.partialorder %v2942, %v3204
        %vm3337 = vcmp.gt.f32.partialorder %v2943, %v3273
        %vm3338 = vcmp.gt.f32.partialorder %v2944, %v3204
        %vm3339 = vcmp.gt.f32.partialorder %v2945, %v3273
        %vm3340 = vcmp.gt.f32.partialorder %v2946, %v3204
        %vm3341 = vcmp.gt.f32.partialorder %v2947, %v3273
        %vm3342 = vcmp.gt.f32.partialorder %v2948, %v3204
        %vm3343 = vcmp.gt.f32.partialorder %v2949, %v3273
        %vm3344 = vcmp.gt.f32.partialorder %v2950, %v3204
        %vm3345 = vcmp.gt.f32.partialorder %v2951, %v3273
        %vm3346 = vcmp.gt.f32.partialorder %v2952, %v3204
        %vm3347 = vcmp.gt.f32.partialorder %v2953, %v3273
        %vm3348 = vcmp.gt.f32.partialorder %v2954, %v3204
        %vm3349 = vcmp.gt.f32.partialorder %v2955, %v3273
        %vm3350 = vcmp.gt.f32.partialorder %v2956, %v3204
        %vm3351 = vcmp.gt.f32.partialorder %v2957, %v3273
        %vm3352 = vcmp.gt.f32.partialorder %v2958, %v3204
        %vm3353 = vcmp.gt.f32.partialorder %v2959, %v3273
        %vm3354 = vcmp.gt.f32.partialorder %v2960, %v3204
        %vm3355 = vcmp.gt.f32.partialorder %v2961, %v3273
        %vm3356 = vcmp.gt.f32.partialorder %v2962, %v3204
        %vm3357 = vcmp.gt.f32.partialorder %v2963, %v3273
        %vm3358 = vcmp.gt.f32.partialorder %v2964, %v3204
        %vm3359 = vcmp.gt.f32.partialorder %v2965, %v3273
        %vm3360 = vcmp.gt.f32.partialorder %v2966, %v3204
        %vm3361 = vcmp.gt.f32.partialorder %v2967, %v3273
        %vm3362 = vcmp.gt.f32.partialorder %v2968, %v3204
        %vm3363 = vcmp.gt.f32.partialorder %v2969, %v3273
        %vm3364 = vcmp.gt.f32.partialorder %v2970, %v3204
        %vm3365 = vcmp.gt.f32.partialorder %v2971, %v3273
        %vm3366 = vcmp.gt.f32.partialorder %v2972, %v3204
        %vm3367 = vcmp.gt.f32.partialorder %v2973, %v3273
        %vm3368 = vcmp.gt.f32.partialorder %v2974, %v3204
        %vm3369 = vcmp.gt.f32.partialorder %v2975, %v3273
        %vm3370 = vcmp.gt.f32.partialorder %v2976, %v3204
        %vm3371 = vcmp.gt.f32.partialorder %v2977, %v3273
        %vm3372 = vcmp.gt.f32.partialorder %v2978, %v3204
        %vm3373 = vcmp.gt.f32.partialorder %v2979, %v3273
        %vm3374 = vcmp.gt.f32.partialorder %v2980, %v3204
        %vm3375 = vcmp.gt.f32.partialorder %v2981, %v3273
        %vm3376 = vcmp.gt.f32.partialorder %v2982, %v3204
        %vm3377 = vcmp.gt.f32.partialorder %v2983, %v3273
        %vm3378 = vcmp.gt.f32.partialorder %v2984, %v3204
        %vm3379 = vcmp.gt.f32.partialorder %v2985, %v3273
        %vm3380 = vcmp.gt.f32.partialorder %v2986, %v3204
        %vm3381 = vcmp.gt.f32.partialorder %v2987, %v3273
        %vm3382 = vcmp.gt.f32.partialorder %v2988, %v3204
        %vm3383 = vcmp.gt.f32.partialorder %v2989, %v3273
        %vm3384 = vcmp.gt.f32.partialorder %v2990, %v3204
        %vm3385 = vcmp.gt.f32.partialorder %v2991, %v3273
        %vm3386 = vcmp.gt.f32.partialorder %v2992, %v3204
        %vm3387 = vcmp.gt.f32.partialorder %v2993, %v3273
        %vm3388 = vcmp.gt.f32.partialorder %v2994, %v3204
        %vm3389 = vcmp.gt.f32.partialorder %v2995, %v3273
        %vm3390 = vcmp.gt.f32.partialorder %v2996, %v3204
        %vm3391 = vcmp.gt.f32.partialorder %v2997, %v3273
        %vm3392 = vcmp.gt.f32.partialorder %v2998, %v3204
        %vm3393 = vcmp.gt.f32.partialorder %v2999, %v3273
        %vm3394 = vcmp.gt.f32.partialorder %v3000, %v3204
        %vm3395 = vcmp.gt.f32.partialorder %v3001, %v3273
        %vm3396 = vcmp.gt.f32.partialorder %v3002, %v3204
        %vm3397 = vcmp.gt.f32.partialorder %v3003, %v3273
        %vm3398 = vcmp.gt.f32.partialorder %v3004, %v3204
        %vm3399 = vcmp.gt.f32.partialorder %v3005, %v3273
        %vm3400 = vcmp.gt.f32.partialorder %v3006, %v3204
        %vm3401 = vcmp.gt.f32.partialorder %v3007, %v3273
        %v3402 = vsel %vm3274, %v2880, 3e+38
        %v3403 = vsel %vm3275, %v2881, 3e+38
        %v3404 = vsel %vm3276, %v2882, 3e+38
        %v3405 = vsel %vm3277, %v2883, 3e+38
        %v3406 = vsel %vm3278, %v2884, 3e+38
        %v3407 = vsel %vm3279, %v2885, 3e+38
        %v3408 = vsel %vm3280, %v2886, 3e+38
        %v3409 = vsel %vm3281, %v2887, 3e+38
        %v3410 = vsel %vm3282, %v2888, 3e+38
        %v3411 = vsel %vm3283, %v2889, 3e+38
        %v3412 = vsel %vm3284, %v2890, 3e+38
        %v3413 = vsel %vm3285, %v2891, 3e+38
        %v3414 = vsel %vm3286, %v2892, 3e+38
        %v3415 = vsel %vm3287, %v2893, 3e+38
        %v3416 = vsel %vm3288, %v2894, 3e+38
        %v3417 = vsel %vm3289, %v2895, 3e+38
        %v3418 = vsel %vm3290, %v2896, 3e+38
        %v3419 = vsel %vm3291, %v2897, 3e+38
        %v3420 = vsel %vm3292, %v2898, 3e+38
        %v3421 = vsel %vm3293, %v2899, 3e+38
        %v3422 = vsel %vm3294, %v2900, 3e+38
        %v3423 = vsel %vm3295, %v2901, 3e+38
        %v3424 = vsel %vm3296, %v2902, 3e+38
        %v3425 = vsel %vm3297, %v2903, 3e+38
        %v3426 = vsel %vm3298, %v2904, 3e+38
        %v3427 = vsel %vm3299, %v2905, 3e+38
        %v3428 = vsel %vm3300, %v2906, 3e+38
        %v3429 = vsel %vm3301, %v2907, 3e+38
        %v3430 = vsel %vm3302, %v2908, 3e+38
        %v3431 = vsel %vm3303, %v2909, 3e+38
        %v3432 = vsel %vm3304, %v2910, 3e+38
        %v3433 = vsel %vm3305, %v2911, 3e+38
        %v3434 = vsel %vm3306, %v2912, 3e+38
        %v3435 = vsel %vm3307, %v2913, 3e+38
        %v3436 = vsel %vm3308, %v2914, 3e+38
        %v3437 = vsel %vm3309, %v2915, 3e+38
        %v3438 = vsel %vm3310, %v2916, 3e+38
        %v3439 = vsel %vm3311, %v2917, 3e+38
        %v3440 = vsel %vm3312, %v2918, 3e+38
        %v3441 = vsel %vm3313, %v2919, 3e+38
        %v3442 = vsel %vm3314, %v2920, 3e+38
        %v3443 = vsel %vm3315, %v2921, 3e+38
        %v3444 = vsel %vm3316, %v2922, 3e+38
        %v3445 = vsel %vm3317, %v2923, 3e+38
        %v3446 = vsel %vm3318, %v2924, 3e+38
        %v3447 = vsel %vm3319, %v2925, 3e+38
        %v3448 = vsel %vm3320, %v2926, 3e+38
        %v3449 = vsel %vm3321, %v2927, 3e+38
        %v3450 = vsel %vm3322, %v2928, 3e+38
        %v3451 = vsel %vm3323, %v2929, 3e+38
        %v3452 = vsel %vm3324, %v2930, 3e+38
        %v3453 = vsel %vm3325, %v2931, 3e+38
        %v3454 = vsel %vm3326, %v2932, 3e+38
        %v3455 = vsel %vm3327, %v2933, 3e+38
        %v3456 = vsel %vm3328, %v2934, 3e+38
        %v3457 = vsel %vm3329, %v2935, 3e+38
        %v3458 = vsel %vm3330, %v2936, 3e+38
        %v3459 = vsel %vm3331, %v2937, 3e+38
        %v3460 = vsel %vm3332, %v2938, 3e+38
        %v3461 = vsel %vm3333, %v2939, 3e+38
        %v3462 = vsel %vm3334, %v2940, 3e+38
        %v3463 = vsel %vm3335, %v2941, 3e+38
        %v3464 = vsel %vm3336, %v2942, 3e+38
        %v3465 = vsel %vm3337, %v2943, 3e+38
        %v3466 = vsel %vm3338, %v2944, 3e+38
        %v3467 = vsel %vm3339, %v2945, 3e+38
        %v3468 = vsel %vm3340, %v2946, 3e+38
        %v3469 = vsel %vm3341, %v2947, 3e+38
        %v3470 = vsel %vm3342, %v2948, 3e+38
        %v3471 = vsel %vm3343, %v2949, 3e+38
        %v3472 = vsel %vm3344, %v2950, 3e+38
        %v3473 = vsel %vm3345, %v2951, 3e+38
        %v3474 = vsel %vm3346, %v2952, 3e+38
        %v3475 = vsel %vm3347, %v2953, 3e+38
        %v3476 = vsel %vm3348, %v2954, 3e+38
        %v3477 = vsel %vm3349, %v2955, 3e+38
        %v3478 = vsel %vm3350, %v2956, 3e+38
        %v3479 = vsel %vm3351, %v2957, 3e+38
        %v3480 = vsel %vm3352, %v2958, 3e+38
        %v3481 = vsel %vm3353, %v2959, 3e+38
        %v3482 = vsel %vm3354, %v2960, 3e+38
        %v3483 = vsel %vm3355, %v2961, 3e+38
        %v3484 = vsel %vm3356, %v2962, 3e+38
        %v3485 = vsel %vm3357, %v2963, 3e+38
        %v3486 = vsel %vm3358, %v2964, 3e+38
        %v3487 = vsel %vm3359, %v2965, 3e+38
        %v3488 = vsel %vm3360, %v2966, 3e+38
        %v3489 = vsel %vm3361, %v2967, 3e+38
        %v3490 = vsel %vm3362, %v2968, 3e+38
        %v3491 = vsel %vm3363, %v2969, 3e+38
        %v3492 = vsel %vm3364, %v2970, 3e+38
        %v3493 = vsel %vm3365, %v2971, 3e+38
        %v3494 = vsel %vm3366, %v2972, 3e+38
        %v3495 = vsel %vm3367, %v2973, 3e+38
        %v3496 = vsel %vm3368, %v2974, 3e+38
        %v3497 = vsel %vm3369, %v2975, 3e+38
        %v3498 = vsel %vm3370, %v2976, 3e+38
        %v3499 = vsel %vm3371, %v2977, 3e+38
        %v3500 = vsel %vm3372, %v2978, 3e+38
        %v3501 = vsel %vm3373, %v2979, 3e+38
        %v3502 = vsel %vm3374, %v2980, 3e+38
        %v3503 = vsel %vm3375, %v2981, 3e+38
        %v3504 = vsel %vm3376, %v2982, 3e+38
        %v3505 = vsel %vm3377, %v2983, 3e+38
        %v3506 = vsel %vm3378, %v2984, 3e+38
        %v3507 = vsel %vm3379, %v2985, 3e+38
        %v3508 = vsel %vm3380, %v2986, 3e+38
        %v3509 = vsel %vm3381, %v2987, 3e+38
        %v3510 = vsel %vm3382, %v2988, 3e+38
        %v3511 = vsel %vm3383, %v2989, 3e+38
        %v3512 = vsel %vm3384, %v2990, 3e+38
        %v3513 = vsel %vm3385, %v2991, 3e+38
        %v3514 = vsel %vm3386, %v2992, 3e+38
        %v3515 = vsel %vm3387, %v2993, 3e+38
        %v3516 = vsel %vm3388, %v2994, 3e+38
        %v3517 = vsel %vm3389, %v2995, 3e+38
        %v3518 = vsel %vm3390, %v2996, 3e+38
        %v3519 = vsel %vm3391, %v2997, 3e+38
        %v3520 = vsel %vm3392, %v2998, 3e+38
        %v3521 = vsel %vm3393, %v2999, 3e+38
        %v3522 = vsel %vm3394, %v3000, 3e+38
        %v3523 = vsel %vm3395, %v3001, 3e+38
        %v3524 = vsel %vm3396, %v3002, 3e+38
        %v3525 = vsel %vm3397, %v3003, 3e+38
        %v3526 = vsel %vm3398, %v3004, 3e+38
        %v3527 = vsel %vm3399, %v3005, 3e+38
        %v3528 = vsel %vm3400, %v3006, 3e+38
        %v3529 = vsel %vm3401, %v3007, 3e+38
        %v3530 = vmin.f32 %v3402, %v3406
        %v3531 = vmin.f32 %v3404, %v3408
        %v3532 = vmin.f32 %v3530, %v3410
        %v3533 = vmin.f32 %v3531, %v3412
        %v3534 = vmin.f32 %v3532, %v3414
        %v3535 = vmin.f32 %v3533, %v3416
        %v3536 = vmin.f32 %v3534, %v3418
        %v3537 = vmin.f32 %v3535, %v3420
        %v3538 = vmin.f32 %v3536, %v3422
        %v3539 = vmin.f32 %v3537, %v3424
        %v3540 = vmin.f32 %v3538, %v3426
        %v3541 = vmin.f32 %v3539, %v3428
        %v3542 = vmin.f32 %v3540, %v3430
        %v3543 = vmin.f32 %v3541, %v3432
        %v3544 = vmin.f32 %v3542, %v3434
        %v3545 = vmin.f32 %v3543, %v3436
        %v3546 = vmin.f32 %v3544, %v3438
        %v3547 = vmin.f32 %v3545, %v3440
        %v3548 = vmin.f32 %v3546, %v3442
        %v3549 = vmin.f32 %v3547, %v3444
        %v3550 = vmin.f32 %v3548, %v3446
        %v3551 = vmin.f32 %v3549, %v3448
        %v3552 = vmin.f32 %v3550, %v3450
        %v3553 = vmin.f32 %v3551, %v3452
        %v3554 = vmin.f32 %v3552, %v3454
        %v3555 = vmin.f32 %v3553, %v3456
        %v3556 = vmin.f32 %v3554, %v3458
        %v3557 = vmin.f32 %v3555, %v3460
        %v3558 = vmin.f32 %v3556, %v3462
        %v3559 = vmin.f32 %v3557, %v3464
        %v3560 = vmin.f32 %v3558, %v3466
        %v3561 = vmin.f32 %v3559, %v3468
        %v3562 = vmin.f32 %v3560, %v3470
        %v3563 = vmin.f32 %v3561, %v3472
        %v3564 = vmin.f32 %v3562, %v3474
        %v3565 = vmin.f32 %v3563, %v3476
        %v3566 = vmin.f32 %v3564, %v3478
        %v3567 = vmin.f32 %v3565, %v3480
        %v3568 = vmin.f32 %v3566, %v3482
        %v3569 = vmin.f32 %v3567, %v3484
        %v3570 = vmin.f32 %v3568, %v3486
        %v3571 = vmin.f32 %v3569, %v3488
        %v3572 = vmin.f32 %v3570, %v3490
        %v3573 = vmin.f32 %v3571, %v3492
        %v3574 = vmin.f32 %v3572, %v3494
        %v3575 = vmin.f32 %v3573, %v3496
        %v3576 = vmin.f32 %v3574, %v3498
        %v3577 = vmin.f32 %v3575, %v3500
        %v3578 = vmin.f32 %v3576, %v3502
        %v3579 = vmin.f32 %v3577, %v3504
        %v3580 = vmin.f32 %v3578, %v3506
        %v3581 = vmin.f32 %v3579, %v3508
        %v3582 = vmin.f32 %v3580, %v3510
        %v3583 = vmin.f32 %v3581, %v3512
        %v3584 = vmin.f32 %v3582, %v3514
        %v3585 = vmin.f32 %v3583, %v3516
        %v3586 = vmin.f32 %v3584, %v3518
        %v3587 = vmin.f32 %v3585, %v3520
        %v3588 = vmin.f32 %v3586, %v3522
        %v3589 = vmin.f32 %v3587, %v3524
        %v3590 = vmin.f32 %v3588, %v3526
        %v3591 = vmin.f32 %v3589, %v3528
        %v3592 = vmin.f32 %v3590, %v3591
        %v3593 = vrot.slane %v3592, 4
        %v3594 = vmin.f32 %v3592, %v3593
        %v3595 = vrot.slane %v3594, 2
        %v3596 = vmin.f32 %v3594, %v3595
        %v3597 = vrot.slane %v3596, 1
        %v3598 = vmin.f32 %v3596, %v3597
        %v3599 = vmin.f32 %v3403, %v3407
        %v3600 = vmin.f32 %v3405, %v3409
        %v3601 = vmin.f32 %v3599, %v3411
        %v3602 = vmin.f32 %v3600, %v3413
        %v3603 = vmin.f32 %v3601, %v3415
        %v3604 = vmin.f32 %v3602, %v3417
        %v3605 = vmin.f32 %v3603, %v3419
        %v3606 = vmin.f32 %v3604, %v3421
        %v3607 = vmin.f32 %v3605, %v3423
        %v3608 = vmin.f32 %v3606, %v3425
        %v3609 = vmin.f32 %v3607, %v3427
        %v3610 = vmin.f32 %v3608, %v3429
        %v3611 = vmin.f32 %v3609, %v3431
        %v3612 = vmin.f32 %v3610, %v3433
        %v3613 = vmin.f32 %v3611, %v3435
        %v3614 = vmin.f32 %v3612, %v3437
        %v3615 = vmin.f32 %v3613, %v3439
        %v3616 = vmin.f32 %v3614, %v3441
        %v3617 = vmin.f32 %v3615, %v3443
        %v3618 = vmin.f32 %v3616, %v3445
        %v3619 = vmin.f32 %v3617, %v3447
        %v3620 = vmin.f32 %v3618, %v3449
        %v3621 = vmin.f32 %v3619, %v3451
        %v3622 = vmin.f32 %v3620, %v3453
        %v3623 = vmin.f32 %v3621, %v3455
        %v3624 = vmin.f32 %v3622, %v3457
        %v3625 = vmin.f32 %v3623, %v3459
        %v3626 = vmin.f32 %v3624, %v3461
        %v3627 = vmin.f32 %v3625, %v3463
        %v3628 = vmin.f32 %v3626, %v3465
        %v3629 = vmin.f32 %v3627, %v3467
        %v3630 = vmin.f32 %v3628, %v3469
        %v3631 = vmin.f32 %v3629, %v3471
        %v3632 = vmin.f32 %v3630, %v3473
        %v3633 = vmin.f32 %v3631, %v3475
        %v3634 = vmin.f32 %v3632, %v3477
        %v3635 = vmin.f32 %v3633, %v3479
        %v3636 = vmin.f32 %v3634, %v3481
        %v3637 = vmin.f32 %v3635, %v3483
        %v3638 = vmin.f32 %v3636, %v3485
        %v3639 = vmin.f32 %v3637, %v3487
        %v3640 = vmin.f32 %v3638, %v3489
        %v3641 = vmin.f32 %v3639, %v3491
        %v3642 = vmin.f32 %v3640, %v3493
        %v3643 = vmin.f32 %v3641, %v3495
        %v3644 = vmin.f32 %v3642, %v3497
        %v3645 = vmin.f32 %v3643, %v3499
        %v3646 = vmin.f32 %v3644, %v3501
        %v3647 = vmin.f32 %v3645, %v3503
        %v3648 = vmin.f32 %v3646, %v3505
        %v3649 = vmin.f32 %v3647, %v3507
        %v3650 = vmin.f32 %v3648, %v3509
        %v3651 = vmin.f32 %v3649, %v3511
        %v3652 = vmin.f32 %v3650, %v3513
        %v3653 = vmin.f32 %v3651, %v3515
        %v3654 = vmin.f32 %v3652, %v3517
        %v3655 = vmin.f32 %v3653, %v3519
        %v3656 = vmin.f32 %v3654, %v3521
        %v3657 = vmin.f32 %v3655, %v3523
        %v3658 = vmin.f32 %v3656, %v3525
        %v3659 = vmin.f32 %v3657, %v3527
        %v3660 = vmin.f32 %v3658, %v3529
        %v3661 = vmin.f32 %v3659, %v3660
        %v3662 = vrot.slane %v3661, 4
        %v3663 = vmin.f32 %v3661, %v3662
        %v3664 = vrot.slane %v3663, 2
        %v3665 = vmin.f32 %v3663, %v3664
        %v3666 = vrot.slane %v3665, 1
        %v3667 = vmin.f32 %v3665, %v3666
        %vm3668 = vcmp.gt.f32.partialorder %v2880, %v3598
        %vm3669 = vcmp.gt.f32.partialorder %v2881, %v3667
        %vm3670 = vcmp.gt.f32.partialorder %v2882, %v3598
        %vm3671 = vcmp.gt.f32.partialorder %v2883, %v3667
        %vm3672 = vcmp.gt.f32.partialorder %v2884, %v3598
        %vm3673 = vcmp.gt.f32.partialorder %v2885, %v3667
        %vm3674 = vcmp.gt.f32.partialorder %v2886, %v3598
        %vm3675 = vcmp.gt.f32.partialorder %v2887, %v3667
        %vm3676 = vcmp.gt.f32.partialorder %v2888, %v3598
        %vm3677 = vcmp.gt.f32.partialorder %v2889, %v3667
        %vm3678 = vcmp.gt.f32.partialorder %v2890, %v3598
        %vm3679 = vcmp.gt.f32.partialorder %v2891, %v3667
        %vm3680 = vcmp.gt.f32.partialorder %v2892, %v3598
        %vm3681 = vcmp.gt.f32.partialorder %v2893, %v3667
        %vm3682 = vcmp.gt.f32.partialorder %v2894, %v3598
        %vm3683 = vcmp.gt.f32.partialorder %v2895, %v3667
        %vm3684 = vcmp.gt.f32.partialorder %v2896, %v3598
        %vm3685 = vcmp.gt.f32.partialorder %v2897, %v3667
        %vm3686 = vcmp.gt.f32.partialorder %v2898, %v3598
        %vm3687 = vcmp.gt.f32.partialorder %v2899, %v3667
        %vm3688 = vcmp.gt.f32.partialorder %v2900, %v3598
        %vm3689 = vcmp.gt.f32.partialorder %v2901, %v3667
        %vm3690 = vcmp.gt.f32.partialorder %v2902, %v3598
        %vm3691 = vcmp.gt.f32.partialorder %v2903, %v3667
        %vm3692 = vcmp.gt.f32.partialorder %v2904, %v3598
        %vm3693 = vcmp.gt.f32.partialorder %v2905, %v3667
        %vm3694 = vcmp.gt.f32.partialorder %v2906, %v3598
        %vm3695 = vcmp.gt.f32.partialorder %v2907, %v3667
        %vm3696 = vcmp.gt.f32.partialorder %v2908, %v3598
        %vm3697 = vcmp.gt.f32.partialorder %v2909, %v3667
        %vm3698 = vcmp.gt.f32.partialorder %v2910, %v3598
        %vm3699 = vcmp.gt.f32.partialorder %v2911, %v3667
        %vm3700 = vcmp.gt.f32.partialorder %v2912, %v3598
        %vm3701 = vcmp.gt.f32.partialorder %v2913, %v3667
        %vm3702 = vcmp.gt.f32.partialorder %v2914, %v3598
        %vm3703 = vcmp.gt.f32.partialorder %v2915, %v3667
        %vm3704 = vcmp.gt.f32.partialorder %v2916, %v3598
        %vm3705 = vcmp.gt.f32.partialorder %v2917, %v3667
        %vm3706 = vcmp.gt.f32.partialorder %v2918, %v3598
        %vm3707 = vcmp.gt.f32.partialorder %v2919, %v3667
        %vm3708 = vcmp.gt.f32.partialorder %v2920, %v3598
        %vm3709 = vcmp.gt.f32.partialorder %v2921, %v3667
        %vm3710 = vcmp.gt.f32.partialorder %v2922, %v3598
        %vm3711 = vcmp.gt.f32.partialorder %v2923, %v3667
        %vm3712 = vcmp.gt.f32.partialorder %v2924, %v3598
        %vm3713 = vcmp.gt.f32.partialorder %v2925, %v3667
        %vm3714 = vcmp.gt.f32.partialorder %v2926, %v3598
        %vm3715 = vcmp.gt.f32.partialorder %v2927, %v3667
        %vm3716 = vcmp.gt.f32.partialorder %v2928, %v3598
        %vm3717 = vcmp.gt.f32.partialorder %v2929, %v3667
        %vm3718 = vcmp.gt.f32.partialorder %v2930, %v3598
        %vm3719 = vcmp.gt.f32.partialorder %v2931, %v3667
        %vm3720 = vcmp.gt.f32.partialorder %v2932, %v3598
        %vm3721 = vcmp.gt.f32.partialorder %v2933, %v3667
        %vm3722 = vcmp.gt.f32.partialorder %v2934, %v3598
        %vm3723 = vcmp.gt.f32.partialorder %v2935, %v3667
        %vm3724 = vcmp.gt.f32.partialorder %v2936, %v3598
        %vm3725 = vcmp.gt.f32.partialorder %v2937, %v3667
        %vm3726 = vcmp.gt.f32.partialorder %v2938, %v3598
        %vm3727 = vcmp.gt.f32.partialorder %v2939, %v3667
        %vm3728 = vcmp.gt.f32.partialorder %v2940, %v3598
        %vm3729 = vcmp.gt.f32.partialorder %v2941, %v3667
        %vm3730 = vcmp.gt.f32.partialorder %v2942, %v3598
        %vm3731 = vcmp.gt.f32.partialorder %v2943, %v3667
        %vm3732 = vcmp.gt.f32.partialorder %v2944, %v3598
        %vm3733 = vcmp.gt.f32.partialorder %v2945, %v3667
        %vm3734 = vcmp.gt.f32.partialorder %v2946, %v3598
        %vm3735 = vcmp.gt.f32.partialorder %v2947, %v3667
        %vm3736 = vcmp.gt.f32.partialorder %v2948, %v3598
        %vm3737 = vcmp.gt.f32.partialorder %v2949, %v3667
        %vm3738 = vcmp.gt.f32.partialorder %v2950, %v3598
        %vm3739 = vcmp.gt.f32.partialorder %v2951, %v3667
        %vm3740 = vcmp.gt.f32.partialorder %v2952, %v3598
        %vm3741 = vcmp.gt.f32.partialorder %v2953, %v3667
        %vm3742 = vcmp.gt.f32.partialorder %v2954, %v3598
        %vm3743 = vcmp.gt.f32.partialorder %v2955, %v3667
        %vm3744 = vcmp.gt.f32.partialorder %v2956, %v3598
        %vm3745 = vcmp.gt.f32.partialorder %v2957, %v3667
        %vm3746 = vcmp.gt.f32.partialorder %v2958, %v3598
        %vm3747 = vcmp.gt.f32.partialorder %v2959, %v3667
        %vm3748 = vcmp.gt.f32.partialorder %v2960, %v3598
        %vm3749 = vcmp.gt.f32.partialorder %v2961, %v3667
        %vm3750 = vcmp.gt.f32.partialorder %v2962, %v3598
        %vm3751 = vcmp.gt.f32.partialorder %v2963, %v3667
        %vm3752 = vcmp.gt.f32.partialorder %v2964, %v3598
        %vm3753 = vcmp.gt.f32.partialorder %v2965, %v3667
        %vm3754 = vcmp.gt.f32.partialorder %v2966, %v3598
        %vm3755 = vcmp.gt.f32.partialorder %v2967, %v3667
        %vm3756 = vcmp.gt.f32.partialorder %v2968, %v3598
        %vm3757 = vcmp.gt.f32.partialorder %v2969, %v3667
        %vm3758 = vcmp.gt.f32.partialorder %v2970, %v3598
        %vm3759 = vcmp.gt.f32.partialorder %v2971, %v3667
        %vm3760 = vcmp.gt.f32.partialorder %v2972, %v3598
        %vm3761 = vcmp.gt.f32.partialorder %v2973, %v3667
        %vm3762 = vcmp.gt.f32.partialorder %v2974, %v3598
        %vm3763 = vcmp.gt.f32.partialorder %v2975, %v3667
        %vm3764 = vcmp.gt.f32.partialorder %v2976, %v3598
        %vm3765 = vcmp.gt.f32.partialorder %v2977, %v3667
        %vm3766 = vcmp.gt.f32.partialorder %v2978, %v3598
        %vm3767 = vcmp.gt.f32.partialorder %v2979, %v3667
        %vm3768 = vcmp.gt.f32.partialorder %v2980, %v3598
        %vm3769 = vcmp.gt.f32.partialorder %v2981, %v3667
        %vm3770 = vcmp.gt.f32.partialorder %v2982, %v3598
        %vm3771 = vcmp.gt.f32.partialorder %v2983, %v3667
        %vm3772 = vcmp.gt.f32.partialorder %v2984, %v3598
        %vm3773 = vcmp.gt.f32.partialorder %v2985, %v3667
        %vm3774 = vcmp.gt.f32.partialorder %v2986, %v3598
        %vm3775 = vcmp.gt.f32.partialorder %v2987, %v3667
        %vm3776 = vcmp.gt.f32.partialorder %v2988, %v3598
        %vm3777 = vcmp.gt.f32.partialorder %v2989, %v3667
        %vm3778 = vcmp.gt.f32.partialorder %v2990, %v3598
        %vm3779 = vcmp.gt.f32.partialorder %v2991, %v3667
        %vm3780 = vcmp.gt.f32.partialorder %v2992, %v3598
        %vm3781 = vcmp.gt.f32.partialorder %v2993, %v3667
        %vm3782 = vcmp.gt.f32.partialorder %v2994, %v3598
        %vm3783 = vcmp.gt.f32.partialorder %v2995, %v3667
        %vm3784 = vcmp.gt.f32.partialorder %v2996, %v3598
        %vm3785 = vcmp.gt.f32.partialorder %v2997, %v3667
        %vm3786 = vcmp.gt.f32.partialorder %v2998, %v3598
        %vm3787 = vcmp.gt.f32.partialorder %v2999, %v3667
        %vm3788 = vcmp.gt.f32.partialorder %v3000, %v3598
        %vm3789 = vcmp.gt.f32.partialorder %v3001, %v3667
        %vm3790 = vcmp.gt.f32.partialorder %v3002, %v3598
        %vm3791 = vcmp.gt.f32.partialorder %v3003, %v3667
        %vm3792 = vcmp.gt.f32.partialorder %v3004, %v3598
        %vm3793 = vcmp.gt.f32.partialorder %v3005, %v3667
        %vm3794 = vcmp.gt.f32.partialorder %v3006, %v3598
        %vm3795 = vcmp.gt.f32.partialorder %v3007, %v3667
        %v3796 = vsel %vm3668, %v2880, 3e+38
        %v3797 = vsel %vm3669, %v2881, 3e+38
        %v3798 = vsel %vm3670, %v2882, 3e+38
        %v3799 = vsel %vm3671, %v2883, 3e+38
        %v3800 = vsel %vm3672, %v2884, 3e+38
        %v3801 = vsel %vm3673, %v2885, 3e+38
        %v3802 = vsel %vm3674, %v2886, 3e+38
        %v3803 = vsel %vm3675, %v2887, 3e+38
        %v3804 = vsel %vm3676, %v2888, 3e+38
        %v3805 = vsel %vm3677, %v2889, 3e+38
        %v3806 = vsel %vm3678, %v2890, 3e+38
        %v3807 = vsel %vm3679, %v2891, 3e+38
        %v3808 = vsel %vm3680, %v2892, 3e+38
        %v3809 = vsel %vm3681, %v2893, 3e+38
        %v3810 = vsel %vm3682, %v2894, 3e+38
        %v3811 = vsel %vm3683, %v2895, 3e+38
        %v3812 = vsel %vm3684, %v2896, 3e+38
        %v3813 = vsel %vm3685, %v2897, 3e+38
        %v3814 = vsel %vm3686, %v2898, 3e+38
        %v3815 = vsel %vm3687, %v2899, 3e+38
        %v3816 = vsel %vm3688, %v2900, 3e+38
        %v3817 = vsel %vm3689, %v2901, 3e+38
        %v3818 = vsel %vm3690, %v2902, 3e+38
        %v3819 = vsel %vm3691, %v2903, 3e+38
        %v3820 = vsel %vm3692, %v2904, 3e+38
        %v3821 = vsel %vm3693, %v2905, 3e+38
        %v3822 = vsel %vm3694, %v2906, 3e+38
        %v3823 = vsel %vm3695, %v2907, 3e+38
        %v3824 = vsel %vm3696, %v2908, 3e+38
        %v3825 = vsel %vm3697, %v2909, 3e+38
        %v3826 = vsel %vm3698, %v2910, 3e+38
        %v3827 = vsel %vm3699, %v2911, 3e+38
        %v3828 = vsel %vm3700, %v2912, 3e+38
        %v3829 = vsel %vm3701, %v2913, 3e+38
        %v3830 = vsel %vm3702, %v2914, 3e+38
        %v3831 = vsel %vm3703, %v2915, 3e+38
        %v3832 = vsel %vm3704, %v2916, 3e+38
        %v3833 = vsel %vm3705, %v2917, 3e+38
        %v3834 = vsel %vm3706, %v2918, 3e+38
        %v3835 = vsel %vm3707, %v2919, 3e+38
        %v3836 = vsel %vm3708, %v2920, 3e+38
        %v3837 = vsel %vm3709, %v2921, 3e+38
        %v3838 = vsel %vm3710, %v2922, 3e+38
        %v3839 = vsel %vm3711, %v2923, 3e+38
        %v3840 = vsel %vm3712, %v2924, 3e+38
        %v3841 = vsel %vm3713, %v2925, 3e+38
        %v3842 = vsel %vm3714, %v2926, 3e+38
        %v3843 = vsel %vm3715, %v2927, 3e+38
        %v3844 = vsel %vm3716, %v2928, 3e+38
        %v3845 = vsel %vm3717, %v2929, 3e+38
        %v3846 = vsel %vm3718, %v2930, 3e+38
        %v3847 = vsel %vm3719, %v2931, 3e+38
        %v3848 = vsel %vm3720, %v2932, 3e+38
        %v3849 = vsel %vm3721, %v2933, 3e+38
        %v3850 = vsel %vm3722, %v2934, 3e+38
        %v3851 = vsel %vm3723, %v2935, 3e+38
        %v3852 = vsel %vm3724, %v2936, 3e+38
        %v3853 = vsel %vm3725, %v2937, 3e+38
        %v3854 = vsel %vm3726, %v2938, 3e+38
        %v3855 = vsel %vm3727, %v2939, 3e+38
        %v3856 = vsel %vm3728, %v2940, 3e+38
        %v3857 = vsel %vm3729, %v2941, 3e+38
        %v3858 = vsel %vm3730, %v2942, 3e+38
        %v3859 = vsel %vm3731, %v2943, 3e+38
        %v3860 = vsel %vm3732, %v2944, 3e+38
        %v3861 = vsel %vm3733, %v2945, 3e+38
        %v3862 = vsel %vm3734, %v2946, 3e+38
        %v3863 = vsel %vm3735, %v2947, 3e+38
        %v3864 = vsel %vm3736, %v2948, 3e+38
        %v3865 = vsel %vm3737, %v2949, 3e+38
        %v3866 = vsel %vm3738, %v2950, 3e+38
        %v3867 = vsel %vm3739, %v2951, 3e+38
        %v3868 = vsel %vm3740, %v2952, 3e+38
        %v3869 = vsel %vm3741, %v2953, 3e+38
        %v3870 = vsel %vm3742, %v2954, 3e+38
        %v3871 = vsel %vm3743, %v2955, 3e+38
        %v3872 = vsel %vm3744, %v2956, 3e+38
        %v3873 = vsel %vm3745, %v2957, 3e+38
        %v3874 = vsel %vm3746, %v2958, 3e+38
        %v3875 = vsel %vm3747, %v2959, 3e+38
        %v3876 = vsel %vm3748, %v2960, 3e+38
        %v3877 = vsel %vm3749, %v2961, 3e+38
        %v3878 = vsel %vm3750, %v2962, 3e+38
        %v3879 = vsel %vm3751, %v2963, 3e+38
        %v3880 = vsel %vm3752, %v2964, 3e+38
        %v3881 = vsel %vm3753, %v2965, 3e+38
        %v3882 = vsel %vm3754, %v2966, 3e+38
        %v3883 = vsel %vm3755, %v2967, 3e+38
        %v3884 = vsel %vm3756, %v2968, 3e+38
        %v3885 = vsel %vm3757, %v2969, 3e+38
        %v3886 = vsel %vm3758, %v2970, 3e+38
        %v3887 = vsel %vm3759, %v2971, 3e+38
        %v3888 = vsel %vm3760, %v2972, 3e+38
        %v3889 = vsel %vm3761, %v2973, 3e+38
        %v3890 = vsel %vm3762, %v2974, 3e+38
        %v3891 = vsel %vm3763, %v2975, 3e+38
        %v3892 = vsel %vm3764, %v2976, 3e+38
        %v3893 = vsel %vm3765, %v2977, 3e+38
        %v3894 = vsel %vm3766, %v2978, 3e+38
        %v3895 = vsel %vm3767, %v2979, 3e+38
        %v3896 = vsel %vm3768, %v2980, 3e+38
        %v3897 = vsel %vm3769, %v2981, 3e+38
        %v3898 = vsel %vm3770, %v2982, 3e+38
        %v3899 = vsel %vm3771, %v2983, 3e+38
        %v3900 = vsel %vm3772, %v2984, 3e+38
        %v3901 = vsel %vm3773, %v2985, 3e+38
        %v3902 = vsel %vm3774, %v2986, 3e+38
        %v3903 = vsel %vm3775, %v2987, 3e+38
        %v3904 = vsel %vm3776, %v2988, 3e+38
        %v3905 = vsel %vm3777, %v2989, 3e+38
        %v3906 = vsel %vm3778, %v2990, 3e+38
        %v3907 = vsel %vm3779, %v2991, 3e+38
        %v3908 = vsel %vm3780, %v2992, 3e+38
        %v3909 = vsel %vm3781, %v2993, 3e+38
        %v3910 = vsel %vm3782, %v2994, 3e+38
        %v3911 = vsel %vm3783, %v2995, 3e+38
        %v3912 = vsel %vm3784, %v2996, 3e+38
        %v3913 = vsel %vm3785, %v2997, 3e+38
        %v3914 = vsel %vm3786, %v2998, 3e+38
        %v3915 = vsel %vm3787, %v2999, 3e+38
        %v3916 = vsel %vm3788, %v3000, 3e+38
        %v3917 = vsel %vm3789, %v3001, 3e+38
        %v3918 = vsel %vm3790, %v3002, 3e+38
        %v3919 = vsel %vm3791, %v3003, 3e+38
        %v3920 = vsel %vm3792, %v3004, 3e+38
        %v3921 = vsel %vm3793, %v3005, 3e+38
        %v3922 = vsel %vm3794, %v3006, 3e+38
        %v3923 = vsel %vm3795, %v3007, 3e+38
        %v3924 = vmin.f32 %v3796, %v3800
        %v3925 = vmin.f32 %v3798, %v3802
        %v3926 = vmin.f32 %v3924, %v3804
        %v3927 = vmin.f32 %v3925, %v3806
        %v3928 = vmin.f32 %v3926, %v3808
        %v3929 = vmin.f32 %v3927, %v3810
        %v3930 = vmin.f32 %v3928, %v3812
        %v3931 = vmin.f32 %v3929, %v3814
        %v3932 = vmin.f32 %v3930, %v3816
        %v3933 = vmin.f32 %v3931, %v3818
        %v3934 = vmin.f32 %v3932, %v3820
        %v3935 = vmin.f32 %v3933, %v3822
        %v3936 = vmin.f32 %v3934, %v3824
        %v3937 = vmin.f32 %v3935, %v3826
        %v3938 = vmin.f32 %v3936, %v3828
        %v3939 = vmin.f32 %v3937, %v3830
        %v3940 = vmin.f32 %v3938, %v3832
        %v3941 = vmin.f32 %v3939, %v3834
        %v3942 = vmin.f32 %v3940, %v3836
        %v3943 = vmin.f32 %v3941, %v3838
        %v3944 = vmin.f32 %v3942, %v3840
        %v3945 = vmin.f32 %v3943, %v3842
        %v3946 = vmin.f32 %v3944, %v3844
        %v3947 = vmin.f32 %v3945, %v3846
        %v3948 = vmin.f32 %v3946, %v3848
        %v3949 = vmin.f32 %v3947, %v3850
        %v3950 = vmin.f32 %v3948, %v3852
        %v3951 = vmin.f32 %v3949, %v3854
        %v3952 = vmin.f32 %v3950, %v3856
        %v3953 = vmin.f32 %v3951, %v3858
        %v3954 = vmin.f32 %v3952, %v3860
        %v3955 = vmin.f32 %v3953, %v3862
        %v3956 = vmin.f32 %v3954, %v3864
        %v3957 = vmin.f32 %v3955, %v3866
        %v3958 = vmin.f32 %v3956, %v3868
        %v3959 = vmin.f32 %v3957, %v3870
        %v3960 = vmin.f32 %v3958, %v3872
        %v3961 = vmin.f32 %v3959, %v3874
        %v3962 = vmin.f32 %v3960, %v3876
        %v3963 = vmin.f32 %v3961, %v3878
        %v3964 = vmin.f32 %v3962, %v3880
        %v3965 = vmin.f32 %v3963, %v3882
        %v3966 = vmin.f32 %v3964, %v3884
        %v3967 = vmin.f32 %v3965, %v3886
        %v3968 = vmin.f32 %v3966, %v3888
        %v3969 = vmin.f32 %v3967, %v3890
        %v3970 = vmin.f32 %v3968, %v3892
        %v3971 = vmin.f32 %v3969, %v3894
        %v3972 = vmin.f32 %v3970, %v3896
        %v3973 = vmin.f32 %v3971, %v3898
        %v3974 = vmin.f32 %v3972, %v3900
        %v3975 = vmin.f32 %v3973, %v3902
        %v3976 = vmin.f32 %v3974, %v3904
        %v3977 = vmin.f32 %v3975, %v3906
        %v3978 = vmin.f32 %v3976, %v3908
        %v3979 = vmin.f32 %v3977, %v3910
        %v3980 = vmin.f32 %v3978, %v3912
        %v3981 = vmin.f32 %v3979, %v3914
        %v3982 = vmin.f32 %v3980, %v3916
        %v3983 = vmin.f32 %v3981, %v3918
        %v3984 = vmin.f32 %v3982, %v3920
        %v3985 = vmin.f32 %v3983, %v3922
        %v3986 = vmin.f32 %v3984, %v3985
        %v3987 = vrot.slane %v3986, 4
        %v3988 = vmin.f32 %v3986, %v3987
        %v3989 = vrot.slane %v3988, 2
        %v3990 = vmin.f32 %v3988, %v3989
        %v3991 = vrot.slane %v3990, 1
        %v3992 = vmin.f32 %v3990, %v3991
        %v3993 = vmin.f32 %v3797, %v3801
        %v3994 = vmin.f32 %v3799, %v3803
        %v3995 = vmin.f32 %v3993, %v3805
        %v3996 = vmin.f32 %v3994, %v3807
        %v3997 = vmin.f32 %v3995, %v3809
        %v3998 = vmin.f32 %v3996, %v3811
        %v3999 = vmin.f32 %v3997, %v3813
        %v4000 = vmin.f32 %v3998, %v3815
        %v4001 = vmin.f32 %v3999, %v3817
        %v4002 = vmin.f32 %v4000, %v3819
        %v4003 = vmin.f32 %v4001, %v3821
        %v4004 = vmin.f32 %v4002, %v3823
        %v4005 = vmin.f32 %v4003, %v3825
        %v4006 = vmin.f32 %v4004, %v3827
        %v4007 = vmin.f32 %v4005, %v3829
        %v4008 = vmin.f32 %v4006, %v3831
        %v4009 = vmin.f32 %v4007, %v3833
        %v4010 = vmin.f32 %v4008, %v3835
        %v4011 = vmin.f32 %v4009, %v3837
        %v4012 = vmin.f32 %v4010, %v3839
        %v4013 = vmin.f32 %v4011, %v3841
        %v4014 = vmin.f32 %v4012, %v3843
        %v4015 = vmin.f32 %v4013, %v3845
        %v4016 = vmin.f32 %v4014, %v3847
        %v4017 = vmin.f32 %v4015, %v3849
        %v4018 = vmin.f32 %v4016, %v3851
        %v4019 = vmin.f32 %v4017, %v3853
        %v4020 = vmin.f32 %v4018, %v3855
        %v4021 = vmin.f32 %v4019, %v3857
        %v4022 = vmin.f32 %v4020, %v3859
        %v4023 = vmin.f32 %v4021, %v3861
        %v4024 = vmin.f32 %v4022, %v3863
        %v4025 = vmin.f32 %v4023, %v3865
        %v4026 = vmin.f32 %v4024, %v3867
        %v4027 = vmin.f32 %v4025, %v3869
        %v4028 = vmin.f32 %v4026, %v3871
        %v4029 = vmin.f32 %v4027, %v3873
        %v4030 = vmin.f32 %v4028, %v3875
        %v4031 = vmin.f32 %v4029, %v3877
        %v4032 = vmin.f32 %v4030, %v3879
        %v4033 = vmin.f32 %v4031, %v3881
        %v4034 = vmin.f32 %v4032, %v3883
        %v4035 = vmin.f32 %v4033, %v3885
        %v4036 = vmin.f32 %v4034, %v3887
        %v4037 = vmin.f32 %v4035, %v3889
        %v4038 = vmin.f32 %v4036, %v3891
        %v4039 = vmin.f32 %v4037, %v3893
        %v4040 = vmin.f32 %v4038, %v3895
        %v4041 = vmin.f32 %v4039, %v3897
        %v4042 = vmin.f32 %v4040, %v3899
        %v4043 = vmin.f32 %v4041, %v3901
        %v4044 = vmin.f32 %v4042, %v3903
        %v4045 = vmin.f32 %v4043, %v3905
        %v4046 = vmin.f32 %v4044, %v3907
        %v4047 = vmin.f32 %v4045, %v3909
        %v4048 = vmin.f32 %v4046, %v3911
        %v4049 = vmin.f32 %v4047, %v3913
        %v4050 = vmin.f32 %v4048, %v3915
        %v4051 = vmin.f32 %v4049, %v3917
        %v4052 = vmin.f32 %v4050, %v3919
        %v4053 = vmin.f32 %v4051, %v3921
        %v4054 = vmin.f32 %v4052, %v3923
        %v4055 = vmin.f32 %v4053, %v4054
        %v4056 = vrot.slane %v4055, 4
        %v4057 = vmin.f32 %v4055, %v4056
        %v4058 = vrot.slane %v4057, 2
        %v4059 = vmin.f32 %v4057, %v4058
        %v4060 = vrot.slane %v4059, 1
        %v4061 = vmin.f32 %v4059, %v4060
        %vm4062 = vcmp.gt.f32.partialorder %v2880, %v3992
        %vm4063 = vcmp.gt.f32.partialorder %v2881, %v4061
        %vm4064 = vcmp.gt.f32.partialorder %v2882, %v3992
        %vm4065 = vcmp.gt.f32.partialorder %v2883, %v4061
        %vm4066 = vcmp.gt.f32.partialorder %v2884, %v3992
        %vm4067 = vcmp.gt.f32.partialorder %v2885, %v4061
        %vm4068 = vcmp.gt.f32.partialorder %v2886, %v3992
        %vm4069 = vcmp.gt.f32.partialorder %v2887, %v4061
        %vm4070 = vcmp.gt.f32.partialorder %v2888, %v3992
        %vm4071 = vcmp.gt.f32.partialorder %v2889, %v4061
        %vm4072 = vcmp.gt.f32.partialorder %v2890, %v3992
        %vm4073 = vcmp.gt.f32.partialorder %v2891, %v4061
        %vm4074 = vcmp.gt.f32.partialorder %v2892, %v3992
        %vm4075 = vcmp.gt.f32.partialorder %v2893, %v4061
        %vm4076 = vcmp.gt.f32.partialorder %v2894, %v3992
        %vm4077 = vcmp.gt.f32.partialorder %v2895, %v4061
        %vm4078 = vcmp.gt.f32.partialorder %v2896, %v3992
        %vm4079 = vcmp.gt.f32.partialorder %v2897, %v4061
        %vm4080 = vcmp.gt.f32.partialorder %v2898, %v3992
        %vm4081 = vcmp.gt.f32.partialorder %v2899, %v4061
        %vm4082 = vcmp.gt.f32.partialorder %v2900, %v3992
        %vm4083 = vcmp.gt.f32.partialorder %v2901, %v4061
        %vm4084 = vcmp.gt.f32.partialorder %v2902, %v3992
        %vm4085 = vcmp.gt.f32.partialorder %v2903, %v4061
        %vm4086 = vcmp.gt.f32.partialorder %v2904, %v3992
        %vm4087 = vcmp.gt.f32.partialorder %v2905, %v4061
        %vm4088 = vcmp.gt.f32.partialorder %v2906, %v3992
        %vm4089 = vcmp.gt.f32.partialorder %v2907, %v4061
        %vm4090 = vcmp.gt.f32.partialorder %v2908, %v3992
        %vm4091 = vcmp.gt.f32.partialorder %v2909, %v4061
        %vm4092 = vcmp.gt.f32.partialorder %v2910, %v3992
        %vm4093 = vcmp.gt.f32.partialorder %v2911, %v4061
        %vm4094 = vcmp.gt.f32.partialorder %v2912, %v3992
        %vm4095 = vcmp.gt.f32.partialorder %v2913, %v4061
        %vm4096 = vcmp.gt.f32.partialorder %v2914, %v3992
        %vm4097 = vcmp.gt.f32.partialorder %v2915, %v4061
        %vm4098 = vcmp.gt.f32.partialorder %v2916, %v3992
        %vm4099 = vcmp.gt.f32.partialorder %v2917, %v4061
        %vm4100 = vcmp.gt.f32.partialorder %v2918, %v3992
        %vm4101 = vcmp.gt.f32.partialorder %v2919, %v4061
        %vm4102 = vcmp.gt.f32.partialorder %v2920, %v3992
        %vm4103 = vcmp.gt.f32.partialorder %v2921, %v4061
        %vm4104 = vcmp.gt.f32.partialorder %v2922, %v3992
        %vm4105 = vcmp.gt.f32.partialorder %v2923, %v4061
        %vm4106 = vcmp.gt.f32.partialorder %v2924, %v3992
        %vm4107 = vcmp.gt.f32.partialorder %v2925, %v4061
        %vm4108 = vcmp.gt.f32.partialorder %v2926, %v3992
        %vm4109 = vcmp.gt.f32.partialorder %v2927, %v4061
        %vm4110 = vcmp.gt.f32.partialorder %v2928, %v3992
        %vm4111 = vcmp.gt.f32.partialorder %v2929, %v4061
        %vm4112 = vcmp.gt.f32.partialorder %v2930, %v3992
        %vm4113 = vcmp.gt.f32.partialorder %v2931, %v4061
        %vm4114 = vcmp.gt.f32.partialorder %v2932, %v3992
        %vm4115 = vcmp.gt.f32.partialorder %v2933, %v4061
        %vm4116 = vcmp.gt.f32.partialorder %v2934, %v3992
        %vm4117 = vcmp.gt.f32.partialorder %v2935, %v4061
        %vm4118 = vcmp.gt.f32.partialorder %v2936, %v3992
        %vm4119 = vcmp.gt.f32.partialorder %v2937, %v4061
        %vm4120 = vcmp.gt.f32.partialorder %v2938, %v3992
        %vm4121 = vcmp.gt.f32.partialorder %v2939, %v4061
        %vm4122 = vcmp.gt.f32.partialorder %v2940, %v3992
        %vm4123 = vcmp.gt.f32.partialorder %v2941, %v4061
        %vm4124 = vcmp.gt.f32.partialorder %v2942, %v3992
        %vm4125 = vcmp.gt.f32.partialorder %v2943, %v4061
        %vm4126 = vcmp.gt.f32.partialorder %v2944, %v3992
        %vm4127 = vcmp.gt.f32.partialorder %v2945, %v4061
        %vm4128 = vcmp.gt.f32.partialorder %v2946, %v3992
        %vm4129 = vcmp.gt.f32.partialorder %v2947, %v4061
        %vm4130 = vcmp.gt.f32.partialorder %v2948, %v3992
        %vm4131 = vcmp.gt.f32.partialorder %v2949, %v4061
        %vm4132 = vcmp.gt.f32.partialorder %v2950, %v3992
        %vm4133 = vcmp.gt.f32.partialorder %v2951, %v4061
        %vm4134 = vcmp.gt.f32.partialorder %v2952, %v3992
        %vm4135 = vcmp.gt.f32.partialorder %v2953, %v4061
        %vm4136 = vcmp.gt.f32.partialorder %v2954, %v3992
        %vm4137 = vcmp.gt.f32.partialorder %v2955, %v4061
        %vm4138 = vcmp.gt.f32.partialorder %v2956, %v3992
        %vm4139 = vcmp.gt.f32.partialorder %v2957, %v4061
        %vm4140 = vcmp.gt.f32.partialorder %v2958, %v3992
        %vm4141 = vcmp.gt.f32.partialorder %v2959, %v4061
        %vm4142 = vcmp.gt.f32.partialorder %v2960, %v3992
        %vm4143 = vcmp.gt.f32.partialorder %v2961, %v4061
        %vm4144 = vcmp.gt.f32.partialorder %v2962, %v3992
        %vm4145 = vcmp.gt.f32.partialorder %v2963, %v4061
        %vm4146 = vcmp.gt.f32.partialorder %v2964, %v3992
        %vm4147 = vcmp.gt.f32.partialorder %v2965, %v4061
        %vm4148 = vcmp.gt.f32.partialorder %v2966, %v3992
        %vm4149 = vcmp.gt.f32.partialorder %v2967, %v4061
        %vm4150 = vcmp.gt.f32.partialorder %v2968, %v3992
        %vm4151 = vcmp.gt.f32.partialorder %v2969, %v4061
        %vm4152 = vcmp.gt.f32.partialorder %v2970, %v3992
        %vm4153 = vcmp.gt.f32.partialorder %v2971, %v4061
        %vm4154 = vcmp.gt.f32.partialorder %v2972, %v3992
        %vm4155 = vcmp.gt.f32.partialorder %v2973, %v4061
        %vm4156 = vcmp.gt.f32.partialorder %v2974, %v3992
        %vm4157 = vcmp.gt.f32.partialorder %v2975, %v4061
        %vm4158 = vcmp.gt.f32.partialorder %v2976, %v3992
        %vm4159 = vcmp.gt.f32.partialorder %v2977, %v4061
        %vm4160 = vcmp.gt.f32.partialorder %v2978, %v3992
        %vm4161 = vcmp.gt.f32.partialorder %v2979, %v4061
        %vm4162 = vcmp.gt.f32.partialorder %v2980, %v3992
        %vm4163 = vcmp.gt.f32.partialorder %v2981, %v4061
        %vm4164 = vcmp.gt.f32.partialorder %v2982, %v3992
        %vm4165 = vcmp.gt.f32.partialorder %v2983, %v4061
        %vm4166 = vcmp.gt.f32.partialorder %v2984, %v3992
        %vm4167 = vcmp.gt.f32.partialorder %v2985, %v4061
        %vm4168 = vcmp.gt.f32.partialorder %v2986, %v3992
        %vm4169 = vcmp.gt.f32.partialorder %v2987, %v4061
        %vm4170 = vcmp.gt.f32.partialorder %v2988, %v3992
        %vm4171 = vcmp.gt.f32.partialorder %v2989, %v4061
        %vm4172 = vcmp.gt.f32.partialorder %v2990, %v3992
        %vm4173 = vcmp.gt.f32.partialorder %v2991, %v4061
        %vm4174 = vcmp.gt.f32.partialorder %v2992, %v3992
        %vm4175 = vcmp.gt.f32.partialorder %v2993, %v4061
        %vm4176 = vcmp.gt.f32.partialorder %v2994, %v3992
        %vm4177 = vcmp.gt.f32.partialorder %v2995, %v4061
        %vm4178 = vcmp.gt.f32.partialorder %v2996, %v3992
        %vm4179 = vcmp.gt.f32.partialorder %v2997, %v4061
        %vm4180 = vcmp.gt.f32.partialorder %v2998, %v3992
        %vm4181 = vcmp.gt.f32.partialorder %v2999, %v4061
        %vm4182 = vcmp.gt.f32.partialorder %v3000, %v3992
        %vm4183 = vcmp.gt.f32.partialorder %v3001, %v4061
        %vm4184 = vcmp.gt.f32.partialorder %v3002, %v3992
        %vm4185 = vcmp.gt.f32.partialorder %v3003, %v4061
        %vm4186 = vcmp.gt.f32.partialorder %v3004, %v3992
        %vm4187 = vcmp.gt.f32.partialorder %v3005, %v4061
        %vm4188 = vcmp.gt.f32.partialorder %v3006, %v3992
        %vm4189 = vcmp.gt.f32.partialorder %v3007, %v4061
        %v4190 = vsel %vm4062, %v2880, 3e+38
        %v4191 = vsel %vm4063, %v2881, 3e+38
        %v4192 = vsel %vm4064, %v2882, 3e+38
        %v4193 = vsel %vm4065, %v2883, 3e+38
        %v4194 = vsel %vm4066, %v2884, 3e+38
        %v4195 = vsel %vm4067, %v2885, 3e+38
        %v4196 = vsel %vm4068, %v2886, 3e+38
        %v4197 = vsel %vm4069, %v2887, 3e+38
        %v4198 = vsel %vm4070, %v2888, 3e+38
        %v4199 = vsel %vm4071, %v2889, 3e+38
        %v4200 = vsel %vm4072, %v2890, 3e+38
        %v4201 = vsel %vm4073, %v2891, 3e+38
        %v4202 = vsel %vm4074, %v2892, 3e+38
        %v4203 = vsel %vm4075, %v2893, 3e+38
        %v4204 = vsel %vm4076, %v2894, 3e+38
        %v4205 = vsel %vm4077, %v2895, 3e+38
        %v4206 = vsel %vm4078, %v2896, 3e+38
        %v4207 = vsel %vm4079, %v2897, 3e+38
        %v4208 = vsel %vm4080, %v2898, 3e+38
        %v4209 = vsel %vm4081, %v2899, 3e+38
        %v4210 = vsel %vm4082, %v2900, 3e+38
        %v4211 = vsel %vm4083, %v2901, 3e+38
        %v4212 = vsel %vm4084, %v2902, 3e+38
        %v4213 = vsel %vm4085, %v2903, 3e+38
        %v4214 = vsel %vm4086, %v2904, 3e+38
        %v4215 = vsel %vm4087, %v2905, 3e+38
        %v4216 = vsel %vm4088, %v2906, 3e+38
        %v4217 = vsel %vm4089, %v2907, 3e+38
        %v4218 = vsel %vm4090, %v2908, 3e+38
        %v4219 = vsel %vm4091, %v2909, 3e+38
        %v4220 = vsel %vm4092, %v2910, 3e+38
        %v4221 = vsel %vm4093, %v2911, 3e+38
        %v4222 = vsel %vm4094, %v2912, 3e+38
        %v4223 = vsel %vm4095, %v2913, 3e+38
        %v4224 = vsel %vm4096, %v2914, 3e+38
        %v4225 = vsel %vm4097, %v2915, 3e+38
        %v4226 = vsel %vm4098, %v2916, 3e+38
        %v4227 = vsel %vm4099, %v2917, 3e+38
        %v4228 = vsel %vm4100, %v2918, 3e+38
        %v4229 = vsel %vm4101, %v2919, 3e+38
        %v4230 = vsel %vm4102, %v2920, 3e+38
        %v4231 = vsel %vm4103, %v2921, 3e+38
        %v4232 = vsel %vm4104, %v2922, 3e+38
        %v4233 = vsel %vm4105, %v2923, 3e+38
        %v4234 = vsel %vm4106, %v2924, 3e+38
        %v4235 = vsel %vm4107, %v2925, 3e+38
        %v4236 = vsel %vm4108, %v2926, 3e+38
        %v4237 = vsel %vm4109, %v2927, 3e+38
        %v4238 = vsel %vm4110, %v2928, 3e+38
        %v4239 = vsel %vm4111, %v2929, 3e+38
        %v4240 = vsel %vm4112, %v2930, 3e+38
        %v4241 = vsel %vm4113, %v2931, 3e+38
        %v4242 = vsel %vm4114, %v2932, 3e+38
        %v4243 = vsel %vm4115, %v2933, 3e+38
        %v4244 = vsel %vm4116, %v2934, 3e+38
        %v4245 = vsel %vm4117, %v2935, 3e+38
        %v4246 = vsel %vm4118, %v2936, 3e+38
        %v4247 = vsel %vm4119, %v2937, 3e+38
        %v4248 = vsel %vm4120, %v2938, 3e+38
        %v4249 = vsel %vm4121, %v2939, 3e+38
        %v4250 = vsel %vm4122, %v2940, 3e+38
        %v4251 = vsel %vm4123, %v2941, 3e+38
        %v4252 = vsel %vm4124, %v2942, 3e+38
        %v4253 = vsel %vm4125, %v2943, 3e+38
        %v4254 = vsel %vm4126, %v2944, 3e+38
        %v4255 = vsel %vm4127, %v2945, 3e+38
        %v4256 = vsel %vm4128, %v2946, 3e+38
        %v4257 = vsel %vm4129, %v2947, 3e+38
        %v4258 = vsel %vm4130, %v2948, 3e+38
        %v4259 = vsel %vm4131, %v2949, 3e+38
        %v4260 = vsel %vm4132, %v2950, 3e+38
        %v4261 = vsel %vm4133, %v2951, 3e+38
        %v4262 = vsel %vm4134, %v2952, 3e+38
        %v4263 = vsel %vm4135, %v2953, 3e+38
        %v4264 = vsel %vm4136, %v2954, 3e+38
        %v4265 = vsel %vm4137, %v2955, 3e+38
        %v4266 = vsel %vm4138, %v2956, 3e+38
        %v4267 = vsel %vm4139, %v2957, 3e+38
        %v4268 = vsel %vm4140, %v2958, 3e+38
        %v4269 = vsel %vm4141, %v2959, 3e+38
        %v4270 = vsel %vm4142, %v2960, 3e+38
        %v4271 = vsel %vm4143, %v2961, 3e+38
        %v4272 = vsel %vm4144, %v2962, 3e+38
        %v4273 = vsel %vm4145, %v2963, 3e+38
        %v4274 = vsel %vm4146, %v2964, 3e+38
        %v4275 = vsel %vm4147, %v2965, 3e+38
        %v4276 = vsel %vm4148, %v2966, 3e+38
        %v4277 = vsel %vm4149, %v2967, 3e+38
        %v4278 = vsel %vm4150, %v2968, 3e+38
        %v4279 = vsel %vm4151, %v2969, 3e+38
        %v4280 = vsel %vm4152, %v2970, 3e+38
        %v4281 = vsel %vm4153, %v2971, 3e+38
        %v4282 = vsel %vm4154, %v2972, 3e+38
        %v4283 = vsel %vm4155, %v2973, 3e+38
        %v4284 = vsel %vm4156, %v2974, 3e+38
        %v4285 = vsel %vm4157, %v2975, 3e+38
        %v4286 = vsel %vm4158, %v2976, 3e+38
        %v4287 = vsel %vm4159, %v2977, 3e+38
        %v4288 = vsel %vm4160, %v2978, 3e+38
        %v4289 = vsel %vm4161, %v2979, 3e+38
        %v4290 = vsel %vm4162, %v2980, 3e+38
        %v4291 = vsel %vm4163, %v2981, 3e+38
        %v4292 = vsel %vm4164, %v2982, 3e+38
        %v4293 = vsel %vm4165, %v2983, 3e+38
        %v4294 = vsel %vm4166, %v2984, 3e+38
        %v4295 = vsel %vm4167, %v2985, 3e+38
        %v4296 = vsel %vm4168, %v2986, 3e+38
        %v4297 = vsel %vm4169, %v2987, 3e+38
        %v4298 = vsel %vm4170, %v2988, 3e+38
        %v4299 = vsel %vm4171, %v2989, 3e+38
        %v4300 = vsel %vm4172, %v2990, 3e+38
        %v4301 = vsel %vm4173, %v2991, 3e+38
        %v4302 = vsel %vm4174, %v2992, 3e+38
        %v4303 = vsel %vm4175, %v2993, 3e+38
        %v4304 = vsel %vm4176, %v2994, 3e+38
        %v4305 = vsel %vm4177, %v2995, 3e+38
        %v4306 = vsel %vm4178, %v2996, 3e+38
        %v4307 = vsel %vm4179, %v2997, 3e+38
        %v4308 = vsel %vm4180, %v2998, 3e+38
        %v4309 = vsel %vm4181, %v2999, 3e+38
        %v4310 = vsel %vm4182, %v3000, 3e+38
        %v4311 = vsel %vm4183, %v3001, 3e+38
        %v4312 = vsel %vm4184, %v3002, 3e+38
        %v4313 = vsel %vm4185, %v3003, 3e+38
        %v4314 = vsel %vm4186, %v3004, 3e+38
        %v4315 = vsel %vm4187, %v3005, 3e+38
        %v4316 = vsel %vm4188, %v3006, 3e+38
        %v4317 = vsel %vm4189, %v3007, 3e+38
        %v4318 = vmin.f32 %v4190, %v4194
        %v4319 = vmin.f32 %v4192, %v4196
        %v4320 = vmin.f32 %v4318, %v4198
        %v4321 = vmin.f32 %v4319, %v4200
        %v4322 = vmin.f32 %v4320, %v4202
        %v4323 = vmin.f32 %v4321, %v4204
        %v4324 = vmin.f32 %v4322, %v4206
        %v4325 = vmin.f32 %v4323, %v4208
        %v4326 = vmin.f32 %v4324, %v4210
        %v4327 = vmin.f32 %v4325, %v4212
        %v4328 = vmin.f32 %v4326, %v4214
        %v4329 = vmin.f32 %v4327, %v4216
        %v4330 = vmin.f32 %v4328, %v4218
        %v4331 = vmin.f32 %v4329, %v4220
        %v4332 = vmin.f32 %v4330, %v4222
        %v4333 = vmin.f32 %v4331, %v4224
        %v4334 = vmin.f32 %v4332, %v4226
        %v4335 = vmin.f32 %v4333, %v4228
        %v4336 = vmin.f32 %v4334, %v4230
        %v4337 = vmin.f32 %v4335, %v4232
        %v4338 = vmin.f32 %v4336, %v4234
        %v4339 = vmin.f32 %v4337, %v4236
        %v4340 = vmin.f32 %v4338, %v4238
        %v4341 = vmin.f32 %v4339, %v4240
        %v4342 = vmin.f32 %v4340, %v4242
        %v4343 = vmin.f32 %v4341, %v4244
        %v4344 = vmin.f32 %v4342, %v4246
        %v4345 = vmin.f32 %v4343, %v4248
        %v4346 = vmin.f32 %v4344, %v4250
        %v4347 = vmin.f32 %v4345, %v4252
        %v4348 = vmin.f32 %v4346, %v4254
        %v4349 = vmin.f32 %v4347, %v4256
        %v4350 = vmin.f32 %v4348, %v4258
        %v4351 = vmin.f32 %v4349, %v4260
        %v4352 = vmin.f32 %v4350, %v4262
        %v4353 = vmin.f32 %v4351, %v4264
        %v4354 = vmin.f32 %v4352, %v4266
        %v4355 = vmin.f32 %v4353, %v4268
        %v4356 = vmin.f32 %v4354, %v4270
        %v4357 = vmin.f32 %v4355, %v4272
        %v4358 = vmin.f32 %v4356, %v4274
        %v4359 = vmin.f32 %v4357, %v4276
        %v4360 = vmin.f32 %v4358, %v4278
        %v4361 = vmin.f32 %v4359, %v4280
        %v4362 = vmin.f32 %v4360, %v4282
        %v4363 = vmin.f32 %v4361, %v4284
        %v4364 = vmin.f32 %v4362, %v4286
        %v4365 = vmin.f32 %v4363, %v4288
        %v4366 = vmin.f32 %v4364, %v4290
        %v4367 = vmin.f32 %v4365, %v4292
        %v4368 = vmin.f32 %v4366, %v4294
        %v4369 = vmin.f32 %v4367, %v4296
        %v4370 = vmin.f32 %v4368, %v4298
        %v4371 = vmin.f32 %v4369, %v4300
        %v4372 = vmin.f32 %v4370, %v4302
        %v4373 = vmin.f32 %v4371, %v4304
        %v4374 = vmin.f32 %v4372, %v4306
        %v4375 = vmin.f32 %v4373, %v4308
        %v4376 = vmin.f32 %v4374, %v4310
        %v4377 = vmin.f32 %v4375, %v4312
        %v4378 = vmin.f32 %v4376, %v4314
        %v4379 = vmin.f32 %v4377, %v4316
        %v4380 = vmin.f32 %v4378, %v4379
        %v4381 = vrot.slane %v4380, 4
        %v4382 = vmin.f32 %v4380, %v4381
        %v4383 = vrot.slane %v4382, 2
        %v4384 = vmin.f32 %v4382, %v4383
        %v4385 = vrot.slane %v4384, 1
        %v4386 = vmin.f32 %v4384, %v4385
        %v4387 = vmin.f32 %v4191, %v4195
        %v4388 = vmin.f32 %v4193, %v4197
        %v4389 = vmin.f32 %v4387, %v4199
        %v4390 = vmin.f32 %v4388, %v4201
        %v4391 = vmin.f32 %v4389, %v4203
        %v4392 = vmin.f32 %v4390, %v4205
        %v4393 = vmin.f32 %v4391, %v4207
        %v4394 = vmin.f32 %v4392, %v4209
        %v4395 = vmin.f32 %v4393, %v4211
        %v4396 = vmin.f32 %v4394, %v4213
        %v4397 = vmin.f32 %v4395, %v4215
        %v4398 = vmin.f32 %v4396, %v4217
        %v4399 = vmin.f32 %v4397, %v4219
        %v4400 = vmin.f32 %v4398, %v4221
        %v4401 = vmin.f32 %v4399, %v4223
        %v4402 = vmin.f32 %v4400, %v4225
        %v4403 = vmin.f32 %v4401, %v4227
        %v4404 = vmin.f32 %v4402, %v4229
        %v4405 = vmin.f32 %v4403, %v4231
        %v4406 = vmin.f32 %v4404, %v4233
        %v4407 = vmin.f32 %v4405, %v4235
        %v4408 = vmin.f32 %v4406, %v4237
        %v4409 = vmin.f32 %v4407, %v4239
        %v4410 = vmin.f32 %v4408, %v4241
        %v4411 = vmin.f32 %v4409, %v4243
        %v4412 = vmin.f32 %v4410, %v4245
        %v4413 = vmin.f32 %v4411, %v4247
        %v4414 = vmin.f32 %v4412, %v4249
        %v4415 = vmin.f32 %v4413, %v4251
        %v4416 = vmin.f32 %v4414, %v4253
        %v4417 = vmin.f32 %v4415, %v4255
        %v4418 = vmin.f32 %v4416, %v4257
        %v4419 = vmin.f32 %v4417, %v4259
        %v4420 = vmin.f32 %v4418, %v4261
        %v4421 = vmin.f32 %v4419, %v4263
        %v4422 = vmin.f32 %v4420, %v4265
        %v4423 = vmin.f32 %v4421, %v4267
        %v4424 = vmin.f32 %v4422, %v4269
        %v4425 = vmin.f32 %v4423, %v4271
        %v4426 = vmin.f32 %v4424, %v4273
        %v4427 = vmin.f32 %v4425, %v4275
        %v4428 = vmin.f32 %v4426, %v4277
        %v4429 = vmin.f32 %v4427, %v4279
        %v4430 = vmin.f32 %v4428, %v4281
        %v4431 = vmin.f32 %v4429, %v4283
        %v4432 = vmin.f32 %v4430, %v4285
        %v4433 = vmin.f32 %v4431, %v4287
        %v4434 = vmin.f32 %v4432, %v4289
        %v4435 = vmin.f32 %v4433, %v4291
        %v4436 = vmin.f32 %v4434, %v4293
        %v4437 = vmin.f32 %v4435, %v4295
        %v4438 = vmin.f32 %v4436, %v4297
        %v4439 = vmin.f32 %v4437, %v4299
        %v4440 = vmin.f32 %v4438, %v4301
        %v4441 = vmin.f32 %v4439, %v4303
        %v4442 = vmin.f32 %v4440, %v4305
        %v4443 = vmin.f32 %v4441, %v4307
        %v4444 = vmin.f32 %v4442, %v4309
        %v4445 = vmin.f32 %v4443, %v4311
        %v4446 = vmin.f32 %v4444, %v4313
        %v4447 = vmin.f32 %v4445, %v4315
        %v4448 = vmin.f32 %v4446, %v4317
        %v4449 = vmin.f32 %v4447, %v4448
        %v4450 = vrot.slane %v4449, 4
        %v4451 = vmin.f32 %v4449, %v4450
        %v4452 = vrot.slane %v4451, 2
        %v4453 = vmin.f32 %v4451, %v4452
        %v4454 = vrot.slane %v4453, 1
        %v4455 = vmin.f32 %v4453, %v4454
        %vm4456 = vcmask 1040384
        %v4457 = vsel %vm4456, %v3204, %v3598
        %v4458 = vsel %vm4456, %v3273, %v3667
        %vm4459 = vcmask 1041408
        %v4460 = vsel %vm4459, %v4457, %v3992
        %v4461 = vsel %vm4459, %v4458, %v4061
        %vm4462 = vcmask 1042432
        %v4463 = vsel %vm4462, %v4460, %v4386
        %v4464 = vsel %vm4462, %v4461, %v4455
        %v4467 = vrot.slane %v4463, 4
        %v4468 = vrot.slane %v4464, 4
        %vm4471 = vcmask 1043456
        %v4472 = vsel %vm4471, 3e+38, %v4467
        %v4473 = vsel %vm4471, 3e+38, %v4468
        %v4474 = vrot.slane %v4472, 4
        %v4475 = vmin.f32 %v4472, %v4474
        %v4476 = vrot.slane %v4475, 2
        %v4477 = vmin.f32 %v4475, %v4476
        %v4478 = vrot.slane %v4477, 1
        %v4479 = vmin.f32 %v4477, %v4478
        %v4480 = vrot.slane %v4473, 4
        %v4481 = vmin.f32 %v4473, %v4480
        %v4482 = vrot.slane %v4481, 2
        %v4483 = vmin.f32 %v4481, %v4482
        %v4484 = vrot.slane %v4483, 1
        %v4485 = vmin.f32 %v4483, %v4484
        %vm4486 = vcmp.gt.f32.partialorder %v4472, %v4479
        %vm4487 = vcmp.gt.f32.partialorder %v4473, %v4485
        %v4488 = vsel %vm4486, %v4472, 3e+38
        %v4489 = vsel %vm4487, %v4473, 3e+38
        %v4490 = vrot.slane %v4488, 4
        %v4491 = vmin.f32 %v4488, %v4490
        %v4492 = vrot.slane %v4491, 2
        %v4493 = vmin.f32 %v4491, %v4492
        %v4494 = vrot.slane %v4493, 1
        %v4495 = vmin.f32 %v4493, %v4494
        %v4496 = vrot.slane %v4489, 4
        %v4497 = vmin.f32 %v4489, %v4496
        %v4498 = vrot.slane %v4497, 2
        %v4499 = vmin.f32 %v4497, %v4498
        %v4500 = vrot.slane %v4499, 1
        %v4501 = vmin.f32 %v4499, %v4500
        %vm4502 = vcmp.gt.f32.partialorder %v4472, %v4495
        %vm4503 = vcmp.gt.f32.partialorder %v4473, %v4501
        %v4504 = vsel %vm4502, %v4472, 3e+38
        %v4505 = vsel %vm4503, %v4473, 3e+38
        %v4506 = vrot.slane %v4504, 4
        %v4507 = vmin.f32 %v4504, %v4506
        %v4508 = vrot.slane %v4507, 2
        %v4509 = vmin.f32 %v4507, %v4508
        %v4510 = vrot.slane %v4509, 1
        %v4511 = vmin.f32 %v4509, %v4510
        %v4512 = vrot.slane %v4505, 4
        %v4513 = vmin.f32 %v4505, %v4512
        %v4514 = vrot.slane %v4513, 2
        %v4515 = vmin.f32 %v4513, %v4514
        %v4516 = vrot.slane %v4515, 1
        %v4517 = vmin.f32 %v4515, %v4516
        %vm4518 = vcmp.gt.f32.partialorder %v4472, %v4511
        %vm4519 = vcmp.gt.f32.partialorder %v4473, %v4517
        %v4520 = vsel %vm4518, %v4472, 3e+38
        %v4521 = vsel %vm4519, %v4473, 3e+38
        %v4522 = vrot.slane %v4520, 4
        %v4523 = vmin.f32 %v4520, %v4522
        %v4524 = vrot.slane %v4523, 2
        %v4525 = vmin.f32 %v4523, %v4524
        %v4526 = vrot.slane %v4525, 1
        %v4527 = vmin.f32 %v4525, %v4526
        %v4528 = vrot.slane %v4521, 4
        %v4529 = vmin.f32 %v4521, %v4528
        %v4530 = vrot.slane %v4529, 2
        %v4531 = vmin.f32 %v4529, %v4530
        %v4532 = vrot.slane %v4531, 1
        %v4533 = vmin.f32 %v4531, %v4532
        %v4534 = vsel %vm4456, %v4479, %v4495
        %v4535 = vsel %vm4456, %v4485, %v4501
        %v4536 = vsel %vm4459, %v4534, %v4511
        %v4537 = vsel %vm4459, %v4535, %v4517
        %v4538 = vsel %vm4462, %v4536, %v4527
        %v4539 = vsel %vm4462, %v4537, %v4533
        %v4542 = vand.u32 %v4538, 511
        %v4543 = vand.u32 %v4539, 511
        %vm4544 = vcmp.lt.f32.partialorder %v4538, 1e+29
        %vm4545 = vcmp.lt.f32.partialorder %v4539, 1e+29
        %v4546 = vsel %vm4544, %v4542, 512
        %v4547 = vsel %vm4545, %v4543, 512
        %v4548 = vsel %vm4471, %v4546, 512
        %v4549 = vsel %vm4471, %v4547, 512
        %4550 = vst [vmem:[%s137] sm:$0xff] %v4548
        %4551 = vst [vmem:[%s137 + $0x8] sm:$0xff] %v4549
        %s4552 = sand.u32 %s71, 1
        %s4553 = scalar_lea.sflag [#allocation3], %s4552
        %s4554 = sand.u32 %s71, 1
        %s4555 = smul.addr %s4554, 16
        %s4556 = scalar_lea.vmem [#allocation2], %s4555
        // Predicated region
        $region29: #{_device_pipeline.1} parent=27 // pred_check
          %p4557 = pneg %p81
        $region30: #{_device_pipeline.1} parent=27 // pred_check_branch
          %4559 = sbr.rel (%p4557) target = $region32
        $region31: #{_device_pipeline.1} parent=27 // pred_region
          %s4560 = smul.u32 2, %s16
          %s4562 = ssub.s32 256, 256
          %4563 = vsyncadd %s4553, %s4562
          %s4564 = smul.addr %s4560, 128
          %s4565 = scalar_lea.hbm %s2, %s4564
          %s4567 = sshll.u32 %s4556, 4
          %s4568 = int_to_ptr.vmem [resolvable:$true] %s4567
          %4570 = dma.vmem_to_hbm [thread:$0]  %s4568, 256, %s4565, %s4553
        $region32: #{_device_pipeline.1} parent=27 // pred_fallthru
          _
      $region28: #{_device_pipeline.1} parent=5 // pred_fallthru
        _
      %p4571 = scmp.le.s32.totalorder 2, %s11
      // Predicated region
      $region33: #{_device_pipeline.1} parent=5 // pred_check
        %p4572 = pneg %p4571
      $region34: #{_device_pipeline.1} parent=5 // pred_check_branch
        %4574 = sbr.rel (%p4572) target = $region36
      $region35: #{_device_pipeline.1} parent=5 // pred_region
        %s4575 = ssub.s32 %s11, 2
        // Predicated region
        $region37: #{_device_pipeline.1} parent=35 // pred_check
          %p4576 = pneg %p87
        $region38: #{_device_pipeline.1} parent=35 // pred_check_branch
          %4578 = sbr.rel (%p4576) target = $region40
        $region39: #{_device_pipeline.1} parent=35 // pred_region
          %s4579 = sand.u32 %s72, 1
          %s4580 = scalar_lea.sflag [#allocation3], %s4579
          %s4581 = sand.u32 %s72, 1
          %s4582 = smul.addr %s4581, 16
          %s4583 = scalar_lea.vmem [#allocation2], %s4582
          %4584 = dma.done %s4580, 256
        $region40: #{_device_pipeline.1} parent=35 // pred_fallthru
          _
      $region36: #{_device_pipeline.1} parent=5 // pred_fallthru
        _
    $region6: #{_device_pipeline.1} parent=1 // loop_footer
      %s15 = sadd.s32 1, %s11
    $region7: #{_device_pipeline.1} parent=1 // loop_footer_branch
      %10 = sbr.rel target = $region3
    $region8: #{_device_pipeline.1} parent=1 // loop_exit
      _
    %4585 = vsyncpa [#allocation3], 1
    %s4586 = scalar_lea.sflag [#allocation3], 1
    %4587 = vsyncpa %s4586, 1

</llo_original>
